<compile_context>
chip_gen: v6e
topology: v6e:2x2x1
jax: 0.10.0
libtpu: 0.0.40
codegen_flags: <defaults>
</compile_context>

<pallas_src>
import jax
import jax.numpy as jnp
from jax.experimental import pallas as pl
from jax.experimental.pallas import tpu as pltpu

_BB = 8  # f32 sublane count: batch rows per grid step / per vreg


def _lstm_kernel(x_ref,      # (BB, T, 1)  batch-first input (input_size == 1)
                 wih1_ref,   # (1, 4H)     layer-1 input->gates, order (i,f,o,g)
                 w1f_ref,    # (H, 8H)     fused [W2_ih | W1_hh] -> 128 lanes
                 b1_ref,     # (1, 4H)     layer-1 fused bias (b_ih + b_hh)
                 w2hh_ref,   # (H, 4H)     layer-2 hidden->gates
                 b2_ref,     # (1, 4H)     layer-2 fused bias
                 wout_ref,   # (H, 1)      final Linear weight (transposed)
                 bout_ref,   # (1, 1)      final Linear bias
                 out_ref):   # (BB, 1)
    BB, T, _ = x_ref.shape
    H = w2hh_ref.shape[0]

    # ---- hoist all parameters out of the recurrence (read VMEM once) ----
    w1f = w1f_ref[...]
    w2hh = w2hh_ref[...]
    b2 = b2_ref[...]
    wout = wout_ref[...]
    bout = bout_ref[...]

    # ---- precompute layer-1 input projection + bias for ALL timesteps ----
    # I == 1: (BB, T, 1) * (1, 4H) broadcast-mul on the VPU -> (BB, T, 4H).
    xproj = x_ref[...] * wih1_ref[...] + b1_ref[...]

    def activate(pre, c):
        # pre: (BB, 4H), gate order (i, f, o, g)
        sig = jax.nn.sigmoid(pre[:, : 3 * H])      # i, f, o in one EUP pass
        g = jnp.tanh(pre[:, 3 * H:])
        i_g = sig[:, :H]
        f_g = sig[:, H: 2 * H]
        o_g = sig[:, 2 * H:]
        c_new = f_g * c + i_g * g
        h_new = o_g * jnp.tanh(c_new)
        return h_new, c_new

    zeros = jnp.zeros((BB, H), jnp.float32)

    # ---- peeled t = 0: h1/h2/c1/c2 are all zero -> skip hidden matmuls ----
    h1, c1 = activate(xproj[:, 0, :], zeros)
    p = jnp.dot(h1, w1f, preferred_element_type=jnp.float32)     # (BB, 8H)
    h2, c2 = activate(p[:, : 4 * H] + b2, zeros)
    hproj1 = p[:, 4 * H:]          # layer-1 hidden projection for step t+1

    # ---- fully unrolled 2-layer recurrence (T small and static) ----
    for t in range(1, T):
        h1, c1 = activate(xproj[:, t, :] + hproj1, c1)
        # One 128-lane MXU push serves both layers:
        #   p[:, :4H] = h1 @ W2_ih   (layer-2 input proj, this step)
        #   p[:, 4H:] = h1 @ W1_hh   (layer-1 hidden proj, next step)
        p = jnp.dot(h1, w1f, preferred_element_type=jnp.float32)
        pre2 = (p[:, : 4 * H]
                + jnp.dot(h2, w2hh, preferred_element_type=jnp.float32)
                + b2)
        h2, c2 = activate(pre2, c2)
        hproj1 = p[:, 4 * H:]

    # ---- final Linear on the last hidden state of layer 2 ----
    out_ref[...] = jnp.dot(h2, wout, preferred_element_type=jnp.float32) + bout


@jax.jit
def lstm_forward(x, params):
    """x: (B, T, 1) float32 (batch_first, input_size == 1). Returns (B, 1)."""
    B, T, I = x.shape
    assert I == 1, "kernel specializes the module's input_size=1"
    H = params["whh1"].shape[0]

    # One-time packing (outside the kernel): split layer-2's stacked weight
    # and fuse h1's two consumers into a single (H, 8H) = (16, 128) matrix.
    w2 = params["w2"]
    w1f = jnp.concatenate([w2[:H], params["whh1"]], axis=1)      # (H, 8H)
    w2hh = w2[H:]                                                # (H, 4H)

    # Pad batch up to a multiple of 8 (f32 sublane count); padded rows are
    # computed (row-independent math) and sliced off afterwards.
    B_pad = ((B + _BB - 1) // _BB) * _BB
    x_p = jnp.pad(x, ((0, B_pad - B), (0, 0), (0, 0)))

    rep = lambda b: (0, 0)   # weights: same (resident) block every grid step
    out = pl.pallas_call(
        _lstm_kernel,
        out_shape=jax.ShapeDtypeStruct((B_pad, 1), jnp.float32),
        grid=(B_pad // _BB,),
        in_specs=[
            pl.BlockSpec((_BB, T, 1), lambda b: (b, 0, 0)),
            pl.BlockSpec((1, 4 * H), rep),
            pl.BlockSpec((H, 8 * H), rep),
            pl.BlockSpec((1, 4 * H), rep),
            pl.BlockSpec((H, 4 * H), rep),
            pl.BlockSpec((1, 4 * H), rep),
            pl.BlockSpec((H, 1), rep),
            pl.BlockSpec((1, 1), rep),
        ],
        out_specs=pl.BlockSpec((_BB, 1), lambda b: (b, 0)),
        compiler_params=pltpu.CompilerParams(
            dimension_semantics=("parallel",)),   # batch chunks -> 2 TCs on v7x
    )(x_p, params["wih1"], w1f, params["b1"], w2hh, params["b2"],
      params["wout"], params["bout"])
    return out[:B]


def init_params(key, input_size=1, hidden_size=16, output_size=1):
    """PyTorch-style U(-1/sqrt(H), 1/sqrt(H)) synthetic parameters.

    Gate weights are stored fused and pre-transposed: (K, 4H) with gate order
    (i, f, o, g); the two PyTorch biases (b_ih, b_hh) are folded into one.
    Layer-2's W_ih and W_hh are stacked into a single (2H, 4H) matrix.

    NOTE: real nn.LSTM checkpoints use gate order (i, f, g, o); to load them,
    permute the last-dim column blocks [i, f, g, o] -> [i, f, o, g] (and the
    matching bias blocks) when building these arrays.
    """
    H, I, O = hidden_size, input_size, output_size
    k = 1.0 / jnp.sqrt(jnp.float32(H))
    keys = jax.random.split(key, 7)

    def u(kk, shape):
        return jax.random.uniform(kk, shape, jnp.float32, -k, k)

    return {
        "wih1": u(keys[0], (I, 4 * H)),
        "whh1": u(keys[1], (H, 4 * H)),
        "b1":   u(keys[2], (1, 4 * H)),
        "w2":   u(keys[3], (2 * H, 4 * H)),   # stacked [W_ih; W_hh]
        "b2":   u(keys[4], (1, 4 * H)),
        "wout": u(keys[5], (H, O)),
        "bout": u(keys[6], (1, O)),
    }


def lstm_forward_ref(x, params):
    """Pure-JAX reference (unfused, per-gate) for validation."""
    B, T, I = x.shape
    H = params["whh1"].shape[0]

    def cell(x_t, h, c, wih, whh, b):
        pre = x_t @ wih + h @ whh + b           # (B, 4H), order (i, f, o, g)
        i = jax.nn.sigmoid(pre[:, 0 * H:1 * H])
        f = jax.nn.sigmoid(pre[:, 1 * H:2 * H])
        o = jax.nn.sigmoid(pre[:, 2 * H:3 * H])
        g = jnp.tanh(pre[:, 3 * H:4 * H])
        c = f * c + i * g
        h = o * jnp.tanh(c)
        return h, c

    wih2 = params["w2"][:H]
    whh2 = params["w2"][H:]
    h1 = jnp.zeros((B, H)); c1 = jnp.zeros((B, H))
    h2 = jnp.zeros((B, H)); c2 = jnp.zeros((B, H))
    for t in range(T):
        h1, c1 = cell(x[:, t, :], h1, c1,
                      params["wih1"], params["whh1"], params["b1"])
        h2, c2 = cell(h1, h2, c2, wih2, whh2, params["b2"])
    return h2 @ params["wout"] + params["bout"]


# TODO(synk): the training utilities (_train/training_lstm/predict with Adam,
# MSELoss, external scalers) are outside the forward pass and not implemented.

if __name__ == "__main__":
    key = jax.random.PRNGKey(0)
    k_param, k_x1, k_x2 = jax.random.split(key, 3)

    B, T, I, H, O = 2, 8, 1, 16, 1
    params = init_params(k_param, input_size=I, hidden_size=H, output_size=O)

    # Case 1: module-sized demo (B=2 -> padded to one 8-row chunk, grid=(1,)).
    x = jax.random.normal(k_x1, (B, T, I), jnp.float32)
    out = jax.block_until_ready(lstm_forward(x, params))
    ref = lstm_forward_ref(x, params)
    assert out.shape == (B, O), out.shape
    assert jnp.allclose(out, ref, rtol=1e-4, atol=1e-4), (out, ref)

    # Case 2: batch that needs padding + a multi-chunk grid (B=11 -> grid=(2,)).
    B2 = 11
    x2 = jax.random.normal(k_x2, (B2, T, I), jnp.float32)
    out2 = jax.block_until_ready(lstm_forward(x2, params))
    ref2 = lstm_forward_ref(x2, params)
    assert out2.shape == (B2, O), out2.shape
    assert jnp.allclose(out2, ref2, rtol=1e-4, atol=1e-4), (out2, ref2)

    print("KERNEL_OK")
</pallas_src>

<mosaic_0001>
module attributes {stable_mosaic.version = 11 : i64} {
  func.func @_lstm_kernel(%arg0: i32, %arg1: memref<8x8x1xf32, #tpu.memory_space<vmem>>, %arg2: memref<1x64xf32, #tpu.memory_space<vmem>>, %arg3: memref<16x128xf32, #tpu.memory_space<vmem>>, %arg4: memref<1x64xf32, #tpu.memory_space<vmem>>, %arg5: memref<16x64xf32, #tpu.memory_space<vmem>>, %arg6: memref<1x64xf32, #tpu.memory_space<vmem>>, %arg7: memref<16x1xf32, #tpu.memory_space<vmem>>, %arg8: memref<1x1xf32, #tpu.memory_space<vmem>>, %arg9: memref<8x1xf32, #tpu.memory_space<vmem>>) attributes {dimension_semantics = [#tpu.dimension_semantics<parallel>], iteration_bounds = array<i64: 1>, scalar_prefetch = 0 : i64, scratch_operands = 0 : i64, tpu.core_type = #tpu.core_type<tc>, window_params = [{transform_indices = @transform_0, window_bounds = array<i64: 8, 8, 1>}, {pipeline_mode = #tpu.pipeline_mode<synchronous>, transform_indices = @transform_1, window_bounds = array<i64: 1, 64>}, {pipeline_mode = #tpu.pipeline_mode<synchronous>, transform_indices = @transform_2, window_bounds = array<i64: 16, 128>}, {pipeline_mode = #tpu.pipeline_mode<synchronous>, transform_indices = @transform_3, window_bounds = array<i64: 1, 64>}, {pipeline_mode = #tpu.pipeline_mode<synchronous>, transform_indices = @transform_4, window_bounds = array<i64: 16, 64>}, {pipeline_mode = #tpu.pipeline_mode<synchronous>, transform_indices = @transform_5, window_bounds = array<i64: 1, 64>}, {pipeline_mode = #tpu.pipeline_mode<synchronous>, transform_indices = @transform_6, window_bounds = array<i64: 16, 1>}, {pipeline_mode = #tpu.pipeline_mode<synchronous>, transform_indices = @transform_7, window_bounds = array<i64: 1, 1>}, {transform_indices = @transform_8, window_bounds = array<i64: 8, 1>}]} {
    %c0 = arith.constant 0 : index
    %c0_0 = arith.constant 0 : index
    %0 = vector.load %arg3[%c0, %c0_0] : memref<16x128xf32, #tpu.memory_space<vmem>>, vector<16x128xf32>
    %c0_1 = arith.constant 0 : index
    %c0_2 = arith.constant 0 : index
    %1 = vector.load %arg5[%c0_1, %c0_2] : memref<16x64xf32, #tpu.memory_space<vmem>>, vector<16x64xf32>
    %c0_3 = arith.constant 0 : index
    %c0_4 = arith.constant 0 : index
    %2 = vector.load %arg6[%c0_3, %c0_4] : memref<1x64xf32, #tpu.memory_space<vmem>>, vector<1x64xf32>
    %c0_5 = arith.constant 0 : index
    %c0_6 = arith.constant 0 : index
    %3 = vector.load %arg7[%c0_5, %c0_6] : memref<16x1xf32, #tpu.memory_space<vmem>>, vector<16x1xf32>
    %c0_7 = arith.constant 0 : index
    %c0_8 = arith.constant 0 : index
    %4 = vector.load %arg8[%c0_7, %c0_8] : memref<1x1xf32, #tpu.memory_space<vmem>>, vector<1x1xf32>
    %c0_9 = arith.constant 0 : index
    %c0_10 = arith.constant 0 : index
    %c0_11 = arith.constant 0 : index
    %5 = vector.load %arg1[%c0_9, %c0_10, %c0_11] : memref<8x8x1xf32, #tpu.memory_space<vmem>>, vector<8x8x1xf32>
    %c0_12 = arith.constant 0 : index
    %c0_13 = arith.constant 0 : index
    %6 = vector.load %arg2[%c0_12, %c0_13] : memref<1x64xf32, #tpu.memory_space<vmem>>, vector<1x64xf32>
    %7 = vector.shape_cast %6 : vector<1x64xf32> to vector<1x1x64xf32>
    %8 = vector.broadcast %5 : vector<8x8x1xf32> to vector<8x8x64xf32>
    %9 = vector.broadcast %7 : vector<1x1x64xf32> to vector<8x8x64xf32>
    %10 = arith.mulf %8, %9 : vector<8x8x64xf32>
    %c0_14 = arith.constant 0 : index
    %c0_15 = arith.constant 0 : index
    %11 = vector.load %arg4[%c0_14, %c0_15] : memref<1x64xf32, #tpu.memory_space<vmem>>, vector<1x64xf32>
    %12 = vector.shape_cast %11 : vector<1x64xf32> to vector<1x1x64xf32>
    %13 = vector.broadcast %12 : vector<1x1x64xf32> to vector<8x8x64xf32>
    %14 = arith.addf %10, %13 : vector<8x8x64xf32>
    %cst = arith.constant 0.000000e+00 : f32
    %15 = vector.broadcast %cst : f32 to vector<8x16xf32>
    %16 = vector.extract_strided_slice %14 {offsets = [0, 0, 0], sizes = [8, 1, 64], strides = [1, 1, 1]} : vector<8x8x64xf32> to vector<8x1x64xf32>
    %17 = vector.shape_cast %16 : vector<8x1x64xf32> to vector<8x64xf32>
    %18 = vector.extract_strided_slice %17 {offsets = [0, 0], sizes = [8, 48], strides = [1, 1]} : vector<8x64xf32> to vector<8x48xf32>
    %19 = arith.negf %18 : vector<8x48xf32>
    %20 = math.exp %19 : vector<8x48xf32>
    %cst_16 = arith.constant 1.000000e+00 : f32
    %21 = vector.broadcast %cst_16 : f32 to vector<8x48xf32>
    %22 = arith.addf %21, %20 : vector<8x48xf32>
    %23 = arith.divf %21, %22 : vector<8x48xf32>
    %24 = vector.extract_strided_slice %17 {offsets = [0, 48], sizes = [8, 16], strides = [1, 1]} : vector<8x64xf32> to vector<8x16xf32>
    %25 = math.tanh %24 : vector<8x16xf32>
    %26 = vector.extract_strided_slice %23 {offsets = [0, 0], sizes = [8, 16], strides = [1, 1]} : vector<8x48xf32> to vector<8x16xf32>
    %27 = vector.extract_strided_slice %23 {offsets = [0, 16], sizes = [8, 16], strides = [1, 1]} : vector<8x48xf32> to vector<8x16xf32>
    %28 = vector.extract_strided_slice %23 {offsets = [0, 32], sizes = [8, 16], strides = [1, 1]} : vector<8x48xf32> to vector<8x16xf32>
    %29 = arith.mulf %27, %15 : vector<8x16xf32>
    %30 = arith.mulf %26, %25 : vector<8x16xf32>
    %31 = arith.addf %29, %30 : vector<8x16xf32>
    %32 = math.tanh %31 : vector<8x16xf32>
    %33 = arith.mulf %28, %32 : vector<8x16xf32>
    %cst_17 = arith.constant dense<0.000000e+00> : vector<8x128xf32>
    %34 = tpu.matmul %33, %0, %cst_17 {dimension_numbers = #tpu.dot_dimension_numbers<[1], [0], [0], [1], [0, 0, 1, 1], [], []>} : vector<8x16xf32>, vector<16x128xf32>, vector<8x128xf32> -> vector<8x128xf32>
    %35 = vector.extract_strided_slice %34 {offsets = [0, 0], sizes = [8, 64], strides = [1, 1]} : vector<8x128xf32> to vector<8x64xf32>
    %36 = vector.broadcast %2 : vector<1x64xf32> to vector<8x64xf32>
    %37 = arith.addf %35, %36 : vector<8x64xf32>
    %38 = vector.extract_strided_slice %37 {offsets = [0, 0], sizes = [8, 48], strides = [1, 1]} : vector<8x64xf32> to vector<8x48xf32>
    %39 = arith.negf %38 : vector<8x48xf32>
    %40 = math.exp %39 : vector<8x48xf32>
    %cst_18 = arith.constant 1.000000e+00 : f32
    %41 = vector.broadcast %cst_18 : f32 to vector<8x48xf32>
    %42 = arith.addf %41, %40 : vector<8x48xf32>
    %43 = arith.divf %41, %42 : vector<8x48xf32>
    %44 = vector.extract_strided_slice %37 {offsets = [0, 48], sizes = [8, 16], strides = [1, 1]} : vector<8x64xf32> to vector<8x16xf32>
    %45 = math.tanh %44 : vector<8x16xf32>
    %46 = vector.extract_strided_slice %43 {offsets = [0, 0], sizes = [8, 16], strides = [1, 1]} : vector<8x48xf32> to vector<8x16xf32>
    %47 = vector.extract_strided_slice %43 {offsets = [0, 16], sizes = [8, 16], strides = [1, 1]} : vector<8x48xf32> to vector<8x16xf32>
    %48 = vector.extract_strided_slice %43 {offsets = [0, 32], sizes = [8, 16], strides = [1, 1]} : vector<8x48xf32> to vector<8x16xf32>
    %49 = arith.mulf %47, %15 : vector<8x16xf32>
    %50 = arith.mulf %46, %45 : vector<8x16xf32>
    %51 = arith.addf %49, %50 : vector<8x16xf32>
    %52 = math.tanh %51 : vector<8x16xf32>
    %53 = arith.mulf %48, %52 : vector<8x16xf32>
    %54 = vector.extract_strided_slice %34 {offsets = [0, 64], sizes = [8, 64], strides = [1, 1]} : vector<8x128xf32> to vector<8x64xf32>
    %55 = vector.extract_strided_slice %14 {offsets = [0, 1, 0], sizes = [8, 1, 64], strides = [1, 1, 1]} : vector<8x8x64xf32> to vector<8x1x64xf32>
    %56 = vector.shape_cast %55 : vector<8x1x64xf32> to vector<8x64xf32>
    %57 = arith.addf %56, %54 : vector<8x64xf32>
    %58 = vector.extract_strided_slice %57 {offsets = [0, 0], sizes = [8, 48], strides = [1, 1]} : vector<8x64xf32> to vector<8x48xf32>
    %59 = arith.negf %58 : vector<8x48xf32>
    %60 = math.exp %59 : vector<8x48xf32>
    %cst_19 = arith.constant 1.000000e+00 : f32
    %61 = vector.broadcast %cst_19 : f32 to vector<8x48xf32>
    %62 = arith.addf %61, %60 : vector<8x48xf32>
    %63 = arith.divf %61, %62 : vector<8x48xf32>
    %64 = vector.extract_strided_slice %57 {offsets = [0, 48], sizes = [8, 16], strides = [1, 1]} : vector<8x64xf32> to vector<8x16xf32>
    %65 = math.tanh %64 : vector<8x16xf32>
    %66 = vector.extract_strided_slice %63 {offsets = [0, 0], sizes = [8, 16], strides = [1, 1]} : vector<8x48xf32> to vector<8x16xf32>
    %67 = vector.extract_strided_slice %63 {offsets = [0, 16], sizes = [8, 16], strides = [1, 1]} : vector<8x48xf32> to vector<8x16xf32>
    %68 = vector.extract_strided_slice %63 {offsets = [0, 32], sizes = [8, 16], strides = [1, 1]} : vector<8x48xf32> to vector<8x16xf32>
    %69 = arith.mulf %67, %31 : vector<8x16xf32>
    %70 = arith.mulf %66, %65 : vector<8x16xf32>
    %71 = arith.addf %69, %70 : vector<8x16xf32>
    %72 = math.tanh %71 : vector<8x16xf32>
    %73 = arith.mulf %68, %72 : vector<8x16xf32>
    %cst_20 = arith.constant dense<0.000000e+00> : vector<8x128xf32>
    %74 = tpu.matmul %73, %0, %cst_20 {dimension_numbers = #tpu.dot_dimension_numbers<[1], [0], [0], [1], [0, 0, 1, 1], [], []>} : vector<8x16xf32>, vector<16x128xf32>, vector<8x128xf32> -> vector<8x128xf32>
    %75 = vector.extract_strided_slice %74 {offsets = [0, 0], sizes = [8, 64], strides = [1, 1]} : vector<8x128xf32> to vector<8x64xf32>
    %cst_21 = arith.constant dense<0.000000e+00> : vector<8x64xf32>
    %76 = tpu.matmul %53, %1, %cst_21 {dimension_numbers = #tpu.dot_dimension_numbers<[1], [0], [0], [1], [0, 0, 1, 1], [], []>} : vector<8x16xf32>, vector<16x64xf32>, vector<8x64xf32> -> vector<8x64xf32>
    %77 = arith.addf %75, %76 : vector<8x64xf32>
    %78 = vector.broadcast %2 : vector<1x64xf32> to vector<8x64xf32>
    %79 = arith.addf %77, %78 : vector<8x64xf32>
    %80 = vector.extract_strided_slice %79 {offsets = [0, 0], sizes = [8, 48], strides = [1, 1]} : vector<8x64xf32> to vector<8x48xf32>
    %81 = arith.negf %80 : vector<8x48xf32>
    %82 = math.exp %81 : vector<8x48xf32>
    %cst_22 = arith.constant 1.000000e+00 : f32
    %83 = vector.broadcast %cst_22 : f32 to vector<8x48xf32>
    %84 = arith.addf %83, %82 : vector<8x48xf32>
    %85 = arith.divf %83, %84 : vector<8x48xf32>
    %86 = vector.extract_strided_slice %79 {offsets = [0, 48], sizes = [8, 16], strides = [1, 1]} : vector<8x64xf32> to vector<8x16xf32>
    %87 = math.tanh %86 : vector<8x16xf32>
    %88 = vector.extract_strided_slice %85 {offsets = [0, 0], sizes = [8, 16], strides = [1, 1]} : vector<8x48xf32> to vector<8x16xf32>
    %89 = vector.extract_strided_slice %85 {offsets = [0, 16], sizes = [8, 16], strides = [1, 1]} : vector<8x48xf32> to vector<8x16xf32>
    %90 = vector.extract_strided_slice %85 {offsets = [0, 32], sizes = [8, 16], strides = [1, 1]} : vector<8x48xf32> to vector<8x16xf32>
    %91 = arith.mulf %89, %51 : vector<8x16xf32>
    %92 = arith.mulf %88, %87 : vector<8x16xf32>
    %93 = arith.addf %91, %92 : vector<8x16xf32>
    %94 = math.tanh %93 : vector<8x16xf32>
    %95 = arith.mulf %90, %94 : vector<8x16xf32>
    %96 = vector.extract_strided_slice %74 {offsets = [0, 64], sizes = [8, 64], strides = [1, 1]} : vector<8x128xf32> to vector<8x64xf32>
    %97 = vector.extract_strided_slice %14 {offsets = [0, 2, 0], sizes = [8, 1, 64], strides = [1, 1, 1]} : vector<8x8x64xf32> to vector<8x1x64xf32>
    %98 = vector.shape_cast %97 : vector<8x1x64xf32> to vector<8x64xf32>
    %99 = arith.addf %98, %96 : vector<8x64xf32>
    %100 = vector.extract_strided_slice %99 {offsets = [0, 0], sizes = [8, 48], strides = [1, 1]} : vector<8x64xf32> to vector<8x48xf32>
    %101 = arith.negf %100 : vector<8x48xf32>
    %102 = math.exp %101 : vector<8x48xf32>
    %cst_23 = arith.constant 1.000000e+00 : f32
    %103 = vector.broadcast %cst_23 : f32 to vector<8x48xf32>
    %104 = arith.addf %103, %102 : vector<8x48xf32>
    %105 = arith.divf %103, %104 : vector<8x48xf32>
    %106 = vector.extract_strided_slice %99 {offsets = [0, 48], sizes = [8, 16], strides = [1, 1]} : vector<8x64xf32> to vector<8x16xf32>
    %107 = math.tanh %106 : vector<8x16xf32>
    %108 = vector.extract_strided_slice %105 {offsets = [0, 0], sizes = [8, 16], strides = [1, 1]} : vector<8x48xf32> to vector<8x16xf32>
    %109 = vector.extract_strided_slice %105 {offsets = [0, 16], sizes = [8, 16], strides = [1, 1]} : vector<8x48xf32> to vector<8x16xf32>
    %110 = vector.extract_strided_slice %105 {offsets = [0, 32], sizes = [8, 16], strides = [1, 1]} : vector<8x48xf32> to vector<8x16xf32>
    %111 = arith.mulf %109, %71 : vector<8x16xf32>
    %112 = arith.mulf %108, %107 : vector<8x16xf32>
    %113 = arith.addf %111, %112 : vector<8x16xf32>
    %114 = math.tanh %113 : vector<8x16xf32>
    %115 = arith.mulf %110, %114 : vector<8x16xf32>
    %cst_24 = arith.constant dense<0.000000e+00> : vector<8x128xf32>
    %116 = tpu.matmul %115, %0, %cst_24 {dimension_numbers = #tpu.dot_dimension_numbers<[1], [0], [0], [1], [0, 0, 1, 1], [], []>} : vector<8x16xf32>, vector<16x128xf32>, vector<8x128xf32> -> vector<8x128xf32>
    %117 = vector.extract_strided_slice %116 {offsets = [0, 0], sizes = [8, 64], strides = [1, 1]} : vector<8x128xf32> to vector<8x64xf32>
    %cst_25 = arith.constant dense<0.000000e+00> : vector<8x64xf32>
    %118 = tpu.matmul %95, %1, %cst_25 {dimension_numbers = #tpu.dot_dimension_numbers<[1], [0], [0], [1], [0, 0, 1, 1], [], []>} : vector<8x16xf32>, vector<16x64xf32>, vector<8x64xf32> -> vector<8x64xf32>
    %119 = arith.addf %117, %118 : vector<8x64xf32>
    %120 = vector.broadcast %2 : vector<1x64xf32> to vector<8x64xf32>
    %121 = arith.addf %119, %120 : vector<8x64xf32>
    %122 = vector.extract_strided_slice %121 {offsets = [0, 0], sizes = [8, 48], strides = [1, 1]} : vector<8x64xf32> to vector<8x48xf32>
    %123 = arith.negf %122 : vector<8x48xf32>
    %124 = math.exp %123 : vector<8x48xf32>
    %cst_26 = arith.constant 1.000000e+00 : f32
    %125 = vector.broadcast %cst_26 : f32 to vector<8x48xf32>
    %126 = arith.addf %125, %124 : vector<8x48xf32>
    %127 = arith.divf %125, %126 : vector<8x48xf32>
    %128 = vector.extract_strided_slice %121 {offsets = [0, 48], sizes = [8, 16], strides = [1, 1]} : vector<8x64xf32> to vector<8x16xf32>
    %129 = math.tanh %128 : vector<8x16xf32>
    %130 = vector.extract_strided_slice %127 {offsets = [0, 0], sizes = [8, 16], strides = [1, 1]} : vector<8x48xf32> to vector<8x16xf32>
    %131 = vector.extract_strided_slice %127 {offsets = [0, 16], sizes = [8, 16], strides = [1, 1]} : vector<8x48xf32> to vector<8x16xf32>
    %132 = vector.extract_strided_slice %127 {offsets = [0, 32], sizes = [8, 16], strides = [1, 1]} : vector<8x48xf32> to vector<8x16xf32>
    %133 = arith.mulf %131, %93 : vector<8x16xf32>
    %134 = arith.mulf %130, %129 : vector<8x16xf32>
    %135 = arith.addf %133, %134 : vector<8x16xf32>
    %136 = math.tanh %135 : vector<8x16xf32>
    %137 = arith.mulf %132, %136 : vector<8x16xf32>
    %138 = vector.extract_strided_slice %116 {offsets = [0, 64], sizes = [8, 64], strides = [1, 1]} : vector<8x128xf32> to vector<8x64xf32>
    %139 = vector.extract_strided_slice %14 {offsets = [0, 3, 0], sizes = [8, 1, 64], strides = [1, 1, 1]} : vector<8x8x64xf32> to vector<8x1x64xf32>
    %140 = vector.shape_cast %139 : vector<8x1x64xf32> to vector<8x64xf32>
    %141 = arith.addf %140, %138 : vector<8x64xf32>
    %142 = vector.extract_strided_slice %141 {offsets = [0, 0], sizes = [8, 48], strides = [1, 1]} : vector<8x64xf32> to vector<8x48xf32>
    %143 = arith.negf %142 : vector<8x48xf32>
    %144 = math.exp %143 : vector<8x48xf32>
    %cst_27 = arith.constant 1.000000e+00 : f32
    %145 = vector.broadcast %cst_27 : f32 to vector<8x48xf32>
    %146 = arith.addf %145, %144 : vector<8x48xf32>
    %147 = arith.divf %145, %146 : vector<8x48xf32>
    %148 = vector.extract_strided_slice %141 {offsets = [0, 48], sizes = [8, 16], strides = [1, 1]} : vector<8x64xf32> to vector<8x16xf32>
    %149 = math.tanh %148 : vector<8x16xf32>
    %150 = vector.extract_strided_slice %147 {offsets = [0, 0], sizes = [8, 16], strides = [1, 1]} : vector<8x48xf32> to vector<8x16xf32>
    %151 = vector.extract_strided_slice %147 {offsets = [0, 16], sizes = [8, 16], strides = [1, 1]} : vector<8x48xf32> to vector<8x16xf32>
    %152 = vector.extract_strided_slice %147 {offsets = [0, 32], sizes = [8, 16], strides = [1, 1]} : vector<8x48xf32> to vector<8x16xf32>
    %153 = arith.mulf %151, %113 : vector<8x16xf32>
    %154 = arith.mulf %150, %149 : vector<8x16xf32>
    %155 = arith.addf %153, %154 : vector<8x16xf32>
    %156 = math.tanh %155 : vector<8x16xf32>
    %157 = arith.mulf %152, %156 : vector<8x16xf32>
    %cst_28 = arith.constant dense<0.000000e+00> : vector<8x128xf32>
    %158 = tpu.matmul %157, %0, %cst_28 {dimension_numbers = #tpu.dot_dimension_numbers<[1], [0], [0], [1], [0, 0, 1, 1], [], []>} : vector<8x16xf32>, vector<16x128xf32>, vector<8x128xf32> -> vector<8x128xf32>
    %159 = vector.extract_strided_slice %158 {offsets = [0, 0], sizes = [8, 64], strides = [1, 1]} : vector<8x128xf32> to vector<8x64xf32>
    %cst_29 = arith.constant dense<0.000000e+00> : vector<8x64xf32>
    %160 = tpu.matmul %137, %1, %cst_29 {dimension_numbers = #tpu.dot_dimension_numbers<[1], [0], [0], [1], [0, 0, 1, 1], [], []>} : vector<8x16xf32>, vector<16x64xf32>, vector<8x64xf32> -> vector<8x64xf32>
    %161 = arith.addf %159, %160 : vector<8x64xf32>
    %162 = vector.broadcast %2 : vector<1x64xf32> to vector<8x64xf32>
    %163 = arith.addf %161, %162 : vector<8x64xf32>
    %164 = vector.extract_strided_slice %163 {offsets = [0, 0], sizes = [8, 48], strides = [1, 1]} : vector<8x64xf32> to vector<8x48xf32>
    %165 = arith.negf %164 : vector<8x48xf32>
    %166 = math.exp %165 : vector<8x48xf32>
    %cst_30 = arith.constant 1.000000e+00 : f32
    %167 = vector.broadcast %cst_30 : f32 to vector<8x48xf32>
    %168 = arith.addf %167, %166 : vector<8x48xf32>
    %169 = arith.divf %167, %168 : vector<8x48xf32>
    %170 = vector.extract_strided_slice %163 {offsets = [0, 48], sizes = [8, 16], strides = [1, 1]} : vector<8x64xf32> to vector<8x16xf32>
    %171 = math.tanh %170 : vector<8x16xf32>
    %172 = vector.extract_strided_slice %169 {offsets = [0, 0], sizes = [8, 16], strides = [1, 1]} : vector<8x48xf32> to vector<8x16xf32>
    %173 = vector.extract_strided_slice %169 {offsets = [0, 16], sizes = [8, 16], strides = [1, 1]} : vector<8x48xf32> to vector<8x16xf32>
    %174 = vector.extract_strided_slice %169 {offsets = [0, 32], sizes = [8, 16], strides = [1, 1]} : vector<8x48xf32> to vector<8x16xf32>
    %175 = arith.mulf %173, %135 : vector<8x16xf32>
    %176 = arith.mulf %172, %171 : vector<8x16xf32>
    %177 = arith.addf %175, %176 : vector<8x16xf32>
    %178 = math.tanh %177 : vector<8x16xf32>
    %179 = arith.mulf %174, %178 : vector<8x16xf32>
    %180 = vector.extract_strided_slice %158 {offsets = [0, 64], sizes = [8, 64], strides = [1, 1]} : vector<8x128xf32> to vector<8x64xf32>
    %181 = vector.extract_strided_slice %14 {offsets = [0, 4, 0], sizes = [8, 1, 64], strides = [1, 1, 1]} : vector<8x8x64xf32> to vector<8x1x64xf32>
    %182 = vector.shape_cast %181 : vector<8x1x64xf32> to vector<8x64xf32>
    %183 = arith.addf %182, %180 : vector<8x64xf32>
    %184 = vector.extract_strided_slice %183 {offsets = [0, 0], sizes = [8, 48], strides = [1, 1]} : vector<8x64xf32> to vector<8x48xf32>
    %185 = arith.negf %184 : vector<8x48xf32>
    %186 = math.exp %185 : vector<8x48xf32>
    %cst_31 = arith.constant 1.000000e+00 : f32
    %187 = vector.broadcast %cst_31 : f32 to vector<8x48xf32>
    %188 = arith.addf %187, %186 : vector<8x48xf32>
    %189 = arith.divf %187, %188 : vector<8x48xf32>
    %190 = vector.extract_strided_slice %183 {offsets = [0, 48], sizes = [8, 16], strides = [1, 1]} : vector<8x64xf32> to vector<8x16xf32>
    %191 = math.tanh %190 : vector<8x16xf32>
    %192 = vector.extract_strided_slice %189 {offsets = [0, 0], sizes = [8, 16], strides = [1, 1]} : vector<8x48xf32> to vector<8x16xf32>
    %193 = vector.extract_strided_slice %189 {offsets = [0, 16], sizes = [8, 16], strides = [1, 1]} : vector<8x48xf32> to vector<8x16xf32>
    %194 = vector.extract_strided_slice %189 {offsets = [0, 32], sizes = [8, 16], strides = [1, 1]} : vector<8x48xf32> to vector<8x16xf32>
    %195 = arith.mulf %193, %155 : vector<8x16xf32>
    %196 = arith.mulf %192, %191 : vector<8x16xf32>
    %197 = arith.addf %195, %196 : vector<8x16xf32>
    %198 = math.tanh %197 : vector<8x16xf32>
    %199 = arith.mulf %194, %198 : vector<8x16xf32>
    %cst_32 = arith.constant dense<0.000000e+00> : vector<8x128xf32>
    %200 = tpu.matmul %199, %0, %cst_32 {dimension_numbers = #tpu.dot_dimension_numbers<[1], [0], [0], [1], [0, 0, 1, 1], [], []>} : vector<8x16xf32>, vector<16x128xf32>, vector<8x128xf32> -> vector<8x128xf32>
    %201 = vector.extract_strided_slice %200 {offsets = [0, 0], sizes = [8, 64], strides = [1, 1]} : vector<8x128xf32> to vector<8x64xf32>
    %cst_33 = arith.constant dense<0.000000e+00> : vector<8x64xf32>
    %202 = tpu.matmul %179, %1, %cst_33 {dimension_numbers = #tpu.dot_dimension_numbers<[1], [0], [0], [1], [0, 0, 1, 1], [], []>} : vector<8x16xf32>, vector<16x64xf32>, vector<8x64xf32> -> vector<8x64xf32>
    %203 = arith.addf %201, %202 : vector<8x64xf32>
    %204 = vector.broadcast %2 : vector<1x64xf32> to vector<8x64xf32>
    %205 = arith.addf %203, %204 : vector<8x64xf32>
    %206 = vector.extract_strided_slice %205 {offsets = [0, 0], sizes = [8, 48], strides = [1, 1]} : vector<8x64xf32> to vector<8x48xf32>
    %207 = arith.negf %206 : vector<8x48xf32>
    %208 = math.exp %207 : vector<8x48xf32>
    %cst_34 = arith.constant 1.000000e+00 : f32
    %209 = vector.broadcast %cst_34 : f32 to vector<8x48xf32>
    %210 = arith.addf %209, %208 : vector<8x48xf32>
    %211 = arith.divf %209, %210 : vector<8x48xf32>
    %212 = vector.extract_strided_slice %205 {offsets = [0, 48], sizes = [8, 16], strides = [1, 1]} : vector<8x64xf32> to vector<8x16xf32>
    %213 = math.tanh %212 : vector<8x16xf32>
    %214 = vector.extract_strided_slice %211 {offsets = [0, 0], sizes = [8, 16], strides = [1, 1]} : vector<8x48xf32> to vector<8x16xf32>
    %215 = vector.extract_strided_slice %211 {offsets = [0, 16], sizes = [8, 16], strides = [1, 1]} : vector<8x48xf32> to vector<8x16xf32>
    %216 = vector.extract_strided_slice %211 {offsets = [0, 32], sizes = [8, 16], strides = [1, 1]} : vector<8x48xf32> to vector<8x16xf32>
    %217 = arith.mulf %215, %177 : vector<8x16xf32>
    %218 = arith.mulf %214, %213 : vector<8x16xf32>
    %219 = arith.addf %217, %218 : vector<8x16xf32>
    %220 = math.tanh %219 : vector<8x16xf32>
    %221 = arith.mulf %216, %220 : vector<8x16xf32>
    %222 = vector.extract_strided_slice %200 {offsets = [0, 64], sizes = [8, 64], strides = [1, 1]} : vector<8x128xf32> to vector<8x64xf32>
    %223 = vector.extract_strided_slice %14 {offsets = [0, 5, 0], sizes = [8, 1, 64], strides = [1, 1, 1]} : vector<8x8x64xf32> to vector<8x1x64xf32>
    %224 = vector.shape_cast %223 : vector<8x1x64xf32> to vector<8x64xf32>
    %225 = arith.addf %224, %222 : vector<8x64xf32>
    %226 = vector.extract_strided_slice %225 {offsets = [0, 0], sizes = [8, 48], strides = [1, 1]} : vector<8x64xf32> to vector<8x48xf32>
    %227 = arith.negf %226 : vector<8x48xf32>
    %228 = math.exp %227 : vector<8x48xf32>
    %cst_35 = arith.constant 1.000000e+00 : f32
    %229 = vector.broadcast %cst_35 : f32 to vector<8x48xf32>
    %230 = arith.addf %229, %228 : vector<8x48xf32>
    %231 = arith.divf %229, %230 : vector<8x48xf32>
    %232 = vector.extract_strided_slice %225 {offsets = [0, 48], sizes = [8, 16], strides = [1, 1]} : vector<8x64xf32> to vector<8x16xf32>
    %233 = math.tanh %232 : vector<8x16xf32>
    %234 = vector.extract_strided_slice %231 {offsets = [0, 0], sizes = [8, 16], strides = [1, 1]} : vector<8x48xf32> to vector<8x16xf32>
    %235 = vector.extract_strided_slice %231 {offsets = [0, 16], sizes = [8, 16], strides = [1, 1]} : vector<8x48xf32> to vector<8x16xf32>
    %236 = vector.extract_strided_slice %231 {offsets = [0, 32], sizes = [8, 16], strides = [1, 1]} : vector<8x48xf32> to vector<8x16xf32>
    %237 = arith.mulf %235, %197 : vector<8x16xf32>
    %238 = arith.mulf %234, %233 : vector<8x16xf32>
    %239 = arith.addf %237, %238 : vector<8x16xf32>
    %240 = math.tanh %239 : vector<8x16xf32>
    %241 = arith.mulf %236, %240 : vector<8x16xf32>
    %cst_36 = arith.constant dense<0.000000e+00> : vector<8x128xf32>
    %242 = tpu.matmul %241, %0, %cst_36 {dimension_numbers = #tpu.dot_dimension_numbers<[1], [0], [0], [1], [0, 0, 1, 1], [], []>} : vector<8x16xf32>, vector<16x128xf32>, vector<8x128xf32> -> vector<8x128xf32>
    %243 = vector.extract_strided_slice %242 {offsets = [0, 0], sizes = [8, 64], strides = [1, 1]} : vector<8x128xf32> to vector<8x64xf32>
    %cst_37 = arith.constant dense<0.000000e+00> : vector<8x64xf32>
    %244 = tpu.matmul %221, %1, %cst_37 {dimension_numbers = #tpu.dot_dimension_numbers<[1], [0], [0], [1], [0, 0, 1, 1], [], []>} : vector<8x16xf32>, vector<16x64xf32>, vector<8x64xf32> -> vector<8x64xf32>
    %245 = arith.addf %243, %244 : vector<8x64xf32>
    %246 = vector.broadcast %2 : vector<1x64xf32> to vector<8x64xf32>
    %247 = arith.addf %245, %246 : vector<8x64xf32>
    %248 = vector.extract_strided_slice %247 {offsets = [0, 0], sizes = [8, 48], strides = [1, 1]} : vector<8x64xf32> to vector<8x48xf32>
    %249 = arith.negf %248 : vector<8x48xf32>
    %250 = math.exp %249 : vector<8x48xf32>
    %cst_38 = arith.constant 1.000000e+00 : f32
    %251 = vector.broadcast %cst_38 : f32 to vector<8x48xf32>
    %252 = arith.addf %251, %250 : vector<8x48xf32>
    %253 = arith.divf %251, %252 : vector<8x48xf32>
    %254 = vector.extract_strided_slice %247 {offsets = [0, 48], sizes = [8, 16], strides = [1, 1]} : vector<8x64xf32> to vector<8x16xf32>
    %255 = math.tanh %254 : vector<8x16xf32>
    %256 = vector.extract_strided_slice %253 {offsets = [0, 0], sizes = [8, 16], strides = [1, 1]} : vector<8x48xf32> to vector<8x16xf32>
    %257 = vector.extract_strided_slice %253 {offsets = [0, 16], sizes = [8, 16], strides = [1, 1]} : vector<8x48xf32> to vector<8x16xf32>
    %258 = vector.extract_strided_slice %253 {offsets = [0, 32], sizes = [8, 16], strides = [1, 1]} : vector<8x48xf32> to vector<8x16xf32>
    %259 = arith.mulf %257, %219 : vector<8x16xf32>
    %260 = arith.mulf %256, %255 : vector<8x16xf32>
    %261 = arith.addf %259, %260 : vector<8x16xf32>
    %262 = math.tanh %261 : vector<8x16xf32>
    %263 = arith.mulf %258, %262 : vector<8x16xf32>
    %264 = vector.extract_strided_slice %242 {offsets = [0, 64], sizes = [8, 64], strides = [1, 1]} : vector<8x128xf32> to vector<8x64xf32>
    %265 = vector.extract_strided_slice %14 {offsets = [0, 6, 0], sizes = [8, 1, 64], strides = [1, 1, 1]} : vector<8x8x64xf32> to vector<8x1x64xf32>
    %266 = vector.shape_cast %265 : vector<8x1x64xf32> to vector<8x64xf32>
    %267 = arith.addf %266, %264 : vector<8x64xf32>
    %268 = vector.extract_strided_slice %267 {offsets = [0, 0], sizes = [8, 48], strides = [1, 1]} : vector<8x64xf32> to vector<8x48xf32>
    %269 = arith.negf %268 : vector<8x48xf32>
    %270 = math.exp %269 : vector<8x48xf32>
    %cst_39 = arith.constant 1.000000e+00 : f32
    %271 = vector.broadcast %cst_39 : f32 to vector<8x48xf32>
    %272 = arith.addf %271, %270 : vector<8x48xf32>
    %273 = arith.divf %271, %272 : vector<8x48xf32>
    %274 = vector.extract_strided_slice %267 {offsets = [0, 48], sizes = [8, 16], strides = [1, 1]} : vector<8x64xf32> to vector<8x16xf32>
    %275 = math.tanh %274 : vector<8x16xf32>
    %276 = vector.extract_strided_slice %273 {offsets = [0, 0], sizes = [8, 16], strides = [1, 1]} : vector<8x48xf32> to vector<8x16xf32>
    %277 = vector.extract_strided_slice %273 {offsets = [0, 16], sizes = [8, 16], strides = [1, 1]} : vector<8x48xf32> to vector<8x16xf32>
    %278 = vector.extract_strided_slice %273 {offsets = [0, 32], sizes = [8, 16], strides = [1, 1]} : vector<8x48xf32> to vector<8x16xf32>
    %279 = arith.mulf %277, %239 : vector<8x16xf32>
    %280 = arith.mulf %276, %275 : vector<8x16xf32>
    %281 = arith.addf %279, %280 : vector<8x16xf32>
    %282 = math.tanh %281 : vector<8x16xf32>
    %283 = arith.mulf %278, %282 : vector<8x16xf32>
    %cst_40 = arith.constant dense<0.000000e+00> : vector<8x128xf32>
    %284 = tpu.matmul %283, %0, %cst_40 {dimension_numbers = #tpu.dot_dimension_numbers<[1], [0], [0], [1], [0, 0, 1, 1], [], []>} : vector<8x16xf32>, vector<16x128xf32>, vector<8x128xf32> -> vector<8x128xf32>
    %285 = vector.extract_strided_slice %284 {offsets = [0, 0], sizes = [8, 64], strides = [1, 1]} : vector<8x128xf32> to vector<8x64xf32>
    %cst_41 = arith.constant dense<0.000000e+00> : vector<8x64xf32>
    %286 = tpu.matmul %263, %1, %cst_41 {dimension_numbers = #tpu.dot_dimension_numbers<[1], [0], [0], [1], [0, 0, 1, 1], [], []>} : vector<8x16xf32>, vector<16x64xf32>, vector<8x64xf32> -> vector<8x64xf32>
    %287 = arith.addf %285, %286 : vector<8x64xf32>
    %288 = vector.broadcast %2 : vector<1x64xf32> to vector<8x64xf32>
    %289 = arith.addf %287, %288 : vector<8x64xf32>
    %290 = vector.extract_strided_slice %289 {offsets = [0, 0], sizes = [8, 48], strides = [1, 1]} : vector<8x64xf32> to vector<8x48xf32>
    %291 = arith.negf %290 : vector<8x48xf32>
    %292 = math.exp %291 : vector<8x48xf32>
    %cst_42 = arith.constant 1.000000e+00 : f32
    %293 = vector.broadcast %cst_42 : f32 to vector<8x48xf32>
    %294 = arith.addf %293, %292 : vector<8x48xf32>
    %295 = arith.divf %293, %294 : vector<8x48xf32>
    %296 = vector.extract_strided_slice %289 {offsets = [0, 48], sizes = [8, 16], strides = [1, 1]} : vector<8x64xf32> to vector<8x16xf32>
    %297 = math.tanh %296 : vector<8x16xf32>
    %298 = vector.extract_strided_slice %295 {offsets = [0, 0], sizes = [8, 16], strides = [1, 1]} : vector<8x48xf32> to vector<8x16xf32>
    %299 = vector.extract_strided_slice %295 {offsets = [0, 16], sizes = [8, 16], strides = [1, 1]} : vector<8x48xf32> to vector<8x16xf32>
    %300 = vector.extract_strided_slice %295 {offsets = [0, 32], sizes = [8, 16], strides = [1, 1]} : vector<8x48xf32> to vector<8x16xf32>
    %301 = arith.mulf %299, %261 : vector<8x16xf32>
    %302 = arith.mulf %298, %297 : vector<8x16xf32>
    %303 = arith.addf %301, %302 : vector<8x16xf32>
    %304 = math.tanh %303 : vector<8x16xf32>
    %305 = arith.mulf %300, %304 : vector<8x16xf32>
    %306 = vector.extract_strided_slice %284 {offsets = [0, 64], sizes = [8, 64], strides = [1, 1]} : vector<8x128xf32> to vector<8x64xf32>
    %307 = vector.extract_strided_slice %14 {offsets = [0, 7, 0], sizes = [8, 1, 64], strides = [1, 1, 1]} : vector<8x8x64xf32> to vector<8x1x64xf32>
    %308 = vector.shape_cast %307 : vector<8x1x64xf32> to vector<8x64xf32>
    %309 = arith.addf %308, %306 : vector<8x64xf32>
    %310 = vector.extract_strided_slice %309 {offsets = [0, 0], sizes = [8, 48], strides = [1, 1]} : vector<8x64xf32> to vector<8x48xf32>
    %311 = arith.negf %310 : vector<8x48xf32>
    %312 = math.exp %311 : vector<8x48xf32>
    %cst_43 = arith.constant 1.000000e+00 : f32
    %313 = vector.broadcast %cst_43 : f32 to vector<8x48xf32>
    %314 = arith.addf %313, %312 : vector<8x48xf32>
    %315 = arith.divf %313, %314 : vector<8x48xf32>
    %316 = vector.extract_strided_slice %309 {offsets = [0, 48], sizes = [8, 16], strides = [1, 1]} : vector<8x64xf32> to vector<8x16xf32>
    %317 = math.tanh %316 : vector<8x16xf32>
    %318 = vector.extract_strided_slice %315 {offsets = [0, 0], sizes = [8, 16], strides = [1, 1]} : vector<8x48xf32> to vector<8x16xf32>
    %319 = vector.extract_strided_slice %315 {offsets = [0, 16], sizes = [8, 16], strides = [1, 1]} : vector<8x48xf32> to vector<8x16xf32>
    %320 = vector.extract_strided_slice %315 {offsets = [0, 32], sizes = [8, 16], strides = [1, 1]} : vector<8x48xf32> to vector<8x16xf32>
    %321 = arith.mulf %319, %281 : vector<8x16xf32>
    %322 = arith.mulf %318, %317 : vector<8x16xf32>
    %323 = arith.addf %321, %322 : vector<8x16xf32>
    %324 = math.tanh %323 : vector<8x16xf32>
    %325 = arith.mulf %320, %324 : vector<8x16xf32>
    %cst_44 = arith.constant dense<0.000000e+00> : vector<8x128xf32>
    %326 = tpu.matmul %325, %0, %cst_44 {dimension_numbers = #tpu.dot_dimension_numbers<[1], [0], [0], [1], [0, 0, 1, 1], [], []>} : vector<8x16xf32>, vector<16x128xf32>, vector<8x128xf32> -> vector<8x128xf32>
    %327 = vector.extract_strided_slice %326 {offsets = [0, 0], sizes = [8, 64], strides = [1, 1]} : vector<8x128xf32> to vector<8x64xf32>
    %cst_45 = arith.constant dense<0.000000e+00> : vector<8x64xf32>
    %328 = tpu.matmul %305, %1, %cst_45 {dimension_numbers = #tpu.dot_dimension_numbers<[1], [0], [0], [1], [0, 0, 1, 1], [], []>} : vector<8x16xf32>, vector<16x64xf32>, vector<8x64xf32> -> vector<8x64xf32>
    %329 = arith.addf %327, %328 : vector<8x64xf32>
    %330 = vector.broadcast %2 : vector<1x64xf32> to vector<8x64xf32>
    %331 = arith.addf %329, %330 : vector<8x64xf32>
    %332 = vector.extract_strided_slice %331 {offsets = [0, 0], sizes = [8, 48], strides = [1, 1]} : vector<8x64xf32> to vector<8x48xf32>
    %333 = arith.negf %332 : vector<8x48xf32>
    %334 = math.exp %333 : vector<8x48xf32>
    %cst_46 = arith.constant 1.000000e+00 : f32
    %335 = vector.broadcast %cst_46 : f32 to vector<8x48xf32>
    %336 = arith.addf %335, %334 : vector<8x48xf32>
    %337 = arith.divf %335, %336 : vector<8x48xf32>
    %338 = vector.extract_strided_slice %331 {offsets = [0, 48], sizes = [8, 16], strides = [1, 1]} : vector<8x64xf32> to vector<8x16xf32>
    %339 = math.tanh %338 : vector<8x16xf32>
    %340 = vector.extract_strided_slice %337 {offsets = [0, 0], sizes = [8, 16], strides = [1, 1]} : vector<8x48xf32> to vector<8x16xf32>
    %341 = vector.extract_strided_slice %337 {offsets = [0, 16], sizes = [8, 16], strides = [1, 1]} : vector<8x48xf32> to vector<8x16xf32>
    %342 = vector.extract_strided_slice %337 {offsets = [0, 32], sizes = [8, 16], strides = [1, 1]} : vector<8x48xf32> to vector<8x16xf32>
    %343 = arith.mulf %341, %303 : vector<8x16xf32>
    %344 = arith.mulf %340, %339 : vector<8x16xf32>
    %345 = arith.addf %343, %344 : vector<8x16xf32>
    %346 = math.tanh %345 : vector<8x16xf32>
    %347 = arith.mulf %342, %346 : vector<8x16xf32>
    %cst_47 = arith.constant dense<0.000000e+00> : vector<8x1xf32>
    %348 = tpu.matmul %347, %3, %cst_47 {dimension_numbers = #tpu.dot_dimension_numbers<[1], [0], [0], [1], [0, 0, 1, 1], [], []>} : vector<8x16xf32>, vector<16x1xf32>, vector<8x1xf32> -> vector<8x1xf32>
    %349 = vector.broadcast %4 : vector<1x1xf32> to vector<8x1xf32>
    %350 = arith.addf %348, %349 : vector<8x1xf32>
    %c0_48 = arith.constant 0 : index
    %c0_49 = arith.constant 0 : index
    %351 = vector.load %arg9[%c0_48, %c0_49] : memref<8x1xf32, #tpu.memory_space<vmem>>, vector<8x1xf32>
    tpu.vector_store %arg9[%c0_48, %c0_49], %350 {strides = array<i32>} : memref<8x1xf32, #tpu.memory_space<vmem>>, vector<8x1xf32>,
    return
  }
  func.func @transform_0(%arg0: i32) -> (i32, i32, i32) {
    %c0_i32 = arith.constant 0 : i32
    %c0_i32_0 = arith.constant 0 : i32
    %c0_i32_1 = arith.constant 0 : i32
    return %arg0, %c0_i32, %c0_i32_0 : i32, i32, i32
  }
  func.func @transform_1(%arg0: i32) -> (i32, i32) {
    %c0_i32 = arith.constant 0 : i32
    %c0_i32_0 = arith.constant 0 : i32
    %c0_i32_1 = arith.constant 0 : i32
    return %c0_i32, %c0_i32_0 : i32, i32
  }
  func.func @transform_2(%arg0: i32) -> (i32, i32) {
    %c0_i32 = arith.constant 0 : i32
    %c0_i32_0 = arith.constant 0 : i32
    %c0_i32_1 = arith.constant 0 : i32
    return %c0_i32, %c0_i32_0 : i32, i32
  }
  func.func @transform_3(%arg0: i32) -> (i32, i32) {
    %c0_i32 = arith.constant 0 : i32
    %c0_i32_0 = arith.constant 0 : i32
    %c0_i32_1 = arith.constant 0 : i32
    return %c0_i32, %c0_i32_0 : i32, i32
  }
  func.func @transform_4(%arg0: i32) -> (i32, i32) {
    %c0_i32 = arith.constant 0 : i32
    %c0_i32_0 = arith.constant 0 : i32
    %c0_i32_1 = arith.constant 0 : i32
    return %c0_i32, %c0_i32_0 : i32, i32
  }
  func.func @transform_5(%arg0: i32) -> (i32, i32) {
    %c0_i32 = arith.constant 0 : i32
    %c0_i32_0 = arith.constant 0 : i32
    %c0_i32_1 = arith.constant 0 : i32
    return %c0_i32, %c0_i32_0 : i32, i32
  }
  func.func @transform_6(%arg0: i32) -> (i32, i32) {
    %c0_i32 = arith.constant 0 : i32
    %c0_i32_0 = arith.constant 0 : i32
    %c0_i32_1 = arith.constant 0 : i32
    return %c0_i32, %c0_i32_0 : i32, i32
  }
  func.func @transform_7(%arg0: i32) -> (i32, i32) {
    %c0_i32 = arith.constant 0 : i32
    %c0_i32_0 = arith.constant 0 : i32
    %c0_i32_1 = arith.constant 0 : i32
    return %c0_i32, %c0_i32_0 : i32, i32
  }
  func.func @transform_8(%arg0: i32) -> (i32, i32) {
    %c0_i32 = arith.constant 0 : i32
    %c0_i32_0 = arith.constant 0 : i32
    return %arg0, %c0_i32 : i32, i32
  }
}

</mosaic_0001>

<llo_original>
// kernel: lstm_forward.1
$region0: #{lstm_forward.1}
  #allocation0 [shape = 'u32[]', space=smem, size = 0x4, offset = 0x4, fixed_abs, tag = 'smem constant byte address 0x4 - core index']
  #allocation1 [shape = 'u32[144,128]{1,0:T(1,128)}', space=vmem, size = 0x12000, scoped, tag = 'internal scratch']
  #allocation2 [shape = 'f32[1,1]{1,0:T(1,128)S(1)}', space=vmem, size = 0x200, scoped, tag = 'scoped memory for lstm_forward.1']
  %s0 = inlined_call_operand.vmem [shape: f32[8,8,1], index: 0, kind: input, shape index: {}]
  %s1 = inlined_call_operand.vmem [shape: f32[1,64], index: 1, kind: input, shape index: {}]
  %s2 = inlined_call_operand.vmem [shape: f32[16,128], index: 2, kind: input, shape index: {}]
  %s3 = inlined_call_operand.vmem [shape: f32[1,64], index: 3, kind: input, shape index: {}]
  %s4 = inlined_call_operand.vmem [shape: f32[16,64], index: 4, kind: input, shape index: {}]
  %s5 = inlined_call_operand.vmem [shape: f32[1,64], index: 5, kind: input, shape index: {}]
  %s6 = inlined_call_operand.vmem [shape: f32[16,1], index: 6, kind: input, shape index: {}]
  %s7 = inlined_call_operand.<no memory space> [shape: f32[1,1], index: 7, kind: input, shape index: {}]
  %s8 = inlined_call_operand.vmem [shape: f32[8,1], index: 8, kind: output, shape index: {}]
  %s9 = sld [smem:[#allocation0]]
  $region42: #{lstm_forward.1} parent=0
    _
  %s11 = ssub.s32 1, %s9
  %s12 = scalar_select 0, %s11, %s9
  %v13 = vstv %s7
  %14 = vst [vmem:[#allocation2] sm:$0x1] %v13
  // Predicated region
  $region2: #{lstm_forward.1} parent=0 // pred_check
    _
  $region3: #{lstm_forward.1} parent=0 // pred_check_branch
    %16 = sbr.rel (0) target = $region5
  $region4: #{lstm_forward.1} parent=0 // pred_region
    _
  $region5: #{lstm_forward.1} parent=0 // pred_fallthru
    _
  // Predicated region
  $region6: #{lstm_forward.1} parent=0 // pred_check
    _
  $region7: #{lstm_forward.1} parent=0 // pred_check_branch
    %18 = sbr.rel (0) target = $region9
  $region8: #{lstm_forward.1} parent=0 // pred_region
    _
  $region9: #{lstm_forward.1} parent=0 // pred_fallthru
    _
  // Predicated region
  $region10: #{lstm_forward.1} parent=0 // pred_check
    _
  $region11: #{lstm_forward.1} parent=0 // pred_check_branch
    %20 = sbr.rel (0) target = $region13
  $region12: #{lstm_forward.1} parent=0 // pred_region
    _
  $region13: #{lstm_forward.1} parent=0 // pred_fallthru
    _
  // Predicated region
  $region14: #{lstm_forward.1} parent=0 // pred_check
    _
  $region15: #{lstm_forward.1} parent=0 // pred_check_branch
    %22 = sbr.rel (0) target = $region17
  $region16: #{lstm_forward.1} parent=0 // pred_region
    _
  $region17: #{lstm_forward.1} parent=0 // pred_fallthru
    _
  // Predicated region
  $region18: #{lstm_forward.1} parent=0 // pred_check
    _
  $region19: #{lstm_forward.1} parent=0 // pred_check_branch
    %24 = sbr.rel (0) target = $region21
  $region20: #{lstm_forward.1} parent=0 // pred_region
    _
  $region21: #{lstm_forward.1} parent=0 // pred_fallthru
    _
  // Predicated region
  $region22: #{lstm_forward.1} parent=0 // pred_check
    _
  $region23: #{lstm_forward.1} parent=0 // pred_check_branch
    %26 = sbr.rel (0) target = $region25
  $region24: #{lstm_forward.1} parent=0 // pred_region
    _
  $region25: #{lstm_forward.1} parent=0 // pred_fallthru
    _
  // Predicated region
  $region26: #{lstm_forward.1} parent=0 // pred_check
    _
  $region27: #{lstm_forward.1} parent=0 // pred_check_branch
    %28 = sbr.rel (0) target = $region29
  $region28: #{lstm_forward.1} parent=0 // pred_region
    _
  $region29: #{lstm_forward.1} parent=0 // pred_fallthru
    _
  // Predicated region
  $region30: #{lstm_forward.1} parent=0 // pred_check
    _
  $region31: #{lstm_forward.1} parent=0 // pred_check_branch
    %30 = sbr.rel (0) target = $region33
  $region32: #{lstm_forward.1} parent=0 // pred_region
    _
  $region33: #{lstm_forward.1} parent=0 // pred_fallthru
    _
  %v31 = vld [vmem:[%s2] sm:$0xff]
  %v32 = vld [vmem:[%s2 + $0x8] sm:$0xff]
  %v33 = vld [vmem:[%s4] sm:$0xff]
  %v34 = vld [vmem:[%s4 + $0x8] sm:$0xff]
  %v35 = vld [vmem:[%s5] sm:$0x1]
  %v36 = vld [vmem:[%s6] sm:$0xff]
  %v37 = vld [vmem:[%s6 + $0x8] sm:$0xff]
  %v38 = vld [vmem:[#allocation2] sm:$0x1]
  %v39 = vld [vmem:[%s0] sm:$0xff]
  %v40 = vld [vmem:[%s0 + $0x8] sm:$0xff]
  %v41 = vld [vmem:[%s0 + $0x10] sm:$0xff]
  %v42 = vld [vmem:[%s0 + $0x18] sm:$0xff]
  %v43 = vld [vmem:[%s0 + $0x20] sm:$0xff]
  %v44 = vld [vmem:[%s0 + $0x28] sm:$0xff]
  %v45 = vld [vmem:[%s0 + $0x30] sm:$0xff]
  %v46 = vld [vmem:[%s0 + $0x38] sm:$0xff]
  %v47 = vld [vmem:[%s1] sm:$0x1]
  %49 = vset.pattern.permute.xlu0 0
  %50 = vperm.xlu0 %49, %v39
  %v51 = vpop.permute.xlu0 %50
  %54 = vset.pattern.permute.xlu0 0
  %55 = vperm.xlu0 %54, %v40
  %v56 = vpop.permute.xlu0 %55
  %59 = vset.pattern.permute.xlu0 0
  %60 = vperm.xlu0 %59, %v41
  %v61 = vpop.permute.xlu0 %60
  %64 = vset.pattern.permute.xlu0 0
  %65 = vperm.xlu0 %64, %v42
  %v66 = vpop.permute.xlu0 %65
  %69 = vset.pattern.permute.xlu0 0
  %70 = vperm.xlu0 %69, %v43
  %v71 = vpop.permute.xlu0 %70
  %74 = vset.pattern.permute.xlu0 0
  %75 = vperm.xlu0 %74, %v44
  %v76 = vpop.permute.xlu0 %75
  %79 = vset.pattern.permute.xlu0 0
  %80 = vperm.xlu0 %79, %v45
  %v81 = vpop.permute.xlu0 %80
  %84 = vset.pattern.permute.xlu0 0
  %85 = vperm.xlu0 %84, %v46
  %v86 = vpop.permute.xlu0 %85
  %v89 = vlaneseq
  %v90 = vshrl.u32 %v89, 7
  %v91 = vsub.s32 0, %v90
  %v92 = vrot.slane %v47, %v91
  %v94 = vmul.f32 %v51, %v92
  %v95 = vmul.f32 %v56, %v92
  %v96 = vmul.f32 %v61, %v92
  %v97 = vmul.f32 %v66, %v92
  %v98 = vmul.f32 %v71, %v92
  %v99 = vmul.f32 %v76, %v92
  %v100 = vmul.f32 %v81, %v92
  %v101 = vmul.f32 %v86, %v92
  %v102 = vld [vmem:[%s3] sm:$0x1]
  %v104 = vlaneseq
  %v105 = vshrl.u32 %v104, 7
  %v106 = vsub.s32 0, %v105
  %v107 = vrot.slane %v102, %v106
  %v109 = vadd.f32 %v94, %v107
  %v110 = vadd.f32 %v95, %v107
  %v111 = vadd.f32 %v96, %v107
  %v112 = vadd.f32 %v97, %v107
  %v113 = vadd.f32 %v98, %v107
  %v114 = vadd.f32 %v99, %v107
  %v115 = vadd.f32 %v100, %v107
  %v116 = vadd.f32 %v101, %v107
  %v117 = vxor.u32 %v109, 2147483648
  %v118 = vxor.u32 %v110, 2147483648
  %v119 = vxor.u32 %v111, 2147483648
  %v120 = vxor.u32 %v112, 2147483648
  %v121 = vxor.u32 %v113, 2147483648
  %v122 = vxor.u32 %v114, 2147483648
  %v123 = vxor.u32 %v115, 2147483648
  %v124 = vxor.u32 %v116, 2147483648
  %v125 = vmul.f32 %v117, 1.442695
  %v126 = vpow.pop %v125
  %v127 = vmul.f32 %v118, 1.442695
  %v128 = vpow.pop %v127
  %v129 = vmul.f32 %v119, 1.442695
  %v130 = vpow.pop %v129
  %v131 = vmul.f32 %v120, 1.442695
  %v132 = vpow.pop %v131
  %v133 = vmul.f32 %v121, 1.442695
  %v134 = vpow.pop %v133
  %v135 = vmul.f32 %v122, 1.442695
  %v136 = vpow.pop %v135
  %v137 = vmul.f32 %v123, 1.442695
  %v138 = vpow.pop %v137
  %v139 = vmul.f32 %v124, 1.442695
  %v140 = vpow.pop %v139
  %v141 = vadd.f32 %v126, 1.0
  %v142 = vadd.f32 %v128, 1.0
  %v143 = vadd.f32 %v130, 1.0
  %v144 = vadd.f32 %v132, 1.0
  %v145 = vadd.f32 %v134, 1.0
  %v146 = vadd.f32 %v136, 1.0
  %v147 = vadd.f32 %v138, 1.0
  %v148 = vadd.f32 %v140, 1.0
  %v149 = vrcp.pop %v141
  %v150 = vmul.f32 1.0, %v149
  %v151 = vrcp.pop %v142
  %v152 = vmul.f32 1.0, %v151
  %v153 = vrcp.pop %v143
  %v154 = vmul.f32 1.0, %v153
  %v155 = vrcp.pop %v144
  %v156 = vmul.f32 1.0, %v155
  %v157 = vrcp.pop %v145
  %v158 = vmul.f32 1.0, %v157
  %v159 = vrcp.pop %v146
  %v160 = vmul.f32 1.0, %v159
  %v161 = vrcp.pop %v147
  %v162 = vmul.f32 1.0, %v161
  %v163 = vrcp.pop %v148
  %v164 = vmul.f32 1.0, %v163
  %v165 = vtanh.pop %v109
  %v166 = vtanh.pop %v110
  %v167 = vtanh.pop %v111
  %v168 = vtanh.pop %v112
  %v169 = vtanh.pop %v113
  %v170 = vtanh.pop %v114
  %v171 = vtanh.pop %v115
  %v172 = vtanh.pop %v116
  %v173 = vmul.f32 %v150, 0.0
  %v174 = vmul.f32 %v152, 0.0
  %v175 = vmul.f32 %v154, 0.0
  %v176 = vmul.f32 %v156, 0.0
  %v177 = vmul.f32 %v158, 0.0
  %v178 = vmul.f32 %v160, 0.0
  %v179 = vmul.f32 %v162, 0.0
  %v180 = vmul.f32 %v164, 0.0
  %189 = vrot.lane.b32.xlu0 %v165, 80
  %v190 = vpop.permute.xlu0 %189
  %191 = vrot.lane.b32.xlu0 %v166, 80
  %v192 = vpop.permute.xlu0 %191
  %193 = vrot.lane.b32.xlu0 %v167, 80
  %v194 = vpop.permute.xlu0 %193
  %195 = vrot.lane.b32.xlu0 %v168, 80
  %v196 = vpop.permute.xlu0 %195
  %197 = vrot.lane.b32.xlu0 %v169, 80
  %v198 = vpop.permute.xlu0 %197
  %199 = vrot.lane.b32.xlu0 %v170, 80
  %v200 = vpop.permute.xlu0 %199
  %201 = vrot.lane.b32.xlu0 %v171, 80
  %v202 = vpop.permute.xlu0 %201
  %203 = vrot.lane.b32.xlu0 %v172, 80
  %v204 = vpop.permute.xlu0 %203
  %v213 = vmul.f32 %v150, %v190
  %v214 = vmul.f32 %v152, %v192
  %v215 = vmul.f32 %v154, %v194
  %v216 = vmul.f32 %v156, %v196
  %v217 = vmul.f32 %v158, %v198
  %v218 = vmul.f32 %v160, %v200
  %v219 = vmul.f32 %v162, %v202
  %v220 = vmul.f32 %v164, %v204
  %229 = vrot.lane.b32.xlu0 %v213, 16
  %v230 = vpop.permute.xlu0 %229
  %231 = vrot.lane.b32.xlu0 %v214, 16
  %v232 = vpop.permute.xlu0 %231
  %233 = vrot.lane.b32.xlu0 %v215, 16
  %v234 = vpop.permute.xlu0 %233
  %235 = vrot.lane.b32.xlu0 %v216, 16
  %v236 = vpop.permute.xlu0 %235
  %237 = vrot.lane.b32.xlu0 %v217, 16
  %v238 = vpop.permute.xlu0 %237
  %239 = vrot.lane.b32.xlu0 %v218, 16
  %v240 = vpop.permute.xlu0 %239
  %241 = vrot.lane.b32.xlu0 %v219, 16
  %v242 = vpop.permute.xlu0 %241
  %243 = vrot.lane.b32.xlu0 %v220, 16
  %v244 = vpop.permute.xlu0 %243
  %v253 = vadd.f32 %v173, %v230
  %v254 = vadd.f32 %v174, %v232
  %v255 = vadd.f32 %v175, %v234
  %v256 = vadd.f32 %v176, %v236
  %v257 = vadd.f32 %v177, %v238
  %v258 = vadd.f32 %v178, %v240
  %v259 = vadd.f32 %v179, %v242
  %v260 = vadd.f32 %v180, %v244
  %v261 = vtanh.pop %v253
  %v262 = vtanh.pop %v254
  %v263 = vtanh.pop %v255
  %v264 = vtanh.pop %v256
  %v265 = vtanh.pop %v257
  %v266 = vtanh.pop %v258
  %v267 = vtanh.pop %v259
  %v268 = vtanh.pop %v260
  %277 = vrot.lane.b32.xlu0 %v261, 16
  %v278 = vpop.permute.xlu0 %277
  %279 = vrot.lane.b32.xlu0 %v262, 16
  %v280 = vpop.permute.xlu0 %279
  %281 = vrot.lane.b32.xlu0 %v263, 16
  %v282 = vpop.permute.xlu0 %281
  %283 = vrot.lane.b32.xlu0 %v264, 16
  %v284 = vpop.permute.xlu0 %283
  %285 = vrot.lane.b32.xlu0 %v265, 16
  %v286 = vpop.permute.xlu0 %285
  %287 = vrot.lane.b32.xlu0 %v266, 16
  %v288 = vpop.permute.xlu0 %287
  %289 = vrot.lane.b32.xlu0 %v267, 16
  %v290 = vpop.permute.xlu0 %289
  %291 = vrot.lane.b32.xlu0 %v268, 16
  %v292 = vpop.permute.xlu0 %291
  %v301 = vmul.f32 %v150, %v278
  %v302 = vmul.f32 %v152, %v280
  %v303 = vmul.f32 %v154, %v282
  %v304 = vmul.f32 %v156, %v284
  %v305 = vmul.f32 %v158, %v286
  %v306 = vmul.f32 %v160, %v288
  %v307 = vmul.f32 %v162, %v290
  %v308 = vmul.f32 %v164, %v292
  %v317 = vrot.slane %v302, 7
  %vm318 = vcmask 1041409
  %v319 = vsel %vm318, %v317, %v301
  %v320 = vrot.slane %v303, 6
  %vm321 = vcmask 1042434
  %v322 = vsel %vm321, %v320, %v319
  %v323 = vrot.slane %v304, 5
  %vm324 = vcmask 1043459
  %v325 = vsel %vm324, %v323, %v322
  %v326 = vrot.slane %v305, 4
  %vm327 = vcmask 1044484
  %v328 = vsel %vm327, %v326, %v325
  %v329 = vrot.slane %v306, 3
  %vm330 = vcmask 1045509
  %v331 = vsel %vm330, %v329, %v328
  %v332 = vrot.slane %v307, 2
  %vm333 = vcmask 1046534
  %v334 = vsel %vm333, %v332, %v331
  %v335 = vrot.slane %v308, 1
  %vm336 = vcmask 1047559
  %v337 = vsel %vm336, %v335, %v334
  %338 = vrot.lane.b32.xlu0 %v337, 96
  %v339 = vpop.permute.xlu0 %338
  %vm340 = vcmask 130048
  %v341 = vsel %vm340, %v339, 0
  %343 = vmatprep.subr.mxu0 0.0
  %344 = vmatpush1.msra.mxu0 0.0
  %345 = vmatprep.subr.mxu0 0.0
  %346 = vmatpush1.msra.mxu0 0.0
  %347 = vmatprep.subr.mxu0 0.0
  %348 = vmatpush1.msra.mxu0 0.0
  %349 = vmatprep.subr.mxu0 0.0
  %350 = vmatpush1.msra.mxu0 0.0
  %351 = vmatprep.subr.mxu0 0.0
  %352 = vmatpush1.msra.mxu0 0.0
  %353 = vmatprep.subr.mxu0 0.0
  %354 = vmatpush1.msra.mxu0 0.0
  %355 = vmatprep.subr.mxu0 0.0
  %356 = vmatpush1.msra.mxu0 0.0
  %357 = vmatprep.subr.mxu0 0.0
  %358 = vmatpush1.msra.mxu0 0.0
  %359 = vmatprep.subr.mxu0 0.0
  %360 = vmatpush1.msra.mxu0 0.0
  %361 = vmatprep.subr.mxu0 0.0
  %362 = vmatpush1.msra.mxu0 0.0
  %363 = vmatprep.subr.mxu0 0.0
  %364 = vmatpush1.msra.mxu0 0.0
  %365 = vmatprep.subr.mxu0 0.0
  %366 = vmatpush1.msra.mxu0 0.0
  %367 = vmatprep.subr.mxu0 0.0
  %368 = vmatpush1.msra.mxu0 0.0
  %369 = vmatprep.subr.mxu0 0.0
  %370 = vmatpush1.msra.mxu0 0.0
  %371 = vmatprep.subr.mxu0 0.0
  %372 = vmatpush1.msra.mxu0 %v32
  %373 = vmatprep.subr.mxu0 0.0
  %374 = vmatpush1.msra.mxu0 %v31
  %375 = vmatprep.subr.mxu0 0.0
  %376 = vmatpush2.msra.mxu0 0.0
  %377 = vmatprep.subr.mxu0 0.0
  %378 = vmatpush2.msra.mxu0 0.0
  %379 = vmatprep.subr.mxu0 0.0
  %380 = vmatpush2.msra.mxu0 0.0
  %381 = vmatprep.subr.mxu0 0.0
  %382 = vmatpush2.msra.mxu0 0.0
  %383 = vmatprep.subr.mxu0 0.0
  %384 = vmatpush2.msra.mxu0 0.0
  %385 = vmatprep.subr.mxu0 0.0
  %386 = vmatpush2.msra.mxu0 0.0
  %387 = vmatprep.subr.mxu0 0.0
  %388 = vmatpush2.msra.mxu0 0.0
  %389 = vmatprep.subr.mxu0 0.0
  %390 = vmatpush2.msra.mxu0 0.0
  %391 = vmatprep.subr.mxu0 0.0
  %392 = vmatpush2.msra.mxu0 0.0
  %393 = vmatprep.subr.mxu0 0.0
  %394 = vmatpush2.msra.mxu0 0.0
  %395 = vmatprep.subr.mxu0 0.0
  %396 = vmatpush2.msra.mxu0 0.0
  %397 = vmatprep.subr.mxu0 0.0
  %398 = vmatpush2.msra.mxu0 0.0
  %399 = vmatprep.subr.mxu0 0.0
  %400 = vmatpush2.msra.mxu0 0.0
  %401 = vmatprep.subr.mxu0 0.0
  %402 = vmatpush2.msra.mxu0 0.0
  %403 = vmatprep.subr.mxu0 0.0
  %404 = vmatpush2.msra.mxu0 0.0
  %405 = vmatprep.subr.mxu0 0.0
  %406 = vmatpush2.msra.mxu0 0.0
  %407 = vmatprep.mubr.f32.mxu0 0.0
  %408 = vmatmul.mubr.f32.gmra.mxu0 %v341
  %v409 = vpop.f32.mrf.mxu0
  %v410 = vadd.f32 0.0, %v409
  %v411 = vpop.f32.mrf.mxu0
  %412 = vdwg.mxu0
  %v414 = vlaneseq
  %v415 = vshrl.u32 %v414, 7
  %v416 = vsub.s32 0, %v415
  %v417 = vrot.slane %v35, %v416
  %v419 = vadd.f32 %v410, %v417
  %v420 = vxor.u32 %v419, 2147483648
  %v421 = vmul.f32 %v420, 1.442695
  %v422 = vpow.pop %v421
  %v423 = vadd.f32 %v422, 1.0
  %v424 = vrcp.pop %v423
  %v425 = vmul.f32 1.0, %v424
  %v426 = vtanh.pop %v419
  %v427 = vmul.f32 %v425, 0.0
  %429 = vrot.lane.b32.xlu0 %v426, 80
  %v430 = vpop.permute.xlu0 %429
  %v432 = vmul.f32 %v425, %v430
  %434 = vrot.lane.b32.xlu0 %v432, 16
  %v435 = vpop.permute.xlu0 %434
  %v437 = vadd.f32 %v427, %v435
  %v438 = vtanh.pop %v437
  %440 = vrot.lane.b32.xlu0 %v438, 16
  %v441 = vpop.permute.xlu0 %440
  %v443 = vmul.f32 %v425, %v441
  %v445 = vrot.slane %v410, 7
  %v446 = vrot.slane %v410, 1
  %v447 = vrot.slane %v410, 2
  %v448 = vrot.slane %v410, 3
  %v449 = vrot.slane %v410, 4
  %v450 = vrot.slane %v410, 5
  %v451 = vrot.slane %v410, 6
  %452 = vrot.lane.b32.xlu0 %v445, 64
  %v453 = vpop.permute.xlu0 %452
  %454 = vrot.lane.b32.xlu0 %v410, 64
  %v455 = vpop.permute.xlu0 %454
  %456 = vrot.lane.b32.xlu0 %v446, 64
  %v457 = vpop.permute.xlu0 %456
  %458 = vrot.lane.b32.xlu0 %v447, 64
  %v459 = vpop.permute.xlu0 %458
  %460 = vrot.lane.b32.xlu0 %v448, 64
  %v461 = vpop.permute.xlu0 %460
  %462 = vrot.lane.b32.xlu0 %v449, 64
  %v463 = vpop.permute.xlu0 %462
  %464 = vrot.lane.b32.xlu0 %v450, 64
  %v465 = vpop.permute.xlu0 %464
  %466 = vrot.lane.b32.xlu0 %v451, 64
  %v467 = vpop.permute.xlu0 %466
  %v476 = vadd.f32 %v109, %v453
  %v477 = vadd.f32 %v110, %v455
  %v478 = vadd.f32 %v111, %v457
  %v479 = vadd.f32 %v112, %v459
  %v480 = vadd.f32 %v113, %v461
  %v481 = vadd.f32 %v114, %v463
  %v482 = vadd.f32 %v115, %v465
  %v483 = vadd.f32 %v116, %v467
  %v484 = vxor.u32 %v476, 2147483648
  %v485 = vxor.u32 %v477, 2147483648
  %v486 = vxor.u32 %v478, 2147483648
  %v487 = vxor.u32 %v479, 2147483648
  %v488 = vxor.u32 %v480, 2147483648
  %v489 = vxor.u32 %v481, 2147483648
  %v490 = vxor.u32 %v482, 2147483648
  %v491 = vxor.u32 %v483, 2147483648
  %v492 = vmul.f32 %v484, 1.442695
  %v493 = vpow.pop %v492
  %v494 = vmul.f32 %v485, 1.442695
  %v495 = vpow.pop %v494
  %v496 = vmul.f32 %v486, 1.442695
  %v497 = vpow.pop %v496
  %v498 = vmul.f32 %v487, 1.442695
  %v499 = vpow.pop %v498
  %v500 = vmul.f32 %v488, 1.442695
  %v501 = vpow.pop %v500
  %v502 = vmul.f32 %v489, 1.442695
  %v503 = vpow.pop %v502
  %v504 = vmul.f32 %v490, 1.442695
  %v505 = vpow.pop %v504
  %v506 = vmul.f32 %v491, 1.442695
  %v507 = vpow.pop %v506
  %v508 = vadd.f32 %v493, 1.0
  %v509 = vadd.f32 %v495, 1.0
  %v510 = vadd.f32 %v497, 1.0
  %v511 = vadd.f32 %v499, 1.0
  %v512 = vadd.f32 %v501, 1.0
  %v513 = vadd.f32 %v503, 1.0
  %v514 = vadd.f32 %v505, 1.0
  %v515 = vadd.f32 %v507, 1.0
  %v516 = vrcp.pop %v508
  %v517 = vmul.f32 1.0, %v516
  %v518 = vrcp.pop %v509
  %v519 = vmul.f32 1.0, %v518
  %v520 = vrcp.pop %v510
  %v521 = vmul.f32 1.0, %v520
  %v522 = vrcp.pop %v511
  %v523 = vmul.f32 1.0, %v522
  %v524 = vrcp.pop %v512
  %v525 = vmul.f32 1.0, %v524
  %v526 = vrcp.pop %v513
  %v527 = vmul.f32 1.0, %v526
  %v528 = vrcp.pop %v514
  %v529 = vmul.f32 1.0, %v528
  %v530 = vrcp.pop %v515
  %v531 = vmul.f32 1.0, %v530
  %v532 = vtanh.pop %v476
  %v533 = vtanh.pop %v477
  %v534 = vtanh.pop %v478
  %v535 = vtanh.pop %v479
  %v536 = vtanh.pop %v480
  %v537 = vtanh.pop %v481
  %v538 = vtanh.pop %v482
  %v539 = vtanh.pop %v483
  %v548 = vrot.slane %v253, 7
  %v549 = vrot.slane %v254, 7
  %v550 = vrot.slane %v255, 7
  %v551 = vrot.slane %v256, 7
  %v552 = vrot.slane %v257, 7
  %v553 = vrot.slane %v258, 7
  %v554 = vrot.slane %v259, 7
  %v555 = vrot.slane %v260, 7
  %v564 = vmul.f32 %v517, %v548
  %v565 = vmul.f32 %v519, %v549
  %v566 = vmul.f32 %v521, %v550
  %v567 = vmul.f32 %v523, %v551
  %v568 = vmul.f32 %v525, %v552
  %v569 = vmul.f32 %v527, %v553
  %v570 = vmul.f32 %v529, %v554
  %v571 = vmul.f32 %v531, %v555
  %580 = vrot.lane.b32.xlu0 %v532, 80
  %v581 = vpop.permute.xlu0 %580
  %582 = vrot.lane.b32.xlu0 %v533, 80
  %v583 = vpop.permute.xlu0 %582
  %584 = vrot.lane.b32.xlu0 %v534, 80
  %v585 = vpop.permute.xlu0 %584
  %586 = vrot.lane.b32.xlu0 %v535, 80
  %v587 = vpop.permute.xlu0 %586
  %588 = vrot.lane.b32.xlu0 %v536, 80
  %v589 = vpop.permute.xlu0 %588
  %590 = vrot.lane.b32.xlu0 %v537, 80
  %v591 = vpop.permute.xlu0 %590
  %592 = vrot.lane.b32.xlu0 %v538, 80
  %v593 = vpop.permute.xlu0 %592
  %594 = vrot.lane.b32.xlu0 %v539, 80
  %v595 = vpop.permute.xlu0 %594
  %v604 = vmul.f32 %v517, %v581
  %v605 = vmul.f32 %v519, %v583
  %v606 = vmul.f32 %v521, %v585
  %v607 = vmul.f32 %v523, %v587
  %v608 = vmul.f32 %v525, %v589
  %v609 = vmul.f32 %v527, %v591
  %v610 = vmul.f32 %v529, %v593
  %v611 = vmul.f32 %v531, %v595
  %620 = vrot.lane.b32.xlu0 %v604, 16
  %v621 = vpop.permute.xlu0 %620
  %622 = vrot.lane.b32.xlu0 %v605, 16
  %v623 = vpop.permute.xlu0 %622
  %624 = vrot.lane.b32.xlu0 %v606, 16
  %v625 = vpop.permute.xlu0 %624
  %626 = vrot.lane.b32.xlu0 %v607, 16
  %v627 = vpop.permute.xlu0 %626
  %628 = vrot.lane.b32.xlu0 %v608, 16
  %v629 = vpop.permute.xlu0 %628
  %630 = vrot.lane.b32.xlu0 %v609, 16
  %v631 = vpop.permute.xlu0 %630
  %632 = vrot.lane.b32.xlu0 %v610, 16
  %v633 = vpop.permute.xlu0 %632
  %634 = vrot.lane.b32.xlu0 %v611, 16
  %v635 = vpop.permute.xlu0 %634
  %v644 = vadd.f32 %v564, %v621
  %v645 = vadd.f32 %v565, %v623
  %v646 = vadd.f32 %v566, %v625
  %v647 = vadd.f32 %v567, %v627
  %v648 = vadd.f32 %v568, %v629
  %v649 = vadd.f32 %v569, %v631
  %v650 = vadd.f32 %v570, %v633
  %v651 = vadd.f32 %v571, %v635
  %v652 = vtanh.pop %v644
  %v653 = vtanh.pop %v645
  %v654 = vtanh.pop %v646
  %v655 = vtanh.pop %v647
  %v656 = vtanh.pop %v648
  %v657 = vtanh.pop %v649
  %v658 = vtanh.pop %v650
  %v659 = vtanh.pop %v651
  %668 = vrot.lane.b32.xlu0 %v652, 16
  %v669 = vpop.permute.xlu0 %668
  %670 = vrot.lane.b32.xlu0 %v653, 16
  %v671 = vpop.permute.xlu0 %670
  %672 = vrot.lane.b32.xlu0 %v654, 16
  %v673 = vpop.permute.xlu0 %672
  %674 = vrot.lane.b32.xlu0 %v655, 16
  %v675 = vpop.permute.xlu0 %674
  %676 = vrot.lane.b32.xlu0 %v656, 16
  %v677 = vpop.permute.xlu0 %676
  %678 = vrot.lane.b32.xlu0 %v657, 16
  %v679 = vpop.permute.xlu0 %678
  %680 = vrot.lane.b32.xlu0 %v658, 16
  %v681 = vpop.permute.xlu0 %680
  %682 = vrot.lane.b32.xlu0 %v659, 16
  %v683 = vpop.permute.xlu0 %682
  %v692 = vmul.f32 %v517, %v669
  %v693 = vmul.f32 %v519, %v671
  %v694 = vmul.f32 %v521, %v673
  %v695 = vmul.f32 %v523, %v675
  %v696 = vmul.f32 %v525, %v677
  %v697 = vmul.f32 %v527, %v679
  %v698 = vmul.f32 %v529, %v681
  %v699 = vmul.f32 %v531, %v683
  %v708 = vrot.slane %v692, 1
  %v709 = vsel %vm318, %v693, %v708
  %v710 = vrot.slane %v694, 7
  %v711 = vsel %vm321, %v710, %v709
  %v712 = vrot.slane %v695, 6
  %v713 = vsel %vm324, %v712, %v711
  %v714 = vrot.slane %v696, 5
  %v715 = vsel %vm327, %v714, %v713
  %v716 = vrot.slane %v697, 4
  %v717 = vsel %vm330, %v716, %v715
  %v718 = vrot.slane %v698, 3
  %v719 = vsel %vm333, %v718, %v717
  %v720 = vrot.slane %v699, 2
  %v721 = vsel %vm336, %v720, %v719
  %722 = vrot.lane.b32.xlu0 %v721, 96
  %v723 = vpop.permute.xlu0 %722
  %v724 = vsel %vm340, %v723, 0
  %726 = vmatprep.subr.mxu0 0.0
  %727 = vmatpush1.msra.mxu0 0.0
  %728 = vmatprep.subr.mxu0 0.0
  %729 = vmatpush1.msra.mxu0 0.0
  %730 = vmatprep.subr.mxu0 0.0
  %731 = vmatpush1.msra.mxu0 0.0
  %732 = vmatprep.subr.mxu0 0.0
  %733 = vmatpush1.msra.mxu0 0.0
  %734 = vmatprep.subr.mxu0 0.0
  %735 = vmatpush1.msra.mxu0 0.0
  %736 = vmatprep.subr.mxu0 0.0
  %737 = vmatpush1.msra.mxu0 0.0
  %738 = vmatprep.subr.mxu0 0.0
  %739 = vmatpush1.msra.mxu0 0.0
  %740 = vmatprep.subr.mxu0 0.0
  %741 = vmatpush1.msra.mxu0 0.0
  %742 = vmatprep.subr.mxu0 0.0
  %743 = vmatpush1.msra.mxu0 0.0
  %744 = vmatprep.subr.mxu0 0.0
  %745 = vmatpush1.msra.mxu0 0.0
  %746 = vmatprep.subr.mxu0 0.0
  %747 = vmatpush1.msra.mxu0 0.0
  %748 = vmatprep.subr.mxu0 0.0
  %749 = vmatpush1.msra.mxu0 0.0
  %750 = vmatprep.subr.mxu0 0.0
  %751 = vmatpush1.msra.mxu0 0.0
  %752 = vmatprep.subr.mxu0 0.0
  %753 = vmatpush1.msra.mxu0 0.0
  %754 = vmatprep.subr.mxu0 0.0
  %755 = vmatpush1.msra.mxu0 %v32
  %756 = vmatprep.subr.mxu0 0.0
  %757 = vmatpush1.msra.mxu0 %v31
  %758 = vmatprep.subr.mxu0 0.0
  %759 = vmatpush2.msra.mxu0 0.0
  %760 = vmatprep.subr.mxu0 0.0
  %761 = vmatpush2.msra.mxu0 0.0
  %762 = vmatprep.subr.mxu0 0.0
  %763 = vmatpush2.msra.mxu0 0.0
  %764 = vmatprep.subr.mxu0 0.0
  %765 = vmatpush2.msra.mxu0 0.0
  %766 = vmatprep.subr.mxu0 0.0
  %767 = vmatpush2.msra.mxu0 0.0
  %768 = vmatprep.subr.mxu0 0.0
  %769 = vmatpush2.msra.mxu0 0.0
  %770 = vmatprep.subr.mxu0 0.0
  %771 = vmatpush2.msra.mxu0 0.0
  %772 = vmatprep.subr.mxu0 0.0
  %773 = vmatpush2.msra.mxu0 0.0
  %774 = vmatprep.subr.mxu0 0.0
  %775 = vmatpush2.msra.mxu0 0.0
  %776 = vmatprep.subr.mxu0 0.0
  %777 = vmatpush2.msra.mxu0 0.0
  %778 = vmatprep.subr.mxu0 0.0
  %779 = vmatpush2.msra.mxu0 0.0
  %780 = vmatprep.subr.mxu0 0.0
  %781 = vmatpush2.msra.mxu0 0.0
  %782 = vmatprep.subr.mxu0 0.0
  %783 = vmatpush2.msra.mxu0 0.0
  %784 = vmatprep.subr.mxu0 0.0
  %785 = vmatpush2.msra.mxu0 0.0
  %786 = vmatprep.subr.mxu0 0.0
  %787 = vmatpush2.msra.mxu0 0.0
  %788 = vmatprep.subr.mxu0 0.0
  %789 = vmatpush2.msra.mxu0 0.0
  %790 = vmatprep.mubr.f32.mxu0 0.0
  %791 = vmatmul.mubr.f32.gmra.mxu0 %v724
  %v792 = vpop.f32.mrf.mxu0
  %v793 = vadd.f32 0.0, %v792
  %v794 = vpop.f32.mrf.mxu0
  %795 = vdwg.mxu0
  %797 = vrot.lane.b32.xlu0 %v443, 96
  %v798 = vpop.permute.xlu0 %797
  %v799 = vsel %vm340, %v798, 0
  %801 = vmatprep.subr.mxu0 0.0
  %802 = vmatpush1.msra.mxu0 0.0
  %803 = vmatprep.subr.mxu0 0.0
  %804 = vmatpush1.msra.mxu0 0.0
  %805 = vmatprep.subr.mxu0 0.0
  %806 = vmatpush1.msra.mxu0 0.0
  %807 = vmatprep.subr.mxu0 0.0
  %808 = vmatpush1.msra.mxu0 0.0
  %809 = vmatprep.subr.mxu0 0.0
  %810 = vmatpush1.msra.mxu0 0.0
  %811 = vmatprep.subr.mxu0 0.0
  %812 = vmatpush1.msra.mxu0 0.0
  %813 = vmatprep.subr.mxu0 0.0
  %814 = vmatpush1.msra.mxu0 0.0
  %815 = vmatprep.subr.mxu0 0.0
  %816 = vmatpush1.msra.mxu0 0.0
  %817 = vmatprep.subr.mxu0 0.0
  %818 = vmatpush1.msra.mxu0 0.0
  %819 = vmatprep.subr.mxu0 0.0
  %820 = vmatpush1.msra.mxu0 0.0
  %821 = vmatprep.subr.mxu0 0.0
  %822 = vmatpush1.msra.mxu0 0.0
  %823 = vmatprep.subr.mxu0 0.0
  %824 = vmatpush1.msra.mxu0 0.0
  %825 = vmatprep.subr.mxu0 0.0
  %826 = vmatpush1.msra.mxu0 0.0
  %827 = vmatprep.subr.mxu0 0.0
  %828 = vmatpush1.msra.mxu0 0.0
  %829 = vmatprep.subr.mxu0 0.0
  %830 = vmatpush1.msra.mxu0 %v34
  %831 = vmatprep.subr.mxu0 0.0
  %832 = vmatpush1.msra.mxu0 %v33
  %833 = vmatprep.subr.mxu0 0.0
  %834 = vmatpush2.msra.mxu0 0.0
  %835 = vmatprep.subr.mxu0 0.0
  %836 = vmatpush2.msra.mxu0 0.0
  %837 = vmatprep.subr.mxu0 0.0
  %838 = vmatpush2.msra.mxu0 0.0
  %839 = vmatprep.subr.mxu0 0.0
  %840 = vmatpush2.msra.mxu0 0.0
  %841 = vmatprep.subr.mxu0 0.0
  %842 = vmatpush2.msra.mxu0 0.0
  %843 = vmatprep.subr.mxu0 0.0
  %844 = vmatpush2.msra.mxu0 0.0
  %845 = vmatprep.subr.mxu0 0.0
  %846 = vmatpush2.msra.mxu0 0.0
  %847 = vmatprep.subr.mxu0 0.0
  %848 = vmatpush2.msra.mxu0 0.0
  %849 = vmatprep.subr.mxu0 0.0
  %850 = vmatpush2.msra.mxu0 0.0
  %851 = vmatprep.subr.mxu0 0.0
  %852 = vmatpush2.msra.mxu0 0.0
  %853 = vmatprep.subr.mxu0 0.0
  %854 = vmatpush2.msra.mxu0 0.0
  %855 = vmatprep.subr.mxu0 0.0
  %856 = vmatpush2.msra.mxu0 0.0
  %857 = vmatprep.subr.mxu0 0.0
  %858 = vmatpush2.msra.mxu0 0.0
  %859 = vmatprep.subr.mxu0 0.0
  %860 = vmatpush2.msra.mxu0 0.0
  %861 = vmatprep.subr.mxu0 0.0
  %862 = vmatpush2.msra.mxu0 0.0
  %863 = vmatprep.subr.mxu0 0.0
  %864 = vmatpush2.msra.mxu0 0.0
  %865 = vmatprep.mubr.f32.mxu0 0.0
  %866 = vmatmul.mubr.f32.gmra.mxu0 %v799
  %v867 = vpop.f32.mrf.mxu0
  %v868 = vadd.f32 0.0, %v867
  %v869 = vpop.f32.mrf.mxu0
  %870 = vdwg.mxu0
  %v871 = vadd.f32 %v793, %v868
  %v872 = vadd.f32 %v871, %v417
  %v873 = vxor.u32 %v872, 2147483648
  %v874 = vmul.f32 %v873, 1.442695
  %v875 = vpow.pop %v874
  %v876 = vadd.f32 %v875, 1.0
  %v877 = vrcp.pop %v876
  %v878 = vmul.f32 1.0, %v877
  %v879 = vtanh.pop %v872
  %v880 = vmul.f32 %v878, %v437
  %882 = vrot.lane.b32.xlu0 %v879, 80
  %v883 = vpop.permute.xlu0 %882
  %v885 = vmul.f32 %v878, %v883
  %887 = vrot.lane.b32.xlu0 %v885, 16
  %v888 = vpop.permute.xlu0 %887
  %v890 = vadd.f32 %v880, %v888
  %v891 = vtanh.pop %v890
  %893 = vrot.lane.b32.xlu0 %v891, 16
  %v894 = vpop.permute.xlu0 %893
  %v896 = vmul.f32 %v878, %v894
  %v898 = vrot.slane %v793, 6
  %v899 = vrot.slane %v793, 7
  %v900 = vrot.slane %v793, 1
  %v901 = vrot.slane %v793, 2
  %v902 = vrot.slane %v793, 3
  %v903 = vrot.slane %v793, 4
  %v904 = vrot.slane %v793, 5
  %905 = vrot.lane.b32.xlu0 %v898, 64
  %v906 = vpop.permute.xlu0 %905
  %907 = vrot.lane.b32.xlu0 %v899, 64
  %v908 = vpop.permute.xlu0 %907
  %909 = vrot.lane.b32.xlu0 %v793, 64
  %v910 = vpop.permute.xlu0 %909
  %911 = vrot.lane.b32.xlu0 %v900, 64
  %v912 = vpop.permute.xlu0 %911
  %913 = vrot.lane.b32.xlu0 %v901, 64
  %v914 = vpop.permute.xlu0 %913
  %915 = vrot.lane.b32.xlu0 %v902, 64
  %v916 = vpop.permute.xlu0 %915
  %917 = vrot.lane.b32.xlu0 %v903, 64
  %v918 = vpop.permute.xlu0 %917
  %919 = vrot.lane.b32.xlu0 %v904, 64
  %v920 = vpop.permute.xlu0 %919
  %v929 = vadd.f32 %v109, %v906
  %v930 = vadd.f32 %v110, %v908
  %v931 = vadd.f32 %v111, %v910
  %v932 = vadd.f32 %v112, %v912
  %v933 = vadd.f32 %v113, %v914
  %v934 = vadd.f32 %v114, %v916
  %v935 = vadd.f32 %v115, %v918
  %v936 = vadd.f32 %v116, %v920
  %v937 = vxor.u32 %v929, 2147483648
  %v938 = vxor.u32 %v930, 2147483648
  %v939 = vxor.u32 %v931, 2147483648
  %v940 = vxor.u32 %v932, 2147483648
  %v941 = vxor.u32 %v933, 2147483648
  %v942 = vxor.u32 %v934, 2147483648
  %v943 = vxor.u32 %v935, 2147483648
  %v944 = vxor.u32 %v936, 2147483648
  %v945 = vmul.f32 %v937, 1.442695
  %v946 = vpow.pop %v945
  %v947 = vmul.f32 %v938, 1.442695
  %v948 = vpow.pop %v947
  %v949 = vmul.f32 %v939, 1.442695
  %v950 = vpow.pop %v949
  %v951 = vmul.f32 %v940, 1.442695
  %v952 = vpow.pop %v951
  %v953 = vmul.f32 %v941, 1.442695
  %v954 = vpow.pop %v953
  %v955 = vmul.f32 %v942, 1.442695
  %v956 = vpow.pop %v955
  %v957 = vmul.f32 %v943, 1.442695
  %v958 = vpow.pop %v957
  %v959 = vmul.f32 %v944, 1.442695
  %v960 = vpow.pop %v959
  %v961 = vadd.f32 %v946, 1.0
  %v962 = vadd.f32 %v948, 1.0
  %v963 = vadd.f32 %v950, 1.0
  %v964 = vadd.f32 %v952, 1.0
  %v965 = vadd.f32 %v954, 1.0
  %v966 = vadd.f32 %v956, 1.0
  %v967 = vadd.f32 %v958, 1.0
  %v968 = vadd.f32 %v960, 1.0
  %v969 = vrcp.pop %v961
  %v970 = vmul.f32 1.0, %v969
  %v971 = vrcp.pop %v962
  %v972 = vmul.f32 1.0, %v971
  %v973 = vrcp.pop %v963
  %v974 = vmul.f32 1.0, %v973
  %v975 = vrcp.pop %v964
  %v976 = vmul.f32 1.0, %v975
  %v977 = vrcp.pop %v965
  %v978 = vmul.f32 1.0, %v977
  %v979 = vrcp.pop %v966
  %v980 = vmul.f32 1.0, %v979
  %v981 = vrcp.pop %v967
  %v982 = vmul.f32 1.0, %v981
  %v983 = vrcp.pop %v968
  %v984 = vmul.f32 1.0, %v983
  %v985 = vtanh.pop %v929
  %v986 = vtanh.pop %v930
  %v987 = vtanh.pop %v931
  %v988 = vtanh.pop %v932
  %v989 = vtanh.pop %v933
  %v990 = vtanh.pop %v934
  %v991 = vtanh.pop %v935
  %v992 = vtanh.pop %v936
  %v1001 = vrot.slane %v644, 7
  %v1002 = vrot.slane %v645, 7
  %v1003 = vrot.slane %v646, 7
  %v1004 = vrot.slane %v647, 7
  %v1005 = vrot.slane %v648, 7
  %v1006 = vrot.slane %v649, 7
  %v1007 = vrot.slane %v650, 7
  %v1008 = vrot.slane %v651, 7
  %v1017 = vmul.f32 %v970, %v1001
  %v1018 = vmul.f32 %v972, %v1002
  %v1019 = vmul.f32 %v974, %v1003
  %v1020 = vmul.f32 %v976, %v1004
  %v1021 = vmul.f32 %v978, %v1005
  %v1022 = vmul.f32 %v980, %v1006
  %v1023 = vmul.f32 %v982, %v1007
  %v1024 = vmul.f32 %v984, %v1008
  %1033 = vrot.lane.b32.xlu0 %v985, 80
  %v1034 = vpop.permute.xlu0 %1033
  %1035 = vrot.lane.b32.xlu0 %v986, 80
  %v1036 = vpop.permute.xlu0 %1035
  %1037 = vrot.lane.b32.xlu0 %v987, 80
  %v1038 = vpop.permute.xlu0 %1037
  %1039 = vrot.lane.b32.xlu0 %v988, 80
  %v1040 = vpop.permute.xlu0 %1039
  %1041 = vrot.lane.b32.xlu0 %v989, 80
  %v1042 = vpop.permute.xlu0 %1041
  %1043 = vrot.lane.b32.xlu0 %v990, 80
  %v1044 = vpop.permute.xlu0 %1043
  %1045 = vrot.lane.b32.xlu0 %v991, 80
  %v1046 = vpop.permute.xlu0 %1045
  %1047 = vrot.lane.b32.xlu0 %v992, 80
  %v1048 = vpop.permute.xlu0 %1047
  %v1057 = vmul.f32 %v970, %v1034
  %v1058 = vmul.f32 %v972, %v1036
  %v1059 = vmul.f32 %v974, %v1038
  %v1060 = vmul.f32 %v976, %v1040
  %v1061 = vmul.f32 %v978, %v1042
  %v1062 = vmul.f32 %v980, %v1044
  %v1063 = vmul.f32 %v982, %v1046
  %v1064 = vmul.f32 %v984, %v1048
  %1073 = vrot.lane.b32.xlu0 %v1057, 16
  %v1074 = vpop.permute.xlu0 %1073
  %1075 = vrot.lane.b32.xlu0 %v1058, 16
  %v1076 = vpop.permute.xlu0 %1075
  %1077 = vrot.lane.b32.xlu0 %v1059, 16
  %v1078 = vpop.permute.xlu0 %1077
  %1079 = vrot.lane.b32.xlu0 %v1060, 16
  %v1080 = vpop.permute.xlu0 %1079
  %1081 = vrot.lane.b32.xlu0 %v1061, 16
  %v1082 = vpop.permute.xlu0 %1081
  %1083 = vrot.lane.b32.xlu0 %v1062, 16
  %v1084 = vpop.permute.xlu0 %1083
  %1085 = vrot.lane.b32.xlu0 %v1063, 16
  %v1086 = vpop.permute.xlu0 %1085
  %1087 = vrot.lane.b32.xlu0 %v1064, 16
  %v1088 = vpop.permute.xlu0 %1087
  %v1097 = vadd.f32 %v1017, %v1074
  %v1098 = vadd.f32 %v1018, %v1076
  %v1099 = vadd.f32 %v1019, %v1078
  %v1100 = vadd.f32 %v1020, %v1080
  %v1101 = vadd.f32 %v1021, %v1082
  %v1102 = vadd.f32 %v1022, %v1084
  %v1103 = vadd.f32 %v1023, %v1086
  %v1104 = vadd.f32 %v1024, %v1088
  %v1105 = vtanh.pop %v1097
  %v1106 = vtanh.pop %v1098
  %v1107 = vtanh.pop %v1099
  %v1108 = vtanh.pop %v1100
  %v1109 = vtanh.pop %v1101
  %v1110 = vtanh.pop %v1102
  %v1111 = vtanh.pop %v1103
  %v1112 = vtanh.pop %v1104
  %1121 = vrot.lane.b32.xlu0 %v1105, 16
  %v1122 = vpop.permute.xlu0 %1121
  %1123 = vrot.lane.b32.xlu0 %v1106, 16
  %v1124 = vpop.permute.xlu0 %1123
  %1125 = vrot.lane.b32.xlu0 %v1107, 16
  %v1126 = vpop.permute.xlu0 %1125
  %1127 = vrot.lane.b32.xlu0 %v1108, 16
  %v1128 = vpop.permute.xlu0 %1127
  %1129 = vrot.lane.b32.xlu0 %v1109, 16
  %v1130 = vpop.permute.xlu0 %1129
  %1131 = vrot.lane.b32.xlu0 %v1110, 16
  %v1132 = vpop.permute.xlu0 %1131
  %1133 = vrot.lane.b32.xlu0 %v1111, 16
  %v1134 = vpop.permute.xlu0 %1133
  %1135 = vrot.lane.b32.xlu0 %v1112, 16
  %v1136 = vpop.permute.xlu0 %1135
  %v1145 = vmul.f32 %v970, %v1122
  %v1146 = vmul.f32 %v972, %v1124
  %v1147 = vmul.f32 %v974, %v1126
  %v1148 = vmul.f32 %v976, %v1128
  %v1149 = vmul.f32 %v978, %v1130
  %v1150 = vmul.f32 %v980, %v1132
  %v1151 = vmul.f32 %v982, %v1134
  %v1152 = vmul.f32 %v984, %v1136
  %v1161 = vrot.slane %v1145, 2
  %v1162 = vrot.slane %v1146, 1
  %v1163 = vsel %vm318, %v1162, %v1161
  %v1164 = vsel %vm321, %v1147, %v1163
  %v1165 = vrot.slane %v1148, 7
  %v1166 = vsel %vm324, %v1165, %v1164
  %v1167 = vrot.slane %v1149, 6
  %v1168 = vsel %vm327, %v1167, %v1166
  %v1169 = vrot.slane %v1150, 5
  %v1170 = vsel %vm330, %v1169, %v1168
  %v1171 = vrot.slane %v1151, 4
  %v1172 = vsel %vm333, %v1171, %v1170
  %v1173 = vrot.slane %v1152, 3
  %v1174 = vsel %vm336, %v1173, %v1172
  %1175 = vrot.lane.b32.xlu0 %v1174, 96
  %v1176 = vpop.permute.xlu0 %1175
  %v1177 = vsel %vm340, %v1176, 0
  %1179 = vmatprep.subr.mxu0 0.0
  %1180 = vmatpush1.msra.mxu0 0.0
  %1181 = vmatprep.subr.mxu0 0.0
  %1182 = vmatpush1.msra.mxu0 0.0
  %1183 = vmatprep.subr.mxu0 0.0
  %1184 = vmatpush1.msra.mxu0 0.0
  %1185 = vmatprep.subr.mxu0 0.0
  %1186 = vmatpush1.msra.mxu0 0.0
  %1187 = vmatprep.subr.mxu0 0.0
  %1188 = vmatpush1.msra.mxu0 0.0
  %1189 = vmatprep.subr.mxu0 0.0
  %1190 = vmatpush1.msra.mxu0 0.0
  %1191 = vmatprep.subr.mxu0 0.0
  %1192 = vmatpush1.msra.mxu0 0.0
  %1193 = vmatprep.subr.mxu0 0.0
  %1194 = vmatpush1.msra.mxu0 0.0
  %1195 = vmatprep.subr.mxu0 0.0
  %1196 = vmatpush1.msra.mxu0 0.0
  %1197 = vmatprep.subr.mxu0 0.0
  %1198 = vmatpush1.msra.mxu0 0.0
  %1199 = vmatprep.subr.mxu0 0.0
  %1200 = vmatpush1.msra.mxu0 0.0
  %1201 = vmatprep.subr.mxu0 0.0
  %1202 = vmatpush1.msra.mxu0 0.0
  %1203 = vmatprep.subr.mxu0 0.0
  %1204 = vmatpush1.msra.mxu0 0.0
  %1205 = vmatprep.subr.mxu0 0.0
  %1206 = vmatpush1.msra.mxu0 0.0
  %1207 = vmatprep.subr.mxu0 0.0
  %1208 = vmatpush1.msra.mxu0 %v32
  %1209 = vmatprep.subr.mxu0 0.0
  %1210 = vmatpush1.msra.mxu0 %v31
  %1211 = vmatprep.subr.mxu0 0.0
  %1212 = vmatpush2.msra.mxu0 0.0
  %1213 = vmatprep.subr.mxu0 0.0
  %1214 = vmatpush2.msra.mxu0 0.0
  %1215 = vmatprep.subr.mxu0 0.0
  %1216 = vmatpush2.msra.mxu0 0.0
  %1217 = vmatprep.subr.mxu0 0.0
  %1218 = vmatpush2.msra.mxu0 0.0
  %1219 = vmatprep.subr.mxu0 0.0
  %1220 = vmatpush2.msra.mxu0 0.0
  %1221 = vmatprep.subr.mxu0 0.0
  %1222 = vmatpush2.msra.mxu0 0.0
  %1223 = vmatprep.subr.mxu0 0.0
  %1224 = vmatpush2.msra.mxu0 0.0
  %1225 = vmatprep.subr.mxu0 0.0
  %1226 = vmatpush2.msra.mxu0 0.0
  %1227 = vmatprep.subr.mxu0 0.0
  %1228 = vmatpush2.msra.mxu0 0.0
  %1229 = vmatprep.subr.mxu0 0.0
  %1230 = vmatpush2.msra.mxu0 0.0
  %1231 = vmatprep.subr.mxu0 0.0
  %1232 = vmatpush2.msra.mxu0 0.0
  %1233 = vmatprep.subr.mxu0 0.0
  %1234 = vmatpush2.msra.mxu0 0.0
  %1235 = vmatprep.subr.mxu0 0.0
  %1236 = vmatpush2.msra.mxu0 0.0
  %1237 = vmatprep.subr.mxu0 0.0
  %1238 = vmatpush2.msra.mxu0 0.0
  %1239 = vmatprep.subr.mxu0 0.0
  %1240 = vmatpush2.msra.mxu0 0.0
  %1241 = vmatprep.subr.mxu0 0.0
  %1242 = vmatpush2.msra.mxu0 0.0
  %1243 = vmatprep.mubr.f32.mxu0 0.0
  %1244 = vmatmul.mubr.f32.gmra.mxu0 %v1177
  %v1245 = vpop.f32.mrf.mxu0
  %v1246 = vadd.f32 0.0, %v1245
  %v1247 = vpop.f32.mrf.mxu0
  %1248 = vdwg.mxu0
  %1250 = vrot.lane.b32.xlu0 %v896, 96
  %v1251 = vpop.permute.xlu0 %1250
  %v1252 = vsel %vm340, %v1251, 0
  %1254 = vmatprep.subr.mxu0 0.0
  %1255 = vmatpush1.msra.mxu0 0.0
  %1256 = vmatprep.subr.mxu0 0.0
  %1257 = vmatpush1.msra.mxu0 0.0
  %1258 = vmatprep.subr.mxu0 0.0
  %1259 = vmatpush1.msra.mxu0 0.0
  %1260 = vmatprep.subr.mxu0 0.0
  %1261 = vmatpush1.msra.mxu0 0.0
  %1262 = vmatprep.subr.mxu0 0.0
  %1263 = vmatpush1.msra.mxu0 0.0
  %1264 = vmatprep.subr.mxu0 0.0
  %1265 = vmatpush1.msra.mxu0 0.0
  %1266 = vmatprep.subr.mxu0 0.0
  %1267 = vmatpush1.msra.mxu0 0.0
  %1268 = vmatprep.subr.mxu0 0.0
  %1269 = vmatpush1.msra.mxu0 0.0
  %1270 = vmatprep.subr.mxu0 0.0
  %1271 = vmatpush1.msra.mxu0 0.0
  %1272 = vmatprep.subr.mxu0 0.0
  %1273 = vmatpush1.msra.mxu0 0.0
  %1274 = vmatprep.subr.mxu0 0.0
  %1275 = vmatpush1.msra.mxu0 0.0
  %1276 = vmatprep.subr.mxu0 0.0
  %1277 = vmatpush1.msra.mxu0 0.0
  %1278 = vmatprep.subr.mxu0 0.0
  %1279 = vmatpush1.msra.mxu0 0.0
  %1280 = vmatprep.subr.mxu0 0.0
  %1281 = vmatpush1.msra.mxu0 0.0
  %1282 = vmatprep.subr.mxu0 0.0
  %1283 = vmatpush1.msra.mxu0 %v34
  %1284 = vmatprep.subr.mxu0 0.0
  %1285 = vmatpush1.msra.mxu0 %v33
  %1286 = vmatprep.subr.mxu0 0.0
  %1287 = vmatpush2.msra.mxu0 0.0
  %1288 = vmatprep.subr.mxu0 0.0
  %1289 = vmatpush2.msra.mxu0 0.0
  %1290 = vmatprep.subr.mxu0 0.0
  %1291 = vmatpush2.msra.mxu0 0.0
  %1292 = vmatprep.subr.mxu0 0.0
  %1293 = vmatpush2.msra.mxu0 0.0
  %1294 = vmatprep.subr.mxu0 0.0
  %1295 = vmatpush2.msra.mxu0 0.0
  %1296 = vmatprep.subr.mxu0 0.0
  %1297 = vmatpush2.msra.mxu0 0.0
  %1298 = vmatprep.subr.mxu0 0.0
  %1299 = vmatpush2.msra.mxu0 0.0
  %1300 = vmatprep.subr.mxu0 0.0
  %1301 = vmatpush2.msra.mxu0 0.0
  %1302 = vmatprep.subr.mxu0 0.0
  %1303 = vmatpush2.msra.mxu0 0.0
  %1304 = vmatprep.subr.mxu0 0.0
  %1305 = vmatpush2.msra.mxu0 0.0
  %1306 = vmatprep.subr.mxu0 0.0
  %1307 = vmatpush2.msra.mxu0 0.0
  %1308 = vmatprep.subr.mxu0 0.0
  %1309 = vmatpush2.msra.mxu0 0.0
  %1310 = vmatprep.subr.mxu0 0.0
  %1311 = vmatpush2.msra.mxu0 0.0
  %1312 = vmatprep.subr.mxu0 0.0
  %1313 = vmatpush2.msra.mxu0 0.0
  %1314 = vmatprep.subr.mxu0 0.0
  %1315 = vmatpush2.msra.mxu0 0.0
  %1316 = vmatprep.subr.mxu0 0.0
  %1317 = vmatpush2.msra.mxu0 0.0
  %1318 = vmatprep.mubr.f32.mxu0 0.0
  %1319 = vmatmul.mubr.f32.gmra.mxu0 %v1252
  %v1320 = vpop.f32.mrf.mxu0
  %v1321 = vadd.f32 0.0, %v1320
  %v1322 = vpop.f32.mrf.mxu0
  %1323 = vdwg.mxu0
  %v1324 = vadd.f32 %v1246, %v1321
  %v1325 = vadd.f32 %v1324, %v417
  %v1326 = vxor.u32 %v1325, 2147483648
  %v1327 = vmul.f32 %v1326, 1.442695
  %v1328 = vpow.pop %v1327
  %v1329 = vadd.f32 %v1328, 1.0
  %v1330 = vrcp.pop %v1329
  %v1331 = vmul.f32 1.0, %v1330
  %v1332 = vtanh.pop %v1325
  %v1333 = vmul.f32 %v1331, %v890
  %1335 = vrot.lane.b32.xlu0 %v1332, 80
  %v1336 = vpop.permute.xlu0 %1335
  %v1338 = vmul.f32 %v1331, %v1336
  %1340 = vrot.lane.b32.xlu0 %v1338, 16
  %v1341 = vpop.permute.xlu0 %1340
  %v1343 = vadd.f32 %v1333, %v1341
  %v1344 = vtanh.pop %v1343
  %1346 = vrot.lane.b32.xlu0 %v1344, 16
  %v1347 = vpop.permute.xlu0 %1346
  %v1349 = vmul.f32 %v1331, %v1347
  %v1351 = vrot.slane %v1246, 5
  %v1352 = vrot.slane %v1246, 6
  %v1353 = vrot.slane %v1246, 7
  %v1354 = vrot.slane %v1246, 1
  %v1355 = vrot.slane %v1246, 2
  %v1356 = vrot.slane %v1246, 3
  %v1357 = vrot.slane %v1246, 4
  %1358 = vrot.lane.b32.xlu0 %v1351, 64
  %v1359 = vpop.permute.xlu0 %1358
  %1360 = vrot.lane.b32.xlu0 %v1352, 64
  %v1361 = vpop.permute.xlu0 %1360
  %1362 = vrot.lane.b32.xlu0 %v1353, 64
  %v1363 = vpop.permute.xlu0 %1362
  %1364 = vrot.lane.b32.xlu0 %v1246, 64
  %v1365 = vpop.permute.xlu0 %1364
  %1366 = vrot.lane.b32.xlu0 %v1354, 64
  %v1367 = vpop.permute.xlu0 %1366
  %1368 = vrot.lane.b32.xlu0 %v1355, 64
  %v1369 = vpop.permute.xlu0 %1368
  %1370 = vrot.lane.b32.xlu0 %v1356, 64
  %v1371 = vpop.permute.xlu0 %1370
  %1372 = vrot.lane.b32.xlu0 %v1357, 64
  %v1373 = vpop.permute.xlu0 %1372
  %v1382 = vadd.f32 %v109, %v1359
  %v1383 = vadd.f32 %v110, %v1361
  %v1384 = vadd.f32 %v111, %v1363
  %v1385 = vadd.f32 %v112, %v1365
  %v1386 = vadd.f32 %v113, %v1367
  %v1387 = vadd.f32 %v114, %v1369
  %v1388 = vadd.f32 %v115, %v1371
  %v1389 = vadd.f32 %v116, %v1373
  %v1390 = vxor.u32 %v1382, 2147483648
  %v1391 = vxor.u32 %v1383, 2147483648
  %v1392 = vxor.u32 %v1384, 2147483648
  %v1393 = vxor.u32 %v1385, 2147483648
  %v1394 = vxor.u32 %v1386, 2147483648
  %v1395 = vxor.u32 %v1387, 2147483648
  %v1396 = vxor.u32 %v1388, 2147483648
  %v1397 = vxor.u32 %v1389, 2147483648
  %v1398 = vmul.f32 %v1390, 1.442695
  %v1399 = vpow.pop %v1398
  %v1400 = vmul.f32 %v1391, 1.442695
  %v1401 = vpow.pop %v1400
  %v1402 = vmul.f32 %v1392, 1.442695
  %v1403 = vpow.pop %v1402
  %v1404 = vmul.f32 %v1393, 1.442695
  %v1405 = vpow.pop %v1404
  %v1406 = vmul.f32 %v1394, 1.442695
  %v1407 = vpow.pop %v1406
  %v1408 = vmul.f32 %v1395, 1.442695
  %v1409 = vpow.pop %v1408
  %v1410 = vmul.f32 %v1396, 1.442695
  %v1411 = vpow.pop %v1410
  %v1412 = vmul.f32 %v1397, 1.442695
  %v1413 = vpow.pop %v1412
  %v1414 = vadd.f32 %v1399, 1.0
  %v1415 = vadd.f32 %v1401, 1.0
  %v1416 = vadd.f32 %v1403, 1.0
  %v1417 = vadd.f32 %v1405, 1.0
  %v1418 = vadd.f32 %v1407, 1.0
  %v1419 = vadd.f32 %v1409, 1.0
  %v1420 = vadd.f32 %v1411, 1.0
  %v1421 = vadd.f32 %v1413, 1.0
  %v1422 = vrcp.pop %v1414
  %v1423 = vmul.f32 1.0, %v1422
  %v1424 = vrcp.pop %v1415
  %v1425 = vmul.f32 1.0, %v1424
  %v1426 = vrcp.pop %v1416
  %v1427 = vmul.f32 1.0, %v1426
  %v1428 = vrcp.pop %v1417
  %v1429 = vmul.f32 1.0, %v1428
  %v1430 = vrcp.pop %v1418
  %v1431 = vmul.f32 1.0, %v1430
  %v1432 = vrcp.pop %v1419
  %v1433 = vmul.f32 1.0, %v1432
  %v1434 = vrcp.pop %v1420
  %v1435 = vmul.f32 1.0, %v1434
  %v1436 = vrcp.pop %v1421
  %v1437 = vmul.f32 1.0, %v1436
  %v1438 = vtanh.pop %v1382
  %v1439 = vtanh.pop %v1383
  %v1440 = vtanh.pop %v1384
  %v1441 = vtanh.pop %v1385
  %v1442 = vtanh.pop %v1386
  %v1443 = vtanh.pop %v1387
  %v1444 = vtanh.pop %v1388
  %v1445 = vtanh.pop %v1389
  %v1454 = vrot.slane %v1097, 7
  %v1455 = vrot.slane %v1098, 7
  %v1456 = vrot.slane %v1099, 7
  %v1457 = vrot.slane %v1100, 7
  %v1458 = vrot.slane %v1101, 7
  %v1459 = vrot.slane %v1102, 7
  %v1460 = vrot.slane %v1103, 7
  %v1461 = vrot.slane %v1104, 7
  %v1470 = vmul.f32 %v1423, %v1454
  %v1471 = vmul.f32 %v1425, %v1455
  %v1472 = vmul.f32 %v1427, %v1456
  %v1473 = vmul.f32 %v1429, %v1457
  %v1474 = vmul.f32 %v1431, %v1458
  %v1475 = vmul.f32 %v1433, %v1459
  %v1476 = vmul.f32 %v1435, %v1460
  %v1477 = vmul.f32 %v1437, %v1461
  %1486 = vrot.lane.b32.xlu0 %v1438, 80
  %v1487 = vpop.permute.xlu0 %1486
  %1488 = vrot.lane.b32.xlu0 %v1439, 80
  %v1489 = vpop.permute.xlu0 %1488
  %1490 = vrot.lane.b32.xlu0 %v1440, 80
  %v1491 = vpop.permute.xlu0 %1490
  %1492 = vrot.lane.b32.xlu0 %v1441, 80
  %v1493 = vpop.permute.xlu0 %1492
  %1494 = vrot.lane.b32.xlu0 %v1442, 80
  %v1495 = vpop.permute.xlu0 %1494
  %1496 = vrot.lane.b32.xlu0 %v1443, 80
  %v1497 = vpop.permute.xlu0 %1496
  %1498 = vrot.lane.b32.xlu0 %v1444, 80
  %v1499 = vpop.permute.xlu0 %1498
  %1500 = vrot.lane.b32.xlu0 %v1445, 80
  %v1501 = vpop.permute.xlu0 %1500
  %v1510 = vmul.f32 %v1423, %v1487
  %v1511 = vmul.f32 %v1425, %v1489
  %v1512 = vmul.f32 %v1427, %v1491
  %v1513 = vmul.f32 %v1429, %v1493
  %v1514 = vmul.f32 %v1431, %v1495
  %v1515 = vmul.f32 %v1433, %v1497
  %v1516 = vmul.f32 %v1435, %v1499
  %v1517 = vmul.f32 %v1437, %v1501
  %1526 = vrot.lane.b32.xlu0 %v1510, 16
  %v1527 = vpop.permute.xlu0 %1526
  %1528 = vrot.lane.b32.xlu0 %v1511, 16
  %v1529 = vpop.permute.xlu0 %1528
  %1530 = vrot.lane.b32.xlu0 %v1512, 16
  %v1531 = vpop.permute.xlu0 %1530
  %1532 = vrot.lane.b32.xlu0 %v1513, 16
  %v1533 = vpop.permute.xlu0 %1532
  %1534 = vrot.lane.b32.xlu0 %v1514, 16
  %v1535 = vpop.permute.xlu0 %1534
  %1536 = vrot.lane.b32.xlu0 %v1515, 16
  %v1537 = vpop.permute.xlu0 %1536
  %1538 = vrot.lane.b32.xlu0 %v1516, 16
  %v1539 = vpop.permute.xlu0 %1538
  %1540 = vrot.lane.b32.xlu0 %v1517, 16
  %v1541 = vpop.permute.xlu0 %1540
  %v1550 = vadd.f32 %v1470, %v1527
  %v1551 = vadd.f32 %v1471, %v1529
  %v1552 = vadd.f32 %v1472, %v1531
  %v1553 = vadd.f32 %v1473, %v1533
  %v1554 = vadd.f32 %v1474, %v1535
  %v1555 = vadd.f32 %v1475, %v1537
  %v1556 = vadd.f32 %v1476, %v1539
  %v1557 = vadd.f32 %v1477, %v1541
  %v1558 = vtanh.pop %v1550
  %v1559 = vtanh.pop %v1551
  %v1560 = vtanh.pop %v1552
  %v1561 = vtanh.pop %v1553
  %v1562 = vtanh.pop %v1554
  %v1563 = vtanh.pop %v1555
  %v1564 = vtanh.pop %v1556
  %v1565 = vtanh.pop %v1557
  %1574 = vrot.lane.b32.xlu0 %v1558, 16
  %v1575 = vpop.permute.xlu0 %1574
  %1576 = vrot.lane.b32.xlu0 %v1559, 16
  %v1577 = vpop.permute.xlu0 %1576
  %1578 = vrot.lane.b32.xlu0 %v1560, 16
  %v1579 = vpop.permute.xlu0 %1578
  %1580 = vrot.lane.b32.xlu0 %v1561, 16
  %v1581 = vpop.permute.xlu0 %1580
  %1582 = vrot.lane.b32.xlu0 %v1562, 16
  %v1583 = vpop.permute.xlu0 %1582
  %1584 = vrot.lane.b32.xlu0 %v1563, 16
  %v1585 = vpop.permute.xlu0 %1584
  %1586 = vrot.lane.b32.xlu0 %v1564, 16
  %v1587 = vpop.permute.xlu0 %1586
  %1588 = vrot.lane.b32.xlu0 %v1565, 16
  %v1589 = vpop.permute.xlu0 %1588
  %v1598 = vmul.f32 %v1423, %v1575
  %v1599 = vmul.f32 %v1425, %v1577
  %v1600 = vmul.f32 %v1427, %v1579
  %v1601 = vmul.f32 %v1429, %v1581
  %v1602 = vmul.f32 %v1431, %v1583
  %v1603 = vmul.f32 %v1433, %v1585
  %v1604 = vmul.f32 %v1435, %v1587
  %v1605 = vmul.f32 %v1437, %v1589
  %v1614 = vrot.slane %v1598, 3
  %v1615 = vrot.slane %v1599, 2
  %v1616 = vsel %vm318, %v1615, %v1614
  %v1617 = vrot.slane %v1600, 1
  %v1618 = vsel %vm321, %v1617, %v1616
  %v1619 = vsel %vm324, %v1601, %v1618
  %v1620 = vrot.slane %v1602, 7
  %v1621 = vsel %vm327, %v1620, %v1619
  %v1622 = vrot.slane %v1603, 6
  %v1623 = vsel %vm330, %v1622, %v1621
  %v1624 = vrot.slane %v1604, 5
  %v1625 = vsel %vm333, %v1624, %v1623
  %v1626 = vrot.slane %v1605, 4
  %v1627 = vsel %vm336, %v1626, %v1625
  %1628 = vrot.lane.b32.xlu0 %v1627, 96
  %v1629 = vpop.permute.xlu0 %1628
  %v1630 = vsel %vm340, %v1629, 0
  %1632 = vmatprep.subr.mxu0 0.0
  %1633 = vmatpush1.msra.mxu0 0.0
  %1634 = vmatprep.subr.mxu0 0.0
  %1635 = vmatpush1.msra.mxu0 0.0
  %1636 = vmatprep.subr.mxu0 0.0
  %1637 = vmatpush1.msra.mxu0 0.0
  %1638 = vmatprep.subr.mxu0 0.0
  %1639 = vmatpush1.msra.mxu0 0.0
  %1640 = vmatprep.subr.mxu0 0.0
  %1641 = vmatpush1.msra.mxu0 0.0
  %1642 = vmatprep.subr.mxu0 0.0
  %1643 = vmatpush1.msra.mxu0 0.0
  %1644 = vmatprep.subr.mxu0 0.0
  %1645 = vmatpush1.msra.mxu0 0.0
  %1646 = vmatprep.subr.mxu0 0.0
  %1647 = vmatpush1.msra.mxu0 0.0
  %1648 = vmatprep.subr.mxu0 0.0
  %1649 = vmatpush1.msra.mxu0 0.0
  %1650 = vmatprep.subr.mxu0 0.0
  %1651 = vmatpush1.msra.mxu0 0.0
  %1652 = vmatprep.subr.mxu0 0.0
  %1653 = vmatpush1.msra.mxu0 0.0
  %1654 = vmatprep.subr.mxu0 0.0
  %1655 = vmatpush1.msra.mxu0 0.0
  %1656 = vmatprep.subr.mxu0 0.0
  %1657 = vmatpush1.msra.mxu0 0.0
  %1658 = vmatprep.subr.mxu0 0.0
  %1659 = vmatpush1.msra.mxu0 0.0
  %1660 = vmatprep.subr.mxu0 0.0
  %1661 = vmatpush1.msra.mxu0 %v32
  %1662 = vmatprep.subr.mxu0 0.0
  %1663 = vmatpush1.msra.mxu0 %v31
  %1664 = vmatprep.subr.mxu0 0.0
  %1665 = vmatpush2.msra.mxu0 0.0
  %1666 = vmatprep.subr.mxu0 0.0
  %1667 = vmatpush2.msra.mxu0 0.0
  %1668 = vmatprep.subr.mxu0 0.0
  %1669 = vmatpush2.msra.mxu0 0.0
  %1670 = vmatprep.subr.mxu0 0.0
  %1671 = vmatpush2.msra.mxu0 0.0
  %1672 = vmatprep.subr.mxu0 0.0
  %1673 = vmatpush2.msra.mxu0 0.0
  %1674 = vmatprep.subr.mxu0 0.0
  %1675 = vmatpush2.msra.mxu0 0.0
  %1676 = vmatprep.subr.mxu0 0.0
  %1677 = vmatpush2.msra.mxu0 0.0
  %1678 = vmatprep.subr.mxu0 0.0
  %1679 = vmatpush2.msra.mxu0 0.0
  %1680 = vmatprep.subr.mxu0 0.0
  %1681 = vmatpush2.msra.mxu0 0.0
  %1682 = vmatprep.subr.mxu0 0.0
  %1683 = vmatpush2.msra.mxu0 0.0
  %1684 = vmatprep.subr.mxu0 0.0
  %1685 = vmatpush2.msra.mxu0 0.0
  %1686 = vmatprep.subr.mxu0 0.0
  %1687 = vmatpush2.msra.mxu0 0.0
  %1688 = vmatprep.subr.mxu0 0.0
  %1689 = vmatpush2.msra.mxu0 0.0
  %1690 = vmatprep.subr.mxu0 0.0
  %1691 = vmatpush2.msra.mxu0 0.0
  %1692 = vmatprep.subr.mxu0 0.0
  %1693 = vmatpush2.msra.mxu0 0.0
  %1694 = vmatprep.subr.mxu0 0.0
  %1695 = vmatpush2.msra.mxu0 0.0
  %1696 = vmatprep.mubr.f32.mxu0 0.0
  %1697 = vmatmul.mubr.f32.gmra.mxu0 %v1630
  %v1698 = vpop.f32.mrf.mxu0
  %v1699 = vadd.f32 0.0, %v1698
  %v1700 = vpop.f32.mrf.mxu0
  %1701 = vdwg.mxu0
  %1703 = vrot.lane.b32.xlu0 %v1349, 96
  %v1704 = vpop.permute.xlu0 %1703
  %v1705 = vsel %vm340, %v1704, 0
  %1707 = vmatprep.subr.mxu0 0.0
  %1708 = vmatpush1.msra.mxu0 0.0
  %1709 = vmatprep.subr.mxu0 0.0
  %1710 = vmatpush1.msra.mxu0 0.0
  %1711 = vmatprep.subr.mxu0 0.0
  %1712 = vmatpush1.msra.mxu0 0.0
  %1713 = vmatprep.subr.mxu0 0.0
  %1714 = vmatpush1.msra.mxu0 0.0
  %1715 = vmatprep.subr.mxu0 0.0
  %1716 = vmatpush1.msra.mxu0 0.0
  %1717 = vmatprep.subr.mxu0 0.0
  %1718 = vmatpush1.msra.mxu0 0.0
  %1719 = vmatprep.subr.mxu0 0.0
  %1720 = vmatpush1.msra.mxu0 0.0
  %1721 = vmatprep.subr.mxu0 0.0
  %1722 = vmatpush1.msra.mxu0 0.0
  %1723 = vmatprep.subr.mxu0 0.0
  %1724 = vmatpush1.msra.mxu0 0.0
  %1725 = vmatprep.subr.mxu0 0.0
  %1726 = vmatpush1.msra.mxu0 0.0
  %1727 = vmatprep.subr.mxu0 0.0
  %1728 = vmatpush1.msra.mxu0 0.0
  %1729 = vmatprep.subr.mxu0 0.0
  %1730 = vmatpush1.msra.mxu0 0.0
  %1731 = vmatprep.subr.mxu0 0.0
  %1732 = vmatpush1.msra.mxu0 0.0
  %1733 = vmatprep.subr.mxu0 0.0
  %1734 = vmatpush1.msra.mxu0 0.0
  %1735 = vmatprep.subr.mxu0 0.0
  %1736 = vmatpush1.msra.mxu0 %v34
  %1737 = vmatprep.subr.mxu0 0.0
  %1738 = vmatpush1.msra.mxu0 %v33
  %1739 = vmatprep.subr.mxu0 0.0
  %1740 = vmatpush2.msra.mxu0 0.0
  %1741 = vmatprep.subr.mxu0 0.0
  %1742 = vmatpush2.msra.mxu0 0.0
  %1743 = vmatprep.subr.mxu0 0.0
  %1744 = vmatpush2.msra.mxu0 0.0
  %1745 = vmatprep.subr.mxu0 0.0
  %1746 = vmatpush2.msra.mxu0 0.0
  %1747 = vmatprep.subr.mxu0 0.0
  %1748 = vmatpush2.msra.mxu0 0.0
  %1749 = vmatprep.subr.mxu0 0.0
  %1750 = vmatpush2.msra.mxu0 0.0
  %1751 = vmatprep.subr.mxu0 0.0
  %1752 = vmatpush2.msra.mxu0 0.0
  %1753 = vmatprep.subr.mxu0 0.0
  %1754 = vmatpush2.msra.mxu0 0.0
  %1755 = vmatprep.subr.mxu0 0.0
  %1756 = vmatpush2.msra.mxu0 0.0
  %1757 = vmatprep.subr.mxu0 0.0
  %1758 = vmatpush2.msra.mxu0 0.0
  %1759 = vmatprep.subr.mxu0 0.0
  %1760 = vmatpush2.msra.mxu0 0.0
  %1761 = vmatprep.subr.mxu0 0.0
  %1762 = vmatpush2.msra.mxu0 0.0
  %1763 = vmatprep.subr.mxu0 0.0
  %1764 = vmatpush2.msra.mxu0 0.0
  %1765 = vmatprep.subr.mxu0 0.0
  %1766 = vmatpush2.msra.mxu0 0.0
  %1767 = vmatprep.subr.mxu0 0.0
  %1768 = vmatpush2.msra.mxu0 0.0
  %1769 = vmatprep.subr.mxu0 0.0
  %1770 = vmatpush2.msra.mxu0 0.0
  %1771 = vmatprep.mubr.f32.mxu0 0.0
  %1772 = vmatmul.mubr.f32.gmra.mxu0 %v1705
  %v1773 = vpop.f32.mrf.mxu0
  %v1774 = vadd.f32 0.0, %v1773
  %v1775 = vpop.f32.mrf.mxu0
  %1776 = vdwg.mxu0
  %v1777 = vadd.f32 %v1699, %v1774
  %v1778 = vadd.f32 %v1777, %v417
  %v1779 = vxor.u32 %v1778, 2147483648
  %v1780 = vmul.f32 %v1779, 1.442695
  %v1781 = vpow.pop %v1780
  %v1782 = vadd.f32 %v1781, 1.0
  %v1783 = vrcp.pop %v1782
  %v1784 = vmul.f32 1.0, %v1783
  %v1785 = vtanh.pop %v1778
  %v1786 = vmul.f32 %v1784, %v1343
  %1788 = vrot.lane.b32.xlu0 %v1785, 80
  %v1789 = vpop.permute.xlu0 %1788
  %v1791 = vmul.f32 %v1784, %v1789
  %1793 = vrot.lane.b32.xlu0 %v1791, 16
  %v1794 = vpop.permute.xlu0 %1793
  %v1796 = vadd.f32 %v1786, %v1794
  %v1797 = vtanh.pop %v1796
  %1799 = vrot.lane.b32.xlu0 %v1797, 16
  %v1800 = vpop.permute.xlu0 %1799
  %v1802 = vmul.f32 %v1784, %v1800
  %v1804 = vrot.slane %v1699, 4
  %v1805 = vrot.slane %v1699, 5
  %v1806 = vrot.slane %v1699, 6
  %v1807 = vrot.slane %v1699, 7
  %v1808 = vrot.slane %v1699, 1
  %v1809 = vrot.slane %v1699, 2
  %v1810 = vrot.slane %v1699, 3
  %1811 = vrot.lane.b32.xlu0 %v1804, 64
  %v1812 = vpop.permute.xlu0 %1811
  %1813 = vrot.lane.b32.xlu0 %v1805, 64
  %v1814 = vpop.permute.xlu0 %1813
  %1815 = vrot.lane.b32.xlu0 %v1806, 64
  %v1816 = vpop.permute.xlu0 %1815
  %1817 = vrot.lane.b32.xlu0 %v1807, 64
  %v1818 = vpop.permute.xlu0 %1817
  %1819 = vrot.lane.b32.xlu0 %v1699, 64
  %v1820 = vpop.permute.xlu0 %1819
  %1821 = vrot.lane.b32.xlu0 %v1808, 64
  %v1822 = vpop.permute.xlu0 %1821
  %1823 = vrot.lane.b32.xlu0 %v1809, 64
  %v1824 = vpop.permute.xlu0 %1823
  %1825 = vrot.lane.b32.xlu0 %v1810, 64
  %v1826 = vpop.permute.xlu0 %1825
  %v1835 = vadd.f32 %v109, %v1812
  %v1836 = vadd.f32 %v110, %v1814
  %v1837 = vadd.f32 %v111, %v1816
  %v1838 = vadd.f32 %v112, %v1818
  %v1839 = vadd.f32 %v113, %v1820
  %v1840 = vadd.f32 %v114, %v1822
  %v1841 = vadd.f32 %v115, %v1824
  %v1842 = vadd.f32 %v116, %v1826
  %v1843 = vxor.u32 %v1835, 2147483648
  %v1844 = vxor.u32 %v1836, 2147483648
  %v1845 = vxor.u32 %v1837, 2147483648
  %v1846 = vxor.u32 %v1838, 2147483648
  %v1847 = vxor.u32 %v1839, 2147483648
  %v1848 = vxor.u32 %v1840, 2147483648
  %v1849 = vxor.u32 %v1841, 2147483648
  %v1850 = vxor.u32 %v1842, 2147483648
  %v1851 = vmul.f32 %v1843, 1.442695
  %v1852 = vpow.pop %v1851
  %v1853 = vmul.f32 %v1844, 1.442695
  %v1854 = vpow.pop %v1853
  %v1855 = vmul.f32 %v1845, 1.442695
  %v1856 = vpow.pop %v1855
  %v1857 = vmul.f32 %v1846, 1.442695
  %v1858 = vpow.pop %v1857
  %v1859 = vmul.f32 %v1847, 1.442695
  %v1860 = vpow.pop %v1859
  %v1861 = vmul.f32 %v1848, 1.442695
  %v1862 = vpow.pop %v1861
  %v1863 = vmul.f32 %v1849, 1.442695
  %v1864 = vpow.pop %v1863
  %v1865 = vmul.f32 %v1850, 1.442695
  %v1866 = vpow.pop %v1865
  %v1867 = vadd.f32 %v1852, 1.0
  %v1868 = vadd.f32 %v1854, 1.0
  %v1869 = vadd.f32 %v1856, 1.0
  %v1870 = vadd.f32 %v1858, 1.0
  %v1871 = vadd.f32 %v1860, 1.0
  %v1872 = vadd.f32 %v1862, 1.0
  %v1873 = vadd.f32 %v1864, 1.0
  %v1874 = vadd.f32 %v1866, 1.0
  %v1875 = vrcp.pop %v1867
  %v1876 = vmul.f32 1.0, %v1875
  %v1877 = vrcp.pop %v1868
  %v1878 = vmul.f32 1.0, %v1877
  %v1879 = vrcp.pop %v1869
  %v1880 = vmul.f32 1.0, %v1879
  %v1881 = vrcp.pop %v1870
  %v1882 = vmul.f32 1.0, %v1881
  %v1883 = vrcp.pop %v1871
  %v1884 = vmul.f32 1.0, %v1883
  %v1885 = vrcp.pop %v1872
  %v1886 = vmul.f32 1.0, %v1885
  %v1887 = vrcp.pop %v1873
  %v1888 = vmul.f32 1.0, %v1887
  %v1889 = vrcp.pop %v1874
  %v1890 = vmul.f32 1.0, %v1889
  %v1891 = vtanh.pop %v1835
  %v1892 = vtanh.pop %v1836
  %v1893 = vtanh.pop %v1837
  %v1894 = vtanh.pop %v1838
  %v1895 = vtanh.pop %v1839
  %v1896 = vtanh.pop %v1840
  %v1897 = vtanh.pop %v1841
  %v1898 = vtanh.pop %v1842
  %v1907 = vrot.slane %v1550, 7
  %v1908 = vrot.slane %v1551, 7
  %v1909 = vrot.slane %v1552, 7
  %v1910 = vrot.slane %v1553, 7
  %v1911 = vrot.slane %v1554, 7
  %v1912 = vrot.slane %v1555, 7
  %v1913 = vrot.slane %v1556, 7
  %v1914 = vrot.slane %v1557, 7
  %v1923 = vmul.f32 %v1876, %v1907
  %v1924 = vmul.f32 %v1878, %v1908
  %v1925 = vmul.f32 %v1880, %v1909
  %v1926 = vmul.f32 %v1882, %v1910
  %v1927 = vmul.f32 %v1884, %v1911
  %v1928 = vmul.f32 %v1886, %v1912
  %v1929 = vmul.f32 %v1888, %v1913
  %v1930 = vmul.f32 %v1890, %v1914
  %1939 = vrot.lane.b32.xlu0 %v1891, 80
  %v1940 = vpop.permute.xlu0 %1939
  %1941 = vrot.lane.b32.xlu0 %v1892, 80
  %v1942 = vpop.permute.xlu0 %1941
  %1943 = vrot.lane.b32.xlu0 %v1893, 80
  %v1944 = vpop.permute.xlu0 %1943
  %1945 = vrot.lane.b32.xlu0 %v1894, 80
  %v1946 = vpop.permute.xlu0 %1945
  %1947 = vrot.lane.b32.xlu0 %v1895, 80
  %v1948 = vpop.permute.xlu0 %1947
  %1949 = vrot.lane.b32.xlu0 %v1896, 80
  %v1950 = vpop.permute.xlu0 %1949
  %1951 = vrot.lane.b32.xlu0 %v1897, 80
  %v1952 = vpop.permute.xlu0 %1951
  %1953 = vrot.lane.b32.xlu0 %v1898, 80
  %v1954 = vpop.permute.xlu0 %1953
  %v1963 = vmul.f32 %v1876, %v1940
  %v1964 = vmul.f32 %v1878, %v1942
  %v1965 = vmul.f32 %v1880, %v1944
  %v1966 = vmul.f32 %v1882, %v1946
  %v1967 = vmul.f32 %v1884, %v1948
  %v1968 = vmul.f32 %v1886, %v1950
  %v1969 = vmul.f32 %v1888, %v1952
  %v1970 = vmul.f32 %v1890, %v1954
  %1979 = vrot.lane.b32.xlu0 %v1963, 16
  %v1980 = vpop.permute.xlu0 %1979
  %1981 = vrot.lane.b32.xlu0 %v1964, 16
  %v1982 = vpop.permute.xlu0 %1981
  %1983 = vrot.lane.b32.xlu0 %v1965, 16
  %v1984 = vpop.permute.xlu0 %1983
  %1985 = vrot.lane.b32.xlu0 %v1966, 16
  %v1986 = vpop.permute.xlu0 %1985
  %1987 = vrot.lane.b32.xlu0 %v1967, 16
  %v1988 = vpop.permute.xlu0 %1987
  %1989 = vrot.lane.b32.xlu0 %v1968, 16
  %v1990 = vpop.permute.xlu0 %1989
  %1991 = vrot.lane.b32.xlu0 %v1969, 16
  %v1992 = vpop.permute.xlu0 %1991
  %1993 = vrot.lane.b32.xlu0 %v1970, 16
  %v1994 = vpop.permute.xlu0 %1993
  %v2003 = vadd.f32 %v1923, %v1980
  %v2004 = vadd.f32 %v1924, %v1982
  %v2005 = vadd.f32 %v1925, %v1984
  %v2006 = vadd.f32 %v1926, %v1986
  %v2007 = vadd.f32 %v1927, %v1988
  %v2008 = vadd.f32 %v1928, %v1990
  %v2009 = vadd.f32 %v1929, %v1992
  %v2010 = vadd.f32 %v1930, %v1994
  %v2011 = vtanh.pop %v2003
  %v2012 = vtanh.pop %v2004
  %v2013 = vtanh.pop %v2005
  %v2014 = vtanh.pop %v2006
  %v2015 = vtanh.pop %v2007
  %v2016 = vtanh.pop %v2008
  %v2017 = vtanh.pop %v2009
  %v2018 = vtanh.pop %v2010
  %2027 = vrot.lane.b32.xlu0 %v2011, 16
  %v2028 = vpop.permute.xlu0 %2027
  %2029 = vrot.lane.b32.xlu0 %v2012, 16
  %v2030 = vpop.permute.xlu0 %2029
  %2031 = vrot.lane.b32.xlu0 %v2013, 16
  %v2032 = vpop.permute.xlu0 %2031
  %2033 = vrot.lane.b32.xlu0 %v2014, 16
  %v2034 = vpop.permute.xlu0 %2033
  %2035 = vrot.lane.b32.xlu0 %v2015, 16
  %v2036 = vpop.permute.xlu0 %2035
  %2037 = vrot.lane.b32.xlu0 %v2016, 16
  %v2038 = vpop.permute.xlu0 %2037
  %2039 = vrot.lane.b32.xlu0 %v2017, 16
  %v2040 = vpop.permute.xlu0 %2039
  %2041 = vrot.lane.b32.xlu0 %v2018, 16
  %v2042 = vpop.permute.xlu0 %2041
  %v2051 = vmul.f32 %v1876, %v2028
  %v2052 = vmul.f32 %v1878, %v2030
  %v2053 = vmul.f32 %v1880, %v2032
  %v2054 = vmul.f32 %v1882, %v2034
  %v2055 = vmul.f32 %v1884, %v2036
  %v2056 = vmul.f32 %v1886, %v2038
  %v2057 = vmul.f32 %v1888, %v2040
  %v2058 = vmul.f32 %v1890, %v2042
  %v2067 = vrot.slane %v2051, 4
  %v2068 = vrot.slane %v2052, 3
  %v2069 = vsel %vm318, %v2068, %v2067
  %v2070 = vrot.slane %v2053, 2
  %v2071 = vsel %vm321, %v2070, %v2069
  %v2072 = vrot.slane %v2054, 1
  %v2073 = vsel %vm324, %v2072, %v2071
  %v2074 = vsel %vm327, %v2055, %v2073
  %v2075 = vrot.slane %v2056, 7
  %v2076 = vsel %vm330, %v2075, %v2074
  %v2077 = vrot.slane %v2057, 6
  %v2078 = vsel %vm333, %v2077, %v2076
  %v2079 = vrot.slane %v2058, 5
  %v2080 = vsel %vm336, %v2079, %v2078
  %2081 = vrot.lane.b32.xlu0 %v2080, 96
  %v2082 = vpop.permute.xlu0 %2081
  %v2083 = vsel %vm340, %v2082, 0
  %2085 = vmatprep.subr.mxu0 0.0
  %2086 = vmatpush1.msra.mxu0 0.0
  %2087 = vmatprep.subr.mxu0 0.0
  %2088 = vmatpush1.msra.mxu0 0.0
  %2089 = vmatprep.subr.mxu0 0.0
  %2090 = vmatpush1.msra.mxu0 0.0
  %2091 = vmatprep.subr.mxu0 0.0
  %2092 = vmatpush1.msra.mxu0 0.0
  %2093 = vmatprep.subr.mxu0 0.0
  %2094 = vmatpush1.msra.mxu0 0.0
  %2095 = vmatprep.subr.mxu0 0.0
  %2096 = vmatpush1.msra.mxu0 0.0
  %2097 = vmatprep.subr.mxu0 0.0
  %2098 = vmatpush1.msra.mxu0 0.0
  %2099 = vmatprep.subr.mxu0 0.0
  %2100 = vmatpush1.msra.mxu0 0.0
  %2101 = vmatprep.subr.mxu0 0.0
  %2102 = vmatpush1.msra.mxu0 0.0
  %2103 = vmatprep.subr.mxu0 0.0
  %2104 = vmatpush1.msra.mxu0 0.0
  %2105 = vmatprep.subr.mxu0 0.0
  %2106 = vmatpush1.msra.mxu0 0.0
  %2107 = vmatprep.subr.mxu0 0.0
  %2108 = vmatpush1.msra.mxu0 0.0
  %2109 = vmatprep.subr.mxu0 0.0
  %2110 = vmatpush1.msra.mxu0 0.0
  %2111 = vmatprep.subr.mxu0 0.0
  %2112 = vmatpush1.msra.mxu0 0.0
  %2113 = vmatprep.subr.mxu0 0.0
  %2114 = vmatpush1.msra.mxu0 %v32
  %2115 = vmatprep.subr.mxu0 0.0
  %2116 = vmatpush1.msra.mxu0 %v31
  %2117 = vmatprep.subr.mxu0 0.0
  %2118 = vmatpush2.msra.mxu0 0.0
  %2119 = vmatprep.subr.mxu0 0.0
  %2120 = vmatpush2.msra.mxu0 0.0
  %2121 = vmatprep.subr.mxu0 0.0
  %2122 = vmatpush2.msra.mxu0 0.0
  %2123 = vmatprep.subr.mxu0 0.0
  %2124 = vmatpush2.msra.mxu0 0.0
  %2125 = vmatprep.subr.mxu0 0.0
  %2126 = vmatpush2.msra.mxu0 0.0
  %2127 = vmatprep.subr.mxu0 0.0
  %2128 = vmatpush2.msra.mxu0 0.0
  %2129 = vmatprep.subr.mxu0 0.0
  %2130 = vmatpush2.msra.mxu0 0.0
  %2131 = vmatprep.subr.mxu0 0.0
  %2132 = vmatpush2.msra.mxu0 0.0
  %2133 = vmatprep.subr.mxu0 0.0
  %2134 = vmatpush2.msra.mxu0 0.0
  %2135 = vmatprep.subr.mxu0 0.0
  %2136 = vmatpush2.msra.mxu0 0.0
  %2137 = vmatprep.subr.mxu0 0.0
  %2138 = vmatpush2.msra.mxu0 0.0
  %2139 = vmatprep.subr.mxu0 0.0
  %2140 = vmatpush2.msra.mxu0 0.0
  %2141 = vmatprep.subr.mxu0 0.0
  %2142 = vmatpush2.msra.mxu0 0.0
  %2143 = vmatprep.subr.mxu0 0.0
  %2144 = vmatpush2.msra.mxu0 0.0
  %2145 = vmatprep.subr.mxu0 0.0
  %2146 = vmatpush2.msra.mxu0 0.0
  %2147 = vmatprep.subr.mxu0 0.0
  %2148 = vmatpush2.msra.mxu0 0.0
  %2149 = vmatprep.mubr.f32.mxu0 0.0
  %2150 = vmatmul.mubr.f32.gmra.mxu0 %v2083
  %v2151 = vpop.f32.mrf.mxu0
  %v2152 = vadd.f32 0.0, %v2151
  %v2153 = vpop.f32.mrf.mxu0
  %2154 = vdwg.mxu0
  %2156 = vrot.lane.b32.xlu0 %v1802, 96
  %v2157 = vpop.permute.xlu0 %2156
  %v2158 = vsel %vm340, %v2157, 0
  %2160 = vmatprep.subr.mxu0 0.0
  %2161 = vmatpush1.msra.mxu0 0.0
  %2162 = vmatprep.subr.mxu0 0.0
  %2163 = vmatpush1.msra.mxu0 0.0
  %2164 = vmatprep.subr.mxu0 0.0
  %2165 = vmatpush1.msra.mxu0 0.0
  %2166 = vmatprep.subr.mxu0 0.0
  %2167 = vmatpush1.msra.mxu0 0.0
  %2168 = vmatprep.subr.mxu0 0.0
  %2169 = vmatpush1.msra.mxu0 0.0
  %2170 = vmatprep.subr.mxu0 0.0
  %2171 = vmatpush1.msra.mxu0 0.0
  %2172 = vmatprep.subr.mxu0 0.0
  %2173 = vmatpush1.msra.mxu0 0.0
  %2174 = vmatprep.subr.mxu0 0.0
  %2175 = vmatpush1.msra.mxu0 0.0
  %2176 = vmatprep.subr.mxu0 0.0
  %2177 = vmatpush1.msra.mxu0 0.0
  %2178 = vmatprep.subr.mxu0 0.0
  %2179 = vmatpush1.msra.mxu0 0.0
  %2180 = vmatprep.subr.mxu0 0.0
  %2181 = vmatpush1.msra.mxu0 0.0
  %2182 = vmatprep.subr.mxu0 0.0
  %2183 = vmatpush1.msra.mxu0 0.0
  %2184 = vmatprep.subr.mxu0 0.0
  %2185 = vmatpush1.msra.mxu0 0.0
  %2186 = vmatprep.subr.mxu0 0.0
  %2187 = vmatpush1.msra.mxu0 0.0
  %2188 = vmatprep.subr.mxu0 0.0
  %2189 = vmatpush1.msra.mxu0 %v34
  %2190 = vmatprep.subr.mxu0 0.0
  %2191 = vmatpush1.msra.mxu0 %v33
  %2192 = vmatprep.subr.mxu0 0.0
  %2193 = vmatpush2.msra.mxu0 0.0
  %2194 = vmatprep.subr.mxu0 0.0
  %2195 = vmatpush2.msra.mxu0 0.0
  %2196 = vmatprep.subr.mxu0 0.0
  %2197 = vmatpush2.msra.mxu0 0.0
  %2198 = vmatprep.subr.mxu0 0.0
  %2199 = vmatpush2.msra.mxu0 0.0
  %2200 = vmatprep.subr.mxu0 0.0
  %2201 = vmatpush2.msra.mxu0 0.0
  %2202 = vmatprep.subr.mxu0 0.0
  %2203 = vmatpush2.msra.mxu0 0.0
  %2204 = vmatprep.subr.mxu0 0.0
  %2205 = vmatpush2.msra.mxu0 0.0
  %2206 = vmatprep.subr.mxu0 0.0
  %2207 = vmatpush2.msra.mxu0 0.0
  %2208 = vmatprep.subr.mxu0 0.0
  %2209 = vmatpush2.msra.mxu0 0.0
  %2210 = vmatprep.subr.mxu0 0.0
  %2211 = vmatpush2.msra.mxu0 0.0
  %2212 = vmatprep.subr.mxu0 0.0
  %2213 = vmatpush2.msra.mxu0 0.0
  %2214 = vmatprep.subr.mxu0 0.0
  %2215 = vmatpush2.msra.mxu0 0.0
  %2216 = vmatprep.subr.mxu0 0.0
  %2217 = vmatpush2.msra.mxu0 0.0
  %2218 = vmatprep.subr.mxu0 0.0
  %2219 = vmatpush2.msra.mxu0 0.0
  %2220 = vmatprep.subr.mxu0 0.0
  %2221 = vmatpush2.msra.mxu0 0.0
  %2222 = vmatprep.subr.mxu0 0.0
  %2223 = vmatpush2.msra.mxu0 0.0
  %2224 = vmatprep.mubr.f32.mxu0 0.0
  %2225 = vmatmul.mubr.f32.gmra.mxu0 %v2158
  %v2226 = vpop.f32.mrf.mxu0
  %v2227 = vadd.f32 0.0, %v2226
  %v2228 = vpop.f32.mrf.mxu0
  %2229 = vdwg.mxu0
  %v2230 = vadd.f32 %v2152, %v2227
  %v2231 = vadd.f32 %v2230, %v417
  %v2232 = vxor.u32 %v2231, 2147483648
  %v2233 = vmul.f32 %v2232, 1.442695
  %v2234 = vpow.pop %v2233
  %v2235 = vadd.f32 %v2234, 1.0
  %v2236 = vrcp.pop %v2235
  %v2237 = vmul.f32 1.0, %v2236
  %v2238 = vtanh.pop %v2231
  %v2239 = vmul.f32 %v2237, %v1796
  %2241 = vrot.lane.b32.xlu0 %v2238, 80
  %v2242 = vpop.permute.xlu0 %2241
  %v2244 = vmul.f32 %v2237, %v2242
  %2246 = vrot.lane.b32.xlu0 %v2244, 16
  %v2247 = vpop.permute.xlu0 %2246
  %v2249 = vadd.f32 %v2239, %v2247
  %v2250 = vtanh.pop %v2249
  %2252 = vrot.lane.b32.xlu0 %v2250, 16
  %v2253 = vpop.permute.xlu0 %2252
  %v2255 = vmul.f32 %v2237, %v2253
  %v2257 = vrot.slane %v2152, 3
  %v2258 = vrot.slane %v2152, 4
  %v2259 = vrot.slane %v2152, 5
  %v2260 = vrot.slane %v2152, 6
  %v2261 = vrot.slane %v2152, 7
  %v2262 = vrot.slane %v2152, 1
  %v2263 = vrot.slane %v2152, 2
  %2264 = vrot.lane.b32.xlu0 %v2257, 64
  %v2265 = vpop.permute.xlu0 %2264
  %2266 = vrot.lane.b32.xlu0 %v2258, 64
  %v2267 = vpop.permute.xlu0 %2266
  %2268 = vrot.lane.b32.xlu0 %v2259, 64
  %v2269 = vpop.permute.xlu0 %2268
  %2270 = vrot.lane.b32.xlu0 %v2260, 64
  %v2271 = vpop.permute.xlu0 %2270
  %2272 = vrot.lane.b32.xlu0 %v2261, 64
  %v2273 = vpop.permute.xlu0 %2272
  %2274 = vrot.lane.b32.xlu0 %v2152, 64
  %v2275 = vpop.permute.xlu0 %2274
  %2276 = vrot.lane.b32.xlu0 %v2262, 64
  %v2277 = vpop.permute.xlu0 %2276
  %2278 = vrot.lane.b32.xlu0 %v2263, 64
  %v2279 = vpop.permute.xlu0 %2278
  %v2288 = vadd.f32 %v109, %v2265
  %v2289 = vadd.f32 %v110, %v2267
  %v2290 = vadd.f32 %v111, %v2269
  %v2291 = vadd.f32 %v112, %v2271
  %v2292 = vadd.f32 %v113, %v2273
  %v2293 = vadd.f32 %v114, %v2275
  %v2294 = vadd.f32 %v115, %v2277
  %v2295 = vadd.f32 %v116, %v2279
  %v2296 = vxor.u32 %v2288, 2147483648
  %v2297 = vxor.u32 %v2289, 2147483648
  %v2298 = vxor.u32 %v2290, 2147483648
  %v2299 = vxor.u32 %v2291, 2147483648
  %v2300 = vxor.u32 %v2292, 2147483648
  %v2301 = vxor.u32 %v2293, 2147483648
  %v2302 = vxor.u32 %v2294, 2147483648
  %v2303 = vxor.u32 %v2295, 2147483648
  %v2304 = vmul.f32 %v2296, 1.442695
  %v2305 = vpow.pop %v2304
  %v2306 = vmul.f32 %v2297, 1.442695
  %v2307 = vpow.pop %v2306
  %v2308 = vmul.f32 %v2298, 1.442695
  %v2309 = vpow.pop %v2308
  %v2310 = vmul.f32 %v2299, 1.442695
  %v2311 = vpow.pop %v2310
  %v2312 = vmul.f32 %v2300, 1.442695
  %v2313 = vpow.pop %v2312
  %v2314 = vmul.f32 %v2301, 1.442695
  %v2315 = vpow.pop %v2314
  %v2316 = vmul.f32 %v2302, 1.442695
  %v2317 = vpow.pop %v2316
  %v2318 = vmul.f32 %v2303, 1.442695
  %v2319 = vpow.pop %v2318
  %v2320 = vadd.f32 %v2305, 1.0
  %v2321 = vadd.f32 %v2307, 1.0
  %v2322 = vadd.f32 %v2309, 1.0
  %v2323 = vadd.f32 %v2311, 1.0
  %v2324 = vadd.f32 %v2313, 1.0
  %v2325 = vadd.f32 %v2315, 1.0
  %v2326 = vadd.f32 %v2317, 1.0
  %v2327 = vadd.f32 %v2319, 1.0
  %v2328 = vrcp.pop %v2320
  %v2329 = vmul.f32 1.0, %v2328
  %v2330 = vrcp.pop %v2321
  %v2331 = vmul.f32 1.0, %v2330
  %v2332 = vrcp.pop %v2322
  %v2333 = vmul.f32 1.0, %v2332
  %v2334 = vrcp.pop %v2323
  %v2335 = vmul.f32 1.0, %v2334
  %v2336 = vrcp.pop %v2324
  %v2337 = vmul.f32 1.0, %v2336
  %v2338 = vrcp.pop %v2325
  %v2339 = vmul.f32 1.0, %v2338
  %v2340 = vrcp.pop %v2326
  %v2341 = vmul.f32 1.0, %v2340
  %v2342 = vrcp.pop %v2327
  %v2343 = vmul.f32 1.0, %v2342
  %v2344 = vtanh.pop %v2288
  %v2345 = vtanh.pop %v2289
  %v2346 = vtanh.pop %v2290
  %v2347 = vtanh.pop %v2291
  %v2348 = vtanh.pop %v2292
  %v2349 = vtanh.pop %v2293
  %v2350 = vtanh.pop %v2294
  %v2351 = vtanh.pop %v2295
  %v2360 = vrot.slane %v2003, 7
  %v2361 = vrot.slane %v2004, 7
  %v2362 = vrot.slane %v2005, 7
  %v2363 = vrot.slane %v2006, 7
  %v2364 = vrot.slane %v2007, 7
  %v2365 = vrot.slane %v2008, 7
  %v2366 = vrot.slane %v2009, 7
  %v2367 = vrot.slane %v2010, 7
  %v2376 = vmul.f32 %v2329, %v2360
  %v2377 = vmul.f32 %v2331, %v2361
  %v2378 = vmul.f32 %v2333, %v2362
  %v2379 = vmul.f32 %v2335, %v2363
  %v2380 = vmul.f32 %v2337, %v2364
  %v2381 = vmul.f32 %v2339, %v2365
  %v2382 = vmul.f32 %v2341, %v2366
  %v2383 = vmul.f32 %v2343, %v2367
  %2392 = vrot.lane.b32.xlu0 %v2344, 80
  %v2393 = vpop.permute.xlu0 %2392
  %2394 = vrot.lane.b32.xlu0 %v2345, 80
  %v2395 = vpop.permute.xlu0 %2394
  %2396 = vrot.lane.b32.xlu0 %v2346, 80
  %v2397 = vpop.permute.xlu0 %2396
  %2398 = vrot.lane.b32.xlu0 %v2347, 80
  %v2399 = vpop.permute.xlu0 %2398
  %2400 = vrot.lane.b32.xlu0 %v2348, 80
  %v2401 = vpop.permute.xlu0 %2400
  %2402 = vrot.lane.b32.xlu0 %v2349, 80
  %v2403 = vpop.permute.xlu0 %2402
  %2404 = vrot.lane.b32.xlu0 %v2350, 80
  %v2405 = vpop.permute.xlu0 %2404
  %2406 = vrot.lane.b32.xlu0 %v2351, 80
  %v2407 = vpop.permute.xlu0 %2406
  %v2416 = vmul.f32 %v2329, %v2393
  %v2417 = vmul.f32 %v2331, %v2395
  %v2418 = vmul.f32 %v2333, %v2397
  %v2419 = vmul.f32 %v2335, %v2399
  %v2420 = vmul.f32 %v2337, %v2401
  %v2421 = vmul.f32 %v2339, %v2403
  %v2422 = vmul.f32 %v2341, %v2405
  %v2423 = vmul.f32 %v2343, %v2407
  %2432 = vrot.lane.b32.xlu0 %v2416, 16
  %v2433 = vpop.permute.xlu0 %2432
  %2434 = vrot.lane.b32.xlu0 %v2417, 16
  %v2435 = vpop.permute.xlu0 %2434
  %2436 = vrot.lane.b32.xlu0 %v2418, 16
  %v2437 = vpop.permute.xlu0 %2436
  %2438 = vrot.lane.b32.xlu0 %v2419, 16
  %v2439 = vpop.permute.xlu0 %2438
  %2440 = vrot.lane.b32.xlu0 %v2420, 16
  %v2441 = vpop.permute.xlu0 %2440
  %2442 = vrot.lane.b32.xlu0 %v2421, 16
  %v2443 = vpop.permute.xlu0 %2442
  %2444 = vrot.lane.b32.xlu0 %v2422, 16
  %v2445 = vpop.permute.xlu0 %2444
  %2446 = vrot.lane.b32.xlu0 %v2423, 16
  %v2447 = vpop.permute.xlu0 %2446
  %v2456 = vadd.f32 %v2376, %v2433
  %v2457 = vadd.f32 %v2377, %v2435
  %v2458 = vadd.f32 %v2378, %v2437
  %v2459 = vadd.f32 %v2379, %v2439
  %v2460 = vadd.f32 %v2380, %v2441
  %v2461 = vadd.f32 %v2381, %v2443
  %v2462 = vadd.f32 %v2382, %v2445
  %v2463 = vadd.f32 %v2383, %v2447
  %v2464 = vtanh.pop %v2456
  %v2465 = vtanh.pop %v2457
  %v2466 = vtanh.pop %v2458
  %v2467 = vtanh.pop %v2459
  %v2468 = vtanh.pop %v2460
  %v2469 = vtanh.pop %v2461
  %v2470 = vtanh.pop %v2462
  %v2471 = vtanh.pop %v2463
  %2480 = vrot.lane.b32.xlu0 %v2464, 16
  %v2481 = vpop.permute.xlu0 %2480
  %2482 = vrot.lane.b32.xlu0 %v2465, 16
  %v2483 = vpop.permute.xlu0 %2482
  %2484 = vrot.lane.b32.xlu0 %v2466, 16
  %v2485 = vpop.permute.xlu0 %2484
  %2486 = vrot.lane.b32.xlu0 %v2467, 16
  %v2487 = vpop.permute.xlu0 %2486
  %2488 = vrot.lane.b32.xlu0 %v2468, 16
  %v2489 = vpop.permute.xlu0 %2488
  %2490 = vrot.lane.b32.xlu0 %v2469, 16
  %v2491 = vpop.permute.xlu0 %2490
  %2492 = vrot.lane.b32.xlu0 %v2470, 16
  %v2493 = vpop.permute.xlu0 %2492
  %2494 = vrot.lane.b32.xlu0 %v2471, 16
  %v2495 = vpop.permute.xlu0 %2494
  %v2504 = vmul.f32 %v2329, %v2481
  %v2505 = vmul.f32 %v2331, %v2483
  %v2506 = vmul.f32 %v2333, %v2485
  %v2507 = vmul.f32 %v2335, %v2487
  %v2508 = vmul.f32 %v2337, %v2489
  %v2509 = vmul.f32 %v2339, %v2491
  %v2510 = vmul.f32 %v2341, %v2493
  %v2511 = vmul.f32 %v2343, %v2495
  %v2520 = vrot.slane %v2504, 5
  %v2521 = vrot.slane %v2505, 4
  %v2522 = vsel %vm318, %v2521, %v2520
  %v2523 = vrot.slane %v2506, 3
  %v2524 = vsel %vm321, %v2523, %v2522
  %v2525 = vrot.slane %v2507, 2
  %v2526 = vsel %vm324, %v2525, %v2524
  %v2527 = vrot.slane %v2508, 1
  %v2528 = vsel %vm327, %v2527, %v2526
  %v2529 = vsel %vm330, %v2509, %v2528
  %v2530 = vrot.slane %v2510, 7
  %v2531 = vsel %vm333, %v2530, %v2529
  %v2532 = vrot.slane %v2511, 6
  %v2533 = vsel %vm336, %v2532, %v2531
  %2534 = vrot.lane.b32.xlu0 %v2533, 96
  %v2535 = vpop.permute.xlu0 %2534
  %v2536 = vsel %vm340, %v2535, 0
  %2538 = vmatprep.subr.mxu0 0.0
  %2539 = vmatpush1.msra.mxu0 0.0
  %2540 = vmatprep.subr.mxu0 0.0
  %2541 = vmatpush1.msra.mxu0 0.0
  %2542 = vmatprep.subr.mxu0 0.0
  %2543 = vmatpush1.msra.mxu0 0.0
  %2544 = vmatprep.subr.mxu0 0.0
  %2545 = vmatpush1.msra.mxu0 0.0
  %2546 = vmatprep.subr.mxu0 0.0
  %2547 = vmatpush1.msra.mxu0 0.0
  %2548 = vmatprep.subr.mxu0 0.0
  %2549 = vmatpush1.msra.mxu0 0.0
  %2550 = vmatprep.subr.mxu0 0.0
  %2551 = vmatpush1.msra.mxu0 0.0
  %2552 = vmatprep.subr.mxu0 0.0
  %2553 = vmatpush1.msra.mxu0 0.0
  %2554 = vmatprep.subr.mxu0 0.0
  %2555 = vmatpush1.msra.mxu0 0.0
  %2556 = vmatprep.subr.mxu0 0.0
  %2557 = vmatpush1.msra.mxu0 0.0
  %2558 = vmatprep.subr.mxu0 0.0
  %2559 = vmatpush1.msra.mxu0 0.0
  %2560 = vmatprep.subr.mxu0 0.0
  %2561 = vmatpush1.msra.mxu0 0.0
  %2562 = vmatprep.subr.mxu0 0.0
  %2563 = vmatpush1.msra.mxu0 0.0
  %2564 = vmatprep.subr.mxu0 0.0
  %2565 = vmatpush1.msra.mxu0 0.0
  %2566 = vmatprep.subr.mxu0 0.0
  %2567 = vmatpush1.msra.mxu0 %v32
  %2568 = vmatprep.subr.mxu0 0.0
  %2569 = vmatpush1.msra.mxu0 %v31
  %2570 = vmatprep.subr.mxu0 0.0
  %2571 = vmatpush2.msra.mxu0 0.0
  %2572 = vmatprep.subr.mxu0 0.0
  %2573 = vmatpush2.msra.mxu0 0.0
  %2574 = vmatprep.subr.mxu0 0.0
  %2575 = vmatpush2.msra.mxu0 0.0
  %2576 = vmatprep.subr.mxu0 0.0
  %2577 = vmatpush2.msra.mxu0 0.0
  %2578 = vmatprep.subr.mxu0 0.0
  %2579 = vmatpush2.msra.mxu0 0.0
  %2580 = vmatprep.subr.mxu0 0.0
  %2581 = vmatpush2.msra.mxu0 0.0
  %2582 = vmatprep.subr.mxu0 0.0
  %2583 = vmatpush2.msra.mxu0 0.0
  %2584 = vmatprep.subr.mxu0 0.0
  %2585 = vmatpush2.msra.mxu0 0.0
  %2586 = vmatprep.subr.mxu0 0.0
  %2587 = vmatpush2.msra.mxu0 0.0
  %2588 = vmatprep.subr.mxu0 0.0
  %2589 = vmatpush2.msra.mxu0 0.0
  %2590 = vmatprep.subr.mxu0 0.0
  %2591 = vmatpush2.msra.mxu0 0.0
  %2592 = vmatprep.subr.mxu0 0.0
  %2593 = vmatpush2.msra.mxu0 0.0
  %2594 = vmatprep.subr.mxu0 0.0
  %2595 = vmatpush2.msra.mxu0 0.0
  %2596 = vmatprep.subr.mxu0 0.0
  %2597 = vmatpush2.msra.mxu0 0.0
  %2598 = vmatprep.subr.mxu0 0.0
  %2599 = vmatpush2.msra.mxu0 0.0
  %2600 = vmatprep.subr.mxu0 0.0
  %2601 = vmatpush2.msra.mxu0 0.0
  %2602 = vmatprep.mubr.f32.mxu0 0.0
  %2603 = vmatmul.mubr.f32.gmra.mxu0 %v2536
  %v2604 = vpop.f32.mrf.mxu0
  %v2605 = vadd.f32 0.0, %v2604
  %v2606 = vpop.f32.mrf.mxu0
  %2607 = vdwg.mxu0
  %2609 = vrot.lane.b32.xlu0 %v2255, 96
  %v2610 = vpop.permute.xlu0 %2609
  %v2611 = vsel %vm340, %v2610, 0
  %2613 = vmatprep.subr.mxu0 0.0
  %2614 = vmatpush1.msra.mxu0 0.0
  %2615 = vmatprep.subr.mxu0 0.0
  %2616 = vmatpush1.msra.mxu0 0.0
  %2617 = vmatprep.subr.mxu0 0.0
  %2618 = vmatpush1.msra.mxu0 0.0
  %2619 = vmatprep.subr.mxu0 0.0
  %2620 = vmatpush1.msra.mxu0 0.0
  %2621 = vmatprep.subr.mxu0 0.0
  %2622 = vmatpush1.msra.mxu0 0.0
  %2623 = vmatprep.subr.mxu0 0.0
  %2624 = vmatpush1.msra.mxu0 0.0
  %2625 = vmatprep.subr.mxu0 0.0
  %2626 = vmatpush1.msra.mxu0 0.0
  %2627 = vmatprep.subr.mxu0 0.0
  %2628 = vmatpush1.msra.mxu0 0.0
  %2629 = vmatprep.subr.mxu0 0.0
  %2630 = vmatpush1.msra.mxu0 0.0
  %2631 = vmatprep.subr.mxu0 0.0
  %2632 = vmatpush1.msra.mxu0 0.0
  %2633 = vmatprep.subr.mxu0 0.0
  %2634 = vmatpush1.msra.mxu0 0.0
  %2635 = vmatprep.subr.mxu0 0.0
  %2636 = vmatpush1.msra.mxu0 0.0
  %2637 = vmatprep.subr.mxu0 0.0
  %2638 = vmatpush1.msra.mxu0 0.0
  %2639 = vmatprep.subr.mxu0 0.0
  %2640 = vmatpush1.msra.mxu0 0.0
  %2641 = vmatprep.subr.mxu0 0.0
  %2642 = vmatpush1.msra.mxu0 %v34
  %2643 = vmatprep.subr.mxu0 0.0
  %2644 = vmatpush1.msra.mxu0 %v33
  %2645 = vmatprep.subr.mxu0 0.0
  %2646 = vmatpush2.msra.mxu0 0.0
  %2647 = vmatprep.subr.mxu0 0.0
  %2648 = vmatpush2.msra.mxu0 0.0
  %2649 = vmatprep.subr.mxu0 0.0
  %2650 = vmatpush2.msra.mxu0 0.0
  %2651 = vmatprep.subr.mxu0 0.0
  %2652 = vmatpush2.msra.mxu0 0.0
  %2653 = vmatprep.subr.mxu0 0.0
  %2654 = vmatpush2.msra.mxu0 0.0
  %2655 = vmatprep.subr.mxu0 0.0
  %2656 = vmatpush2.msra.mxu0 0.0
  %2657 = vmatprep.subr.mxu0 0.0
  %2658 = vmatpush2.msra.mxu0 0.0
  %2659 = vmatprep.subr.mxu0 0.0
  %2660 = vmatpush2.msra.mxu0 0.0
  %2661 = vmatprep.subr.mxu0 0.0
  %2662 = vmatpush2.msra.mxu0 0.0
  %2663 = vmatprep.subr.mxu0 0.0
  %2664 = vmatpush2.msra.mxu0 0.0
  %2665 = vmatprep.subr.mxu0 0.0
  %2666 = vmatpush2.msra.mxu0 0.0
  %2667 = vmatprep.subr.mxu0 0.0
  %2668 = vmatpush2.msra.mxu0 0.0
  %2669 = vmatprep.subr.mxu0 0.0
  %2670 = vmatpush2.msra.mxu0 0.0
  %2671 = vmatprep.subr.mxu0 0.0
  %2672 = vmatpush2.msra.mxu0 0.0
  %2673 = vmatprep.subr.mxu0 0.0
  %2674 = vmatpush2.msra.mxu0 0.0
  %2675 = vmatprep.subr.mxu0 0.0
  %2676 = vmatpush2.msra.mxu0 0.0
  %2677 = vmatprep.mubr.f32.mxu0 0.0
  %2678 = vmatmul.mubr.f32.gmra.mxu0 %v2611
  %v2679 = vpop.f32.mrf.mxu0
  %v2680 = vadd.f32 0.0, %v2679
  %v2681 = vpop.f32.mrf.mxu0
  %2682 = vdwg.mxu0
  %v2683 = vadd.f32 %v2605, %v2680
  %v2684 = vadd.f32 %v2683, %v417
  %v2685 = vxor.u32 %v2684, 2147483648
  %v2686 = vmul.f32 %v2685, 1.442695
  %v2687 = vpow.pop %v2686
  %v2688 = vadd.f32 %v2687, 1.0
  %v2689 = vrcp.pop %v2688
  %v2690 = vmul.f32 1.0, %v2689
  %v2691 = vtanh.pop %v2684
  %v2692 = vmul.f32 %v2690, %v2249
  %2694 = vrot.lane.b32.xlu0 %v2691, 80
  %v2695 = vpop.permute.xlu0 %2694
  %v2697 = vmul.f32 %v2690, %v2695
  %2699 = vrot.lane.b32.xlu0 %v2697, 16
  %v2700 = vpop.permute.xlu0 %2699
  %v2702 = vadd.f32 %v2692, %v2700
  %v2703 = vtanh.pop %v2702
  %2705 = vrot.lane.b32.xlu0 %v2703, 16
  %v2706 = vpop.permute.xlu0 %2705
  %v2708 = vmul.f32 %v2690, %v2706
  %v2710 = vrot.slane %v2605, 2
  %v2711 = vrot.slane %v2605, 3
  %v2712 = vrot.slane %v2605, 4
  %v2713 = vrot.slane %v2605, 5
  %v2714 = vrot.slane %v2605, 6
  %v2715 = vrot.slane %v2605, 7
  %v2716 = vrot.slane %v2605, 1
  %2717 = vrot.lane.b32.xlu0 %v2710, 64
  %v2718 = vpop.permute.xlu0 %2717
  %2719 = vrot.lane.b32.xlu0 %v2711, 64
  %v2720 = vpop.permute.xlu0 %2719
  %2721 = vrot.lane.b32.xlu0 %v2712, 64
  %v2722 = vpop.permute.xlu0 %2721
  %2723 = vrot.lane.b32.xlu0 %v2713, 64
  %v2724 = vpop.permute.xlu0 %2723
  %2725 = vrot.lane.b32.xlu0 %v2714, 64
  %v2726 = vpop.permute.xlu0 %2725
  %2727 = vrot.lane.b32.xlu0 %v2715, 64
  %v2728 = vpop.permute.xlu0 %2727
  %2729 = vrot.lane.b32.xlu0 %v2605, 64
  %v2730 = vpop.permute.xlu0 %2729
  %2731 = vrot.lane.b32.xlu0 %v2716, 64
  %v2732 = vpop.permute.xlu0 %2731
  %v2741 = vadd.f32 %v109, %v2718
  %v2742 = vadd.f32 %v110, %v2720
  %v2743 = vadd.f32 %v111, %v2722
  %v2744 = vadd.f32 %v112, %v2724
  %v2745 = vadd.f32 %v113, %v2726
  %v2746 = vadd.f32 %v114, %v2728
  %v2747 = vadd.f32 %v115, %v2730
  %v2748 = vadd.f32 %v116, %v2732
  %v2749 = vxor.u32 %v2741, 2147483648
  %v2750 = vxor.u32 %v2742, 2147483648
  %v2751 = vxor.u32 %v2743, 2147483648
  %v2752 = vxor.u32 %v2744, 2147483648
  %v2753 = vxor.u32 %v2745, 2147483648
  %v2754 = vxor.u32 %v2746, 2147483648
  %v2755 = vxor.u32 %v2747, 2147483648
  %v2756 = vxor.u32 %v2748, 2147483648
  %v2757 = vmul.f32 %v2749, 1.442695
  %v2758 = vpow.pop %v2757
  %v2759 = vmul.f32 %v2750, 1.442695
  %v2760 = vpow.pop %v2759
  %v2761 = vmul.f32 %v2751, 1.442695
  %v2762 = vpow.pop %v2761
  %v2763 = vmul.f32 %v2752, 1.442695
  %v2764 = vpow.pop %v2763
  %v2765 = vmul.f32 %v2753, 1.442695
  %v2766 = vpow.pop %v2765
  %v2767 = vmul.f32 %v2754, 1.442695
  %v2768 = vpow.pop %v2767
  %v2769 = vmul.f32 %v2755, 1.442695
  %v2770 = vpow.pop %v2769
  %v2771 = vmul.f32 %v2756, 1.442695
  %v2772 = vpow.pop %v2771
  %v2773 = vadd.f32 %v2758, 1.0
  %v2774 = vadd.f32 %v2760, 1.0
  %v2775 = vadd.f32 %v2762, 1.0
  %v2776 = vadd.f32 %v2764, 1.0
  %v2777 = vadd.f32 %v2766, 1.0
  %v2778 = vadd.f32 %v2768, 1.0
  %v2779 = vadd.f32 %v2770, 1.0
  %v2780 = vadd.f32 %v2772, 1.0
  %v2781 = vrcp.pop %v2773
  %v2782 = vmul.f32 1.0, %v2781
  %v2783 = vrcp.pop %v2774
  %v2784 = vmul.f32 1.0, %v2783
  %v2785 = vrcp.pop %v2775
  %v2786 = vmul.f32 1.0, %v2785
  %v2787 = vrcp.pop %v2776
  %v2788 = vmul.f32 1.0, %v2787
  %v2789 = vrcp.pop %v2777
  %v2790 = vmul.f32 1.0, %v2789
  %v2791 = vrcp.pop %v2778
  %v2792 = vmul.f32 1.0, %v2791
  %v2793 = vrcp.pop %v2779
  %v2794 = vmul.f32 1.0, %v2793
  %v2795 = vrcp.pop %v2780
  %v2796 = vmul.f32 1.0, %v2795
  %v2797 = vtanh.pop %v2741
  %v2798 = vtanh.pop %v2742
  %v2799 = vtanh.pop %v2743
  %v2800 = vtanh.pop %v2744
  %v2801 = vtanh.pop %v2745
  %v2802 = vtanh.pop %v2746
  %v2803 = vtanh.pop %v2747
  %v2804 = vtanh.pop %v2748
  %v2813 = vrot.slane %v2456, 7
  %v2814 = vrot.slane %v2457, 7
  %v2815 = vrot.slane %v2458, 7
  %v2816 = vrot.slane %v2459, 7
  %v2817 = vrot.slane %v2460, 7
  %v2818 = vrot.slane %v2461, 7
  %v2819 = vrot.slane %v2462, 7
  %v2820 = vrot.slane %v2463, 7
  %v2829 = vmul.f32 %v2782, %v2813
  %v2830 = vmul.f32 %v2784, %v2814
  %v2831 = vmul.f32 %v2786, %v2815
  %v2832 = vmul.f32 %v2788, %v2816
  %v2833 = vmul.f32 %v2790, %v2817
  %v2834 = vmul.f32 %v2792, %v2818
  %v2835 = vmul.f32 %v2794, %v2819
  %v2836 = vmul.f32 %v2796, %v2820
  %2845 = vrot.lane.b32.xlu0 %v2797, 80
  %v2846 = vpop.permute.xlu0 %2845
  %2847 = vrot.lane.b32.xlu0 %v2798, 80
  %v2848 = vpop.permute.xlu0 %2847
  %2849 = vrot.lane.b32.xlu0 %v2799, 80
  %v2850 = vpop.permute.xlu0 %2849
  %2851 = vrot.lane.b32.xlu0 %v2800, 80
  %v2852 = vpop.permute.xlu0 %2851
  %2853 = vrot.lane.b32.xlu0 %v2801, 80
  %v2854 = vpop.permute.xlu0 %2853
  %2855 = vrot.lane.b32.xlu0 %v2802, 80
  %v2856 = vpop.permute.xlu0 %2855
  %2857 = vrot.lane.b32.xlu0 %v2803, 80
  %v2858 = vpop.permute.xlu0 %2857
  %2859 = vrot.lane.b32.xlu0 %v2804, 80
  %v2860 = vpop.permute.xlu0 %2859
  %v2869 = vmul.f32 %v2782, %v2846
  %v2870 = vmul.f32 %v2784, %v2848
  %v2871 = vmul.f32 %v2786, %v2850
  %v2872 = vmul.f32 %v2788, %v2852
  %v2873 = vmul.f32 %v2790, %v2854
  %v2874 = vmul.f32 %v2792, %v2856
  %v2875 = vmul.f32 %v2794, %v2858
  %v2876 = vmul.f32 %v2796, %v2860
  %2885 = vrot.lane.b32.xlu0 %v2869, 16
  %v2886 = vpop.permute.xlu0 %2885
  %2887 = vrot.lane.b32.xlu0 %v2870, 16
  %v2888 = vpop.permute.xlu0 %2887
  %2889 = vrot.lane.b32.xlu0 %v2871, 16
  %v2890 = vpop.permute.xlu0 %2889
  %2891 = vrot.lane.b32.xlu0 %v2872, 16
  %v2892 = vpop.permute.xlu0 %2891
  %2893 = vrot.lane.b32.xlu0 %v2873, 16
  %v2894 = vpop.permute.xlu0 %2893
  %2895 = vrot.lane.b32.xlu0 %v2874, 16
  %v2896 = vpop.permute.xlu0 %2895
  %2897 = vrot.lane.b32.xlu0 %v2875, 16
  %v2898 = vpop.permute.xlu0 %2897
  %2899 = vrot.lane.b32.xlu0 %v2876, 16
  %v2900 = vpop.permute.xlu0 %2899
  %v2909 = vadd.f32 %v2829, %v2886
  %v2910 = vadd.f32 %v2830, %v2888
  %v2911 = vadd.f32 %v2831, %v2890
  %v2912 = vadd.f32 %v2832, %v2892
  %v2913 = vadd.f32 %v2833, %v2894
  %v2914 = vadd.f32 %v2834, %v2896
  %v2915 = vadd.f32 %v2835, %v2898
  %v2916 = vadd.f32 %v2836, %v2900
  %v2917 = vtanh.pop %v2909
  %v2918 = vtanh.pop %v2910
  %v2919 = vtanh.pop %v2911
  %v2920 = vtanh.pop %v2912
  %v2921 = vtanh.pop %v2913
  %v2922 = vtanh.pop %v2914
  %v2923 = vtanh.pop %v2915
  %v2924 = vtanh.pop %v2916
  %2933 = vrot.lane.b32.xlu0 %v2917, 16
  %v2934 = vpop.permute.xlu0 %2933
  %2935 = vrot.lane.b32.xlu0 %v2918, 16
  %v2936 = vpop.permute.xlu0 %2935
  %2937 = vrot.lane.b32.xlu0 %v2919, 16
  %v2938 = vpop.permute.xlu0 %2937
  %2939 = vrot.lane.b32.xlu0 %v2920, 16
  %v2940 = vpop.permute.xlu0 %2939
  %2941 = vrot.lane.b32.xlu0 %v2921, 16
  %v2942 = vpop.permute.xlu0 %2941
  %2943 = vrot.lane.b32.xlu0 %v2922, 16
  %v2944 = vpop.permute.xlu0 %2943
  %2945 = vrot.lane.b32.xlu0 %v2923, 16
  %v2946 = vpop.permute.xlu0 %2945
  %2947 = vrot.lane.b32.xlu0 %v2924, 16
  %v2948 = vpop.permute.xlu0 %2947
  %v2957 = vmul.f32 %v2782, %v2934
  %v2958 = vmul.f32 %v2784, %v2936
  %v2959 = vmul.f32 %v2786, %v2938
  %v2960 = vmul.f32 %v2788, %v2940
  %v2961 = vmul.f32 %v2790, %v2942
  %v2962 = vmul.f32 %v2792, %v2944
  %v2963 = vmul.f32 %v2794, %v2946
  %v2964 = vmul.f32 %v2796, %v2948
  %v2973 = vrot.slane %v2957, 6
  %v2974 = vrot.slane %v2958, 5
  %v2975 = vsel %vm318, %v2974, %v2973
  %v2976 = vrot.slane %v2959, 4
  %v2977 = vsel %vm321, %v2976, %v2975
  %v2978 = vrot.slane %v2960, 3
  %v2979 = vsel %vm324, %v2978, %v2977
  %v2980 = vrot.slane %v2961, 2
  %v2981 = vsel %vm327, %v2980, %v2979
  %v2982 = vrot.slane %v2962, 1
  %v2983 = vsel %vm330, %v2982, %v2981
  %v2984 = vsel %vm333, %v2963, %v2983
  %v2985 = vrot.slane %v2964, 7
  %v2986 = vsel %vm336, %v2985, %v2984
  %2987 = vrot.lane.b32.xlu0 %v2986, 96
  %v2988 = vpop.permute.xlu0 %2987
  %v2989 = vsel %vm340, %v2988, 0
  %2991 = vmatprep.subr.mxu0 0.0
  %2992 = vmatpush1.msra.mxu0 0.0
  %2993 = vmatprep.subr.mxu0 0.0
  %2994 = vmatpush1.msra.mxu0 0.0
  %2995 = vmatprep.subr.mxu0 0.0
  %2996 = vmatpush1.msra.mxu0 0.0
  %2997 = vmatprep.subr.mxu0 0.0
  %2998 = vmatpush1.msra.mxu0 0.0
  %2999 = vmatprep.subr.mxu0 0.0
  %3000 = vmatpush1.msra.mxu0 0.0
  %3001 = vmatprep.subr.mxu0 0.0
  %3002 = vmatpush1.msra.mxu0 0.0
  %3003 = vmatprep.subr.mxu0 0.0
  %3004 = vmatpush1.msra.mxu0 0.0
  %3005 = vmatprep.subr.mxu0 0.0
  %3006 = vmatpush1.msra.mxu0 0.0
  %3007 = vmatprep.subr.mxu0 0.0
  %3008 = vmatpush1.msra.mxu0 0.0
  %3009 = vmatprep.subr.mxu0 0.0
  %3010 = vmatpush1.msra.mxu0 0.0
  %3011 = vmatprep.subr.mxu0 0.0
  %3012 = vmatpush1.msra.mxu0 0.0
  %3013 = vmatprep.subr.mxu0 0.0
  %3014 = vmatpush1.msra.mxu0 0.0
  %3015 = vmatprep.subr.mxu0 0.0
  %3016 = vmatpush1.msra.mxu0 0.0
  %3017 = vmatprep.subr.mxu0 0.0
  %3018 = vmatpush1.msra.mxu0 0.0
  %3019 = vmatprep.subr.mxu0 0.0
  %3020 = vmatpush1.msra.mxu0 %v32
  %3021 = vmatprep.subr.mxu0 0.0
  %3022 = vmatpush1.msra.mxu0 %v31
  %3023 = vmatprep.subr.mxu0 0.0
  %3024 = vmatpush2.msra.mxu0 0.0
  %3025 = vmatprep.subr.mxu0 0.0
  %3026 = vmatpush2.msra.mxu0 0.0
  %3027 = vmatprep.subr.mxu0 0.0
  %3028 = vmatpush2.msra.mxu0 0.0
  %3029 = vmatprep.subr.mxu0 0.0
  %3030 = vmatpush2.msra.mxu0 0.0
  %3031 = vmatprep.subr.mxu0 0.0
  %3032 = vmatpush2.msra.mxu0 0.0
  %3033 = vmatprep.subr.mxu0 0.0
  %3034 = vmatpush2.msra.mxu0 0.0
  %3035 = vmatprep.subr.mxu0 0.0
  %3036 = vmatpush2.msra.mxu0 0.0
  %3037 = vmatprep.subr.mxu0 0.0
  %3038 = vmatpush2.msra.mxu0 0.0
  %3039 = vmatprep.subr.mxu0 0.0
  %3040 = vmatpush2.msra.mxu0 0.0
  %3041 = vmatprep.subr.mxu0 0.0
  %3042 = vmatpush2.msra.mxu0 0.0
  %3043 = vmatprep.subr.mxu0 0.0
  %3044 = vmatpush2.msra.mxu0 0.0
  %3045 = vmatprep.subr.mxu0 0.0
  %3046 = vmatpush2.msra.mxu0 0.0
  %3047 = vmatprep.subr.mxu0 0.0
  %3048 = vmatpush2.msra.mxu0 0.0
  %3049 = vmatprep.subr.mxu0 0.0
  %3050 = vmatpush2.msra.mxu0 0.0
  %3051 = vmatprep.subr.mxu0 0.0
  %3052 = vmatpush2.msra.mxu0 0.0
  %3053 = vmatprep.subr.mxu0 0.0
  %3054 = vmatpush2.msra.mxu0 0.0
  %3055 = vmatprep.mubr.f32.mxu0 0.0
  %3056 = vmatmul.mubr.f32.gmra.mxu0 %v2989
  %v3057 = vpop.f32.mrf.mxu0
  %v3058 = vadd.f32 0.0, %v3057
  %v3059 = vpop.f32.mrf.mxu0
  %3060 = vdwg.mxu0
  %3062 = vrot.lane.b32.xlu0 %v2708, 96
  %v3063 = vpop.permute.xlu0 %3062
  %v3064 = vsel %vm340, %v3063, 0
  %3066 = vmatprep.subr.mxu0 0.0
  %3067 = vmatpush1.msra.mxu0 0.0
  %3068 = vmatprep.subr.mxu0 0.0
  %3069 = vmatpush1.msra.mxu0 0.0
  %3070 = vmatprep.subr.mxu0 0.0
  %3071 = vmatpush1.msra.mxu0 0.0
  %3072 = vmatprep.subr.mxu0 0.0
  %3073 = vmatpush1.msra.mxu0 0.0
  %3074 = vmatprep.subr.mxu0 0.0
  %3075 = vmatpush1.msra.mxu0 0.0
  %3076 = vmatprep.subr.mxu0 0.0
  %3077 = vmatpush1.msra.mxu0 0.0
  %3078 = vmatprep.subr.mxu0 0.0
  %3079 = vmatpush1.msra.mxu0 0.0
  %3080 = vmatprep.subr.mxu0 0.0
  %3081 = vmatpush1.msra.mxu0 0.0
  %3082 = vmatprep.subr.mxu0 0.0
  %3083 = vmatpush1.msra.mxu0 0.0
  %3084 = vmatprep.subr.mxu0 0.0
  %3085 = vmatpush1.msra.mxu0 0.0
  %3086 = vmatprep.subr.mxu0 0.0
  %3087 = vmatpush1.msra.mxu0 0.0
  %3088 = vmatprep.subr.mxu0 0.0
  %3089 = vmatpush1.msra.mxu0 0.0
  %3090 = vmatprep.subr.mxu0 0.0
  %3091 = vmatpush1.msra.mxu0 0.0
  %3092 = vmatprep.subr.mxu0 0.0
  %3093 = vmatpush1.msra.mxu0 0.0
  %3094 = vmatprep.subr.mxu0 0.0
  %3095 = vmatpush1.msra.mxu0 %v34
  %3096 = vmatprep.subr.mxu0 0.0
  %3097 = vmatpush1.msra.mxu0 %v33
  %3098 = vmatprep.subr.mxu0 0.0
  %3099 = vmatpush2.msra.mxu0 0.0
  %3100 = vmatprep.subr.mxu0 0.0
  %3101 = vmatpush2.msra.mxu0 0.0
  %3102 = vmatprep.subr.mxu0 0.0
  %3103 = vmatpush2.msra.mxu0 0.0
  %3104 = vmatprep.subr.mxu0 0.0
  %3105 = vmatpush2.msra.mxu0 0.0
  %3106 = vmatprep.subr.mxu0 0.0
  %3107 = vmatpush2.msra.mxu0 0.0
  %3108 = vmatprep.subr.mxu0 0.0
  %3109 = vmatpush2.msra.mxu0 0.0
  %3110 = vmatprep.subr.mxu0 0.0
  %3111 = vmatpush2.msra.mxu0 0.0
  %3112 = vmatprep.subr.mxu0 0.0
  %3113 = vmatpush2.msra.mxu0 0.0
  %3114 = vmatprep.subr.mxu0 0.0
  %3115 = vmatpush2.msra.mxu0 0.0
  %3116 = vmatprep.subr.mxu0 0.0
  %3117 = vmatpush2.msra.mxu0 0.0
  %3118 = vmatprep.subr.mxu0 0.0
  %3119 = vmatpush2.msra.mxu0 0.0
  %3120 = vmatprep.subr.mxu0 0.0
  %3121 = vmatpush2.msra.mxu0 0.0
  %3122 = vmatprep.subr.mxu0 0.0
  %3123 = vmatpush2.msra.mxu0 0.0
  %3124 = vmatprep.subr.mxu0 0.0
  %3125 = vmatpush2.msra.mxu0 0.0
  %3126 = vmatprep.subr.mxu0 0.0
  %3127 = vmatpush2.msra.mxu0 0.0
  %3128 = vmatprep.subr.mxu0 0.0
  %3129 = vmatpush2.msra.mxu0 0.0
  %3130 = vmatprep.mubr.f32.mxu0 0.0
  %3131 = vmatmul.mubr.f32.gmra.mxu0 %v3064
  %v3132 = vpop.f32.mrf.mxu0
  %v3133 = vadd.f32 0.0, %v3132
  %v3134 = vpop.f32.mrf.mxu0
  %3135 = vdwg.mxu0
  %v3136 = vadd.f32 %v3058, %v3133
  %v3137 = vadd.f32 %v3136, %v417
  %v3138 = vxor.u32 %v3137, 2147483648
  %v3139 = vmul.f32 %v3138, 1.442695
  %v3140 = vpow.pop %v3139
  %v3141 = vadd.f32 %v3140, 1.0
  %v3142 = vrcp.pop %v3141
  %v3143 = vmul.f32 1.0, %v3142
  %v3144 = vtanh.pop %v3137
  %v3145 = vmul.f32 %v3143, %v2702
  %3147 = vrot.lane.b32.xlu0 %v3144, 80
  %v3148 = vpop.permute.xlu0 %3147
  %v3150 = vmul.f32 %v3143, %v3148
  %3152 = vrot.lane.b32.xlu0 %v3150, 16
  %v3153 = vpop.permute.xlu0 %3152
  %v3155 = vadd.f32 %v3145, %v3153
  %v3156 = vtanh.pop %v3155
  %3158 = vrot.lane.b32.xlu0 %v3156, 16
  %v3159 = vpop.permute.xlu0 %3158
  %v3161 = vmul.f32 %v3143, %v3159
  %v3163 = vrot.slane %v3058, 1
  %v3164 = vrot.slane %v3058, 2
  %v3165 = vrot.slane %v3058, 3
  %v3166 = vrot.slane %v3058, 4
  %v3167 = vrot.slane %v3058, 5
  %v3168 = vrot.slane %v3058, 6
  %v3169 = vrot.slane %v3058, 7
  %3170 = vrot.lane.b32.xlu0 %v3163, 64
  %v3171 = vpop.permute.xlu0 %3170
  %3172 = vrot.lane.b32.xlu0 %v3164, 64
  %v3173 = vpop.permute.xlu0 %3172
  %3174 = vrot.lane.b32.xlu0 %v3165, 64
  %v3175 = vpop.permute.xlu0 %3174
  %3176 = vrot.lane.b32.xlu0 %v3166, 64
  %v3177 = vpop.permute.xlu0 %3176
  %3178 = vrot.lane.b32.xlu0 %v3167, 64
  %v3179 = vpop.permute.xlu0 %3178
  %3180 = vrot.lane.b32.xlu0 %v3168, 64
  %v3181 = vpop.permute.xlu0 %3180
  %3182 = vrot.lane.b32.xlu0 %v3169, 64
  %v3183 = vpop.permute.xlu0 %3182
  %3184 = vrot.lane.b32.xlu0 %v3058, 64
  %v3185 = vpop.permute.xlu0 %3184
  %v3194 = vadd.f32 %v109, %v3171
  %v3195 = vadd.f32 %v110, %v3173
  %v3196 = vadd.f32 %v111, %v3175
  %v3197 = vadd.f32 %v112, %v3177
  %v3198 = vadd.f32 %v113, %v3179
  %v3199 = vadd.f32 %v114, %v3181
  %v3200 = vadd.f32 %v115, %v3183
  %v3201 = vadd.f32 %v116, %v3185
  %v3202 = vxor.u32 %v3194, 2147483648
  %v3203 = vxor.u32 %v3195, 2147483648
  %v3204 = vxor.u32 %v3196, 2147483648
  %v3205 = vxor.u32 %v3197, 2147483648
  %v3206 = vxor.u32 %v3198, 2147483648
  %v3207 = vxor.u32 %v3199, 2147483648
  %v3208 = vxor.u32 %v3200, 2147483648
  %v3209 = vxor.u32 %v3201, 2147483648
  %v3210 = vmul.f32 %v3202, 1.442695
  %v3211 = vpow.pop %v3210
  %v3212 = vmul.f32 %v3203, 1.442695
  %v3213 = vpow.pop %v3212
  %v3214 = vmul.f32 %v3204, 1.442695
  %v3215 = vpow.pop %v3214
  %v3216 = vmul.f32 %v3205, 1.442695
  %v3217 = vpow.pop %v3216
  %v3218 = vmul.f32 %v3206, 1.442695
  %v3219 = vpow.pop %v3218
  %v3220 = vmul.f32 %v3207, 1.442695
  %v3221 = vpow.pop %v3220
  %v3222 = vmul.f32 %v3208, 1.442695
  %v3223 = vpow.pop %v3222
  %v3224 = vmul.f32 %v3209, 1.442695
  %v3225 = vpow.pop %v3224
  %v3226 = vadd.f32 %v3211, 1.0
  %v3227 = vadd.f32 %v3213, 1.0
  %v3228 = vadd.f32 %v3215, 1.0
  %v3229 = vadd.f32 %v3217, 1.0
  %v3230 = vadd.f32 %v3219, 1.0
  %v3231 = vadd.f32 %v3221, 1.0
  %v3232 = vadd.f32 %v3223, 1.0
  %v3233 = vadd.f32 %v3225, 1.0
  %v3234 = vrcp.pop %v3226
  %v3235 = vmul.f32 1.0, %v3234
  %v3236 = vrcp.pop %v3227
  %v3237 = vmul.f32 1.0, %v3236
  %v3238 = vrcp.pop %v3228
  %v3239 = vmul.f32 1.0, %v3238
  %v3240 = vrcp.pop %v3229
  %v3241 = vmul.f32 1.0, %v3240
  %v3242 = vrcp.pop %v3230
  %v3243 = vmul.f32 1.0, %v3242
  %v3244 = vrcp.pop %v3231
  %v3245 = vmul.f32 1.0, %v3244
  %v3246 = vrcp.pop %v3232
  %v3247 = vmul.f32 1.0, %v3246
  %v3248 = vrcp.pop %v3233
  %v3249 = vmul.f32 1.0, %v3248
  %v3250 = vtanh.pop %v3194
  %v3251 = vtanh.pop %v3195
  %v3252 = vtanh.pop %v3196
  %v3253 = vtanh.pop %v3197
  %v3254 = vtanh.pop %v3198
  %v3255 = vtanh.pop %v3199
  %v3256 = vtanh.pop %v3200
  %v3257 = vtanh.pop %v3201
  %v3266 = vrot.slane %v2909, 7
  %v3267 = vrot.slane %v2910, 7
  %v3268 = vrot.slane %v2911, 7
  %v3269 = vrot.slane %v2912, 7
  %v3270 = vrot.slane %v2913, 7
  %v3271 = vrot.slane %v2914, 7
  %v3272 = vrot.slane %v2915, 7
  %v3273 = vrot.slane %v2916, 7
  %v3282 = vmul.f32 %v3235, %v3266
  %v3283 = vmul.f32 %v3237, %v3267
  %v3284 = vmul.f32 %v3239, %v3268
  %v3285 = vmul.f32 %v3241, %v3269
  %v3286 = vmul.f32 %v3243, %v3270
  %v3287 = vmul.f32 %v3245, %v3271
  %v3288 = vmul.f32 %v3247, %v3272
  %v3289 = vmul.f32 %v3249, %v3273
  %3298 = vrot.lane.b32.xlu0 %v3250, 80
  %v3299 = vpop.permute.xlu0 %3298
  %3300 = vrot.lane.b32.xlu0 %v3251, 80
  %v3301 = vpop.permute.xlu0 %3300
  %3302 = vrot.lane.b32.xlu0 %v3252, 80
  %v3303 = vpop.permute.xlu0 %3302
  %3304 = vrot.lane.b32.xlu0 %v3253, 80
  %v3305 = vpop.permute.xlu0 %3304
  %3306 = vrot.lane.b32.xlu0 %v3254, 80
  %v3307 = vpop.permute.xlu0 %3306
  %3308 = vrot.lane.b32.xlu0 %v3255, 80
  %v3309 = vpop.permute.xlu0 %3308
  %3310 = vrot.lane.b32.xlu0 %v3256, 80
  %v3311 = vpop.permute.xlu0 %3310
  %3312 = vrot.lane.b32.xlu0 %v3257, 80
  %v3313 = vpop.permute.xlu0 %3312
  %v3322 = vmul.f32 %v3235, %v3299
  %v3323 = vmul.f32 %v3237, %v3301
  %v3324 = vmul.f32 %v3239, %v3303
  %v3325 = vmul.f32 %v3241, %v3305
  %v3326 = vmul.f32 %v3243, %v3307
  %v3327 = vmul.f32 %v3245, %v3309
  %v3328 = vmul.f32 %v3247, %v3311
  %v3329 = vmul.f32 %v3249, %v3313
  %3338 = vrot.lane.b32.xlu0 %v3322, 16
  %v3339 = vpop.permute.xlu0 %3338
  %3340 = vrot.lane.b32.xlu0 %v3323, 16
  %v3341 = vpop.permute.xlu0 %3340
  %3342 = vrot.lane.b32.xlu0 %v3324, 16
  %v3343 = vpop.permute.xlu0 %3342
  %3344 = vrot.lane.b32.xlu0 %v3325, 16
  %v3345 = vpop.permute.xlu0 %3344
  %3346 = vrot.lane.b32.xlu0 %v3326, 16
  %v3347 = vpop.permute.xlu0 %3346
  %3348 = vrot.lane.b32.xlu0 %v3327, 16
  %v3349 = vpop.permute.xlu0 %3348
  %3350 = vrot.lane.b32.xlu0 %v3328, 16
  %v3351 = vpop.permute.xlu0 %3350
  %3352 = vrot.lane.b32.xlu0 %v3329, 16
  %v3353 = vpop.permute.xlu0 %3352
  %v3362 = vadd.f32 %v3282, %v3339
  %v3363 = vadd.f32 %v3283, %v3341
  %v3364 = vadd.f32 %v3284, %v3343
  %v3365 = vadd.f32 %v3285, %v3345
  %v3366 = vadd.f32 %v3286, %v3347
  %v3367 = vadd.f32 %v3287, %v3349
  %v3368 = vadd.f32 %v3288, %v3351
  %v3369 = vadd.f32 %v3289, %v3353
  %v3370 = vtanh.pop %v3362
  %v3371 = vtanh.pop %v3363
  %v3372 = vtanh.pop %v3364
  %v3373 = vtanh.pop %v3365
  %v3374 = vtanh.pop %v3366
  %v3375 = vtanh.pop %v3367
  %v3376 = vtanh.pop %v3368
  %v3377 = vtanh.pop %v3369
  %3386 = vrot.lane.b32.xlu0 %v3370, 16
  %v3387 = vpop.permute.xlu0 %3386
  %3388 = vrot.lane.b32.xlu0 %v3371, 16
  %v3389 = vpop.permute.xlu0 %3388
  %3390 = vrot.lane.b32.xlu0 %v3372, 16
  %v3391 = vpop.permute.xlu0 %3390
  %3392 = vrot.lane.b32.xlu0 %v3373, 16
  %v3393 = vpop.permute.xlu0 %3392
  %3394 = vrot.lane.b32.xlu0 %v3374, 16
  %v3395 = vpop.permute.xlu0 %3394
  %3396 = vrot.lane.b32.xlu0 %v3375, 16
  %v3397 = vpop.permute.xlu0 %3396
  %3398 = vrot.lane.b32.xlu0 %v3376, 16
  %v3399 = vpop.permute.xlu0 %3398
  %3400 = vrot.lane.b32.xlu0 %v3377, 16
  %v3401 = vpop.permute.xlu0 %3400
  %v3410 = vmul.f32 %v3235, %v3387
  %v3411 = vmul.f32 %v3237, %v3389
  %v3412 = vmul.f32 %v3239, %v3391
  %v3413 = vmul.f32 %v3241, %v3393
  %v3414 = vmul.f32 %v3243, %v3395
  %v3415 = vmul.f32 %v3245, %v3397
  %v3416 = vmul.f32 %v3247, %v3399
  %v3417 = vmul.f32 %v3249, %v3401
  %v3426 = vrot.slane %v3410, 7
  %v3427 = vrot.slane %v3411, 6
  %v3428 = vsel %vm318, %v3427, %v3426
  %v3429 = vrot.slane %v3412, 5
  %v3430 = vsel %vm321, %v3429, %v3428
  %v3431 = vrot.slane %v3413, 4
  %v3432 = vsel %vm324, %v3431, %v3430
  %v3433 = vrot.slane %v3414, 3
  %v3434 = vsel %vm327, %v3433, %v3432
  %v3435 = vrot.slane %v3415, 2
  %v3436 = vsel %vm330, %v3435, %v3434
  %v3437 = vrot.slane %v3416, 1
  %v3438 = vsel %vm333, %v3437, %v3436
  %v3439 = vsel %vm336, %v3417, %v3438
  %3440 = vrot.lane.b32.xlu0 %v3439, 96
  %v3441 = vpop.permute.xlu0 %3440
  %v3442 = vsel %vm340, %v3441, 0
  %3444 = vmatprep.subr.mxu0 0.0
  %3445 = vmatpush1.msra.mxu0 0.0
  %3446 = vmatprep.subr.mxu0 0.0
  %3447 = vmatpush1.msra.mxu0 0.0
  %3448 = vmatprep.subr.mxu0 0.0
  %3449 = vmatpush1.msra.mxu0 0.0
  %3450 = vmatprep.subr.mxu0 0.0
  %3451 = vmatpush1.msra.mxu0 0.0
  %3452 = vmatprep.subr.mxu0 0.0
  %3453 = vmatpush1.msra.mxu0 0.0
  %3454 = vmatprep.subr.mxu0 0.0
  %3455 = vmatpush1.msra.mxu0 0.0
  %3456 = vmatprep.subr.mxu0 0.0
  %3457 = vmatpush1.msra.mxu0 0.0
  %3458 = vmatprep.subr.mxu0 0.0
  %3459 = vmatpush1.msra.mxu0 0.0
  %3460 = vmatprep.subr.mxu0 0.0
  %3461 = vmatpush1.msra.mxu0 0.0
  %3462 = vmatprep.subr.mxu0 0.0
  %3463 = vmatpush1.msra.mxu0 0.0
  %3464 = vmatprep.subr.mxu0 0.0
  %3465 = vmatpush1.msra.mxu0 0.0
  %3466 = vmatprep.subr.mxu0 0.0
  %3467 = vmatpush1.msra.mxu0 0.0
  %3468 = vmatprep.subr.mxu0 0.0
  %3469 = vmatpush1.msra.mxu0 0.0
  %3470 = vmatprep.subr.mxu0 0.0
  %3471 = vmatpush1.msra.mxu0 0.0
  %3472 = vmatprep.subr.mxu0 0.0
  %3473 = vmatpush1.msra.mxu0 %v32
  %3474 = vmatprep.subr.mxu0 0.0
  %3475 = vmatpush1.msra.mxu0 %v31
  %3476 = vmatprep.subr.mxu0 0.0
  %3477 = vmatpush2.msra.mxu0 0.0
  %3478 = vmatprep.subr.mxu0 0.0
  %3479 = vmatpush2.msra.mxu0 0.0
  %3480 = vmatprep.subr.mxu0 0.0
  %3481 = vmatpush2.msra.mxu0 0.0
  %3482 = vmatprep.subr.mxu0 0.0
  %3483 = vmatpush2.msra.mxu0 0.0
  %3484 = vmatprep.subr.mxu0 0.0
  %3485 = vmatpush2.msra.mxu0 0.0
  %3486 = vmatprep.subr.mxu0 0.0
  %3487 = vmatpush2.msra.mxu0 0.0
  %3488 = vmatprep.subr.mxu0 0.0
  %3489 = vmatpush2.msra.mxu0 0.0
  %3490 = vmatprep.subr.mxu0 0.0
  %3491 = vmatpush2.msra.mxu0 0.0
  %3492 = vmatprep.subr.mxu0 0.0
  %3493 = vmatpush2.msra.mxu0 0.0
  %3494 = vmatprep.subr.mxu0 0.0
  %3495 = vmatpush2.msra.mxu0 0.0
  %3496 = vmatprep.subr.mxu0 0.0
  %3497 = vmatpush2.msra.mxu0 0.0
  %3498 = vmatprep.subr.mxu0 0.0
  %3499 = vmatpush2.msra.mxu0 0.0
  %3500 = vmatprep.subr.mxu0 0.0
  %3501 = vmatpush2.msra.mxu0 0.0
  %3502 = vmatprep.subr.mxu0 0.0
  %3503 = vmatpush2.msra.mxu0 0.0
  %3504 = vmatprep.subr.mxu0 0.0
  %3505 = vmatpush2.msra.mxu0 0.0
  %3506 = vmatprep.subr.mxu0 0.0
  %3507 = vmatpush2.msra.mxu0 0.0
  %3508 = vmatprep.mubr.f32.mxu0 0.0
  %3509 = vmatmul.mubr.f32.gmra.mxu0 %v3442
  %v3510 = vpop.f32.mrf.mxu0
  %v3511 = vadd.f32 0.0, %v3510
  %v3512 = vpop.f32.mrf.mxu0
  %3513 = vdwg.mxu0
  %3515 = vrot.lane.b32.xlu0 %v3161, 96
  %v3516 = vpop.permute.xlu0 %3515
  %v3517 = vsel %vm340, %v3516, 0
  %3519 = vmatprep.subr.mxu0 0.0
  %3520 = vmatpush1.msra.mxu0 0.0
  %3521 = vmatprep.subr.mxu0 0.0
  %3522 = vmatpush1.msra.mxu0 0.0
  %3523 = vmatprep.subr.mxu0 0.0
  %3524 = vmatpush1.msra.mxu0 0.0
  %3525 = vmatprep.subr.mxu0 0.0
  %3526 = vmatpush1.msra.mxu0 0.0
  %3527 = vmatprep.subr.mxu0 0.0
  %3528 = vmatpush1.msra.mxu0 0.0
  %3529 = vmatprep.subr.mxu0 0.0
  %3530 = vmatpush1.msra.mxu0 0.0
  %3531 = vmatprep.subr.mxu0 0.0
  %3532 = vmatpush1.msra.mxu0 0.0
  %3533 = vmatprep.subr.mxu0 0.0
  %3534 = vmatpush1.msra.mxu0 0.0
  %3535 = vmatprep.subr.mxu0 0.0
  %3536 = vmatpush1.msra.mxu0 0.0
  %3537 = vmatprep.subr.mxu0 0.0
  %3538 = vmatpush1.msra.mxu0 0.0
  %3539 = vmatprep.subr.mxu0 0.0
  %3540 = vmatpush1.msra.mxu0 0.0
  %3541 = vmatprep.subr.mxu0 0.0
  %3542 = vmatpush1.msra.mxu0 0.0
  %3543 = vmatprep.subr.mxu0 0.0
  %3544 = vmatpush1.msra.mxu0 0.0
  %3545 = vmatprep.subr.mxu0 0.0
  %3546 = vmatpush1.msra.mxu0 0.0
  %3547 = vmatprep.subr.mxu0 0.0
  %3548 = vmatpush1.msra.mxu0 %v34
  %3549 = vmatprep.subr.mxu0 0.0
  %3550 = vmatpush1.msra.mxu0 %v33
  %3551 = vmatprep.subr.mxu0 0.0
  %3552 = vmatpush2.msra.mxu0 0.0
  %3553 = vmatprep.subr.mxu0 0.0
  %3554 = vmatpush2.msra.mxu0 0.0
  %3555 = vmatprep.subr.mxu0 0.0
  %3556 = vmatpush2.msra.mxu0 0.0
  %3557 = vmatprep.subr.mxu0 0.0
  %3558 = vmatpush2.msra.mxu0 0.0
  %3559 = vmatprep.subr.mxu0 0.0
  %3560 = vmatpush2.msra.mxu0 0.0
  %3561 = vmatprep.subr.mxu0 0.0
  %3562 = vmatpush2.msra.mxu0 0.0
  %3563 = vmatprep.subr.mxu0 0.0
  %3564 = vmatpush2.msra.mxu0 0.0
  %3565 = vmatprep.subr.mxu0 0.0
  %3566 = vmatpush2.msra.mxu0 0.0
  %3567 = vmatprep.subr.mxu0 0.0
  %3568 = vmatpush2.msra.mxu0 0.0
  %3569 = vmatprep.subr.mxu0 0.0
  %3570 = vmatpush2.msra.mxu0 0.0
  %3571 = vmatprep.subr.mxu0 0.0
  %3572 = vmatpush2.msra.mxu0 0.0
  %3573 = vmatprep.subr.mxu0 0.0
  %3574 = vmatpush2.msra.mxu0 0.0
  %3575 = vmatprep.subr.mxu0 0.0
  %3576 = vmatpush2.msra.mxu0 0.0
  %3577 = vmatprep.subr.mxu0 0.0
  %3578 = vmatpush2.msra.mxu0 0.0
  %3579 = vmatprep.subr.mxu0 0.0
  %3580 = vmatpush2.msra.mxu0 0.0
  %3581 = vmatprep.subr.mxu0 0.0
  %3582 = vmatpush2.msra.mxu0 0.0
  %3583 = vmatprep.mubr.f32.mxu0 0.0
  %3584 = vmatmul.mubr.f32.gmra.mxu0 %v3517
  %v3585 = vpop.f32.mrf.mxu0
  %v3586 = vadd.f32 0.0, %v3585
  %v3587 = vpop.f32.mrf.mxu0
  %3588 = vdwg.mxu0
  %v3589 = vadd.f32 %v3511, %v3586
  %v3590 = vadd.f32 %v3589, %v417
  %v3591 = vxor.u32 %v3590, 2147483648
  %v3592 = vmul.f32 %v3591, 1.442695
  %v3593 = vpow.pop %v3592
  %v3594 = vadd.f32 %v3593, 1.0
  %v3595 = vrcp.pop %v3594
  %v3596 = vmul.f32 1.0, %v3595
  %v3597 = vtanh.pop %v3590
  %v3598 = vmul.f32 %v3596, %v3155
  %3600 = vrot.lane.b32.xlu0 %v3597, 80
  %v3601 = vpop.permute.xlu0 %3600
  %v3603 = vmul.f32 %v3596, %v3601
  %3605 = vrot.lane.b32.xlu0 %v3603, 16
  %v3606 = vpop.permute.xlu0 %3605
  %v3608 = vadd.f32 %v3598, %v3606
  %v3609 = vtanh.pop %v3608
  %3611 = vrot.lane.b32.xlu0 %v3609, 16
  %v3612 = vpop.permute.xlu0 %3611
  %v3614 = vmul.f32 %v3596, %v3612
  %v3616 = vlaneseq
  %v3617 = vshrl.u32 %v3616, 7
  %v3618 = vsub.s32 0, %v3617
  %v3619 = vrot.slane %v38, %v3618
  %3622 = vrot.lane.b32.xlu0 %v3614, 96
  %v3623 = vpop.permute.xlu0 %3622
  %v3624 = vsel %vm340, %v3623, 0
  %3626 = vmatprep.subr.mxu0 0.0
  %3627 = vmatpush1.msra.mxu0 0.0
  %3628 = vmatprep.subr.mxu0 0.0
  %3629 = vmatpush1.msra.mxu0 0.0
  %3630 = vmatprep.subr.mxu0 0.0
  %3631 = vmatpush1.msra.mxu0 0.0
  %3632 = vmatprep.subr.mxu0 0.0
  %3633 = vmatpush1.msra.mxu0 0.0
  %3634 = vmatprep.subr.mxu0 0.0
  %3635 = vmatpush1.msra.mxu0 0.0
  %3636 = vmatprep.subr.mxu0 0.0
  %3637 = vmatpush1.msra.mxu0 0.0
  %3638 = vmatprep.subr.mxu0 0.0
  %3639 = vmatpush1.msra.mxu0 0.0
  %3640 = vmatprep.subr.mxu0 0.0
  %3641 = vmatpush1.msra.mxu0 0.0
  %3642 = vmatprep.subr.mxu0 0.0
  %3643 = vmatpush1.msra.mxu0 0.0
  %3644 = vmatprep.subr.mxu0 0.0
  %3645 = vmatpush1.msra.mxu0 0.0
  %3646 = vmatprep.subr.mxu0 0.0
  %3647 = vmatpush1.msra.mxu0 0.0
  %3648 = vmatprep.subr.mxu0 0.0
  %3649 = vmatpush1.msra.mxu0 0.0
  %3650 = vmatprep.subr.mxu0 0.0
  %3651 = vmatpush1.msra.mxu0 0.0
  %3652 = vmatprep.subr.mxu0 0.0
  %3653 = vmatpush1.msra.mxu0 0.0
  %3654 = vmatprep.subr.mxu0 0.0
  %3655 = vmatpush1.msra.mxu0 %v37
  %3656 = vmatprep.subr.mxu0 0.0
  %3657 = vmatpush1.msra.mxu0 %v36
  %3658 = vmatprep.subr.mxu0 0.0
  %3659 = vmatpush2.msra.mxu0 0.0
  %3660 = vmatprep.subr.mxu0 0.0
  %3661 = vmatpush2.msra.mxu0 0.0
  %3662 = vmatprep.subr.mxu0 0.0
  %3663 = vmatpush2.msra.mxu0 0.0
  %3664 = vmatprep.subr.mxu0 0.0
  %3665 = vmatpush2.msra.mxu0 0.0
  %3666 = vmatprep.subr.mxu0 0.0
  %3667 = vmatpush2.msra.mxu0 0.0
  %3668 = vmatprep.subr.mxu0 0.0
  %3669 = vmatpush2.msra.mxu0 0.0
  %3670 = vmatprep.subr.mxu0 0.0
  %3671 = vmatpush2.msra.mxu0 0.0
  %3672 = vmatprep.subr.mxu0 0.0
  %3673 = vmatpush2.msra.mxu0 0.0
  %3674 = vmatprep.subr.mxu0 0.0
  %3675 = vmatpush2.msra.mxu0 0.0
  %3676 = vmatprep.subr.mxu0 0.0
  %3677 = vmatpush2.msra.mxu0 0.0
  %3678 = vmatprep.subr.mxu0 0.0
  %3679 = vmatpush2.msra.mxu0 0.0
  %3680 = vmatprep.subr.mxu0 0.0
  %3681 = vmatpush2.msra.mxu0 0.0
  %3682 = vmatprep.subr.mxu0 0.0
  %3683 = vmatpush2.msra.mxu0 0.0
  %3684 = vmatprep.subr.mxu0 0.0
  %3685 = vmatpush2.msra.mxu0 0.0
  %3686 = vmatprep.subr.mxu0 0.0
  %3687 = vmatpush2.msra.mxu0 0.0
  %3688 = vmatprep.subr.mxu0 0.0
  %3689 = vmatpush2.msra.mxu0 0.0
  %3690 = vmatprep.mubr.f32.mxu0 0.0
  %3691 = vmatmul.mubr.f32.gmra.mxu0 %v3624
  %v3692 = vpop.f32.mrf.mxu0
  %v3693 = vadd.f32 %v3619, %v3692
  %v3694 = vpop.f32.mrf.mxu0
  %3695 = vdwg.mxu0
  %vm3696 = vcmask 7168
  %3697 = vst.msk [vmem:[%s8] sm:$0xff] %vm3696, %v3693
  // Predicated region
  $region34: #{lstm_forward.1} parent=0 // pred_check
    _
  $region35: #{lstm_forward.1} parent=0 // pred_check_branch
    %3699 = sbr.rel (0) target = $region37
  $region36: #{lstm_forward.1} parent=0 // pred_region
    _
  $region37: #{lstm_forward.1} parent=0 // pred_fallthru
    _
  // Predicated region
  $region38: #{lstm_forward.1} parent=0 // pred_check
    _
  $region39: #{lstm_forward.1} parent=0 // pred_check_branch
    %3701 = sbr.rel (0) target = $region41
  $region40: #{lstm_forward.1} parent=0 // pred_region
    _
  $region41: #{lstm_forward.1} parent=0 // pred_fallthru
    _

</llo_original>
